<compile_context>
chip_gen: v7x
topology: tpu7x:2x2x1
jax: 0.10.0
libtpu: 0.0.40
codegen_flags: <defaults>
</compile_context>

<pallas_src>
import functools
import math

import jax
import jax.numpy as jnp
from jax.experimental import pallas as pl
from jax.experimental.pallas import tpu as pltpu


def _round_up(x, m):
    return (x + m - 1) // m * m


def _pick_tile(dim, candidates):
    for c in candidates:
        if dim % c == 0:
            return c
    return candidates[-1]


# ----------------------------------------------------------------------------
# Pallas kernels
# ----------------------------------------------------------------------------
def _mm_kernel(a_ref, b_ref, bias_ref, o_ref, acc_ref, *, act):
    """(tm,tk)x(tk,tn) tile matmul, bf16 MXU inputs, f32 accum, fused bias/gelu."""
    @pl.when(pl.program_id(2) == 0)
    def _():
        acc_ref[...] = jnp.zeros_like(acc_ref)

    acc_ref[...] += jnp.dot(a_ref[...].astype(jnp.bfloat16),
                            b_ref[...].astype(jnp.bfloat16),
                            preferred_element_type=jnp.float32)

    @pl.when(pl.program_id(2) == pl.num_programs(2) - 1)
    def _():
        r = acc_ref[...] + bias_ref[...]
        if act == "gelu":
            r = jax.nn.gelu(r, approximate=False)   # exact (erf) gelu == F.gelu
        o_ref[...] = r.astype(o_ref.dtype)


@functools.partial(jax.jit, static_argnames=("act",))
def pallas_matmul(a, b, bias, act="none"):
    """a:[M,K] @ b:[K,N] + bias[N], optional exact gelu. f32 in/out, bf16 MXU."""
    M, K = a.shape
    _, N = b.shape
    Kp = _round_up(K, 128)
    Np = _round_up(N, 128)
    Mp = _round_up(M, 8)
    tm = Mp if Mp <= 2048 else 256
    Mp = _round_up(Mp, tm)
    tk = _pick_tile(Kp, (512, 256, 128))
    tn = _pick_tile(Np, (256, 128))

    a_p = a if (Mp == M and Kp == K) else (
        jnp.zeros((Mp, Kp), a.dtype).at[:M, :K].set(a))
    b_p = b if (Kp == K and Np == N) else (
        jnp.zeros((Kp, Np), b.dtype).at[:K, :N].set(b))
    bias_p = bias.reshape(1, N) if Np == N else (
        jnp.zeros((1, Np), bias.dtype).at[0, :N].set(bias))

    grid = (Mp // tm, Np // tn, Kp // tk)
    out = pl.pallas_call(
        functools.partial(_mm_kernel, act=act),
        out_shape=jax.ShapeDtypeStruct((Mp, Np), jnp.float32),
        grid_spec=pltpu.PrefetchScalarGridSpec(
            num_scalar_prefetch=0,
            grid=grid,
            in_specs=[
                pl.BlockSpec((tm, tk), lambda m, n, k: (m, k)),
                pl.BlockSpec((tk, tn), lambda m, n, k: (k, n)),
                pl.BlockSpec((1, tn), lambda m, n, k: (0, n)),
            ],
            out_specs=pl.BlockSpec((tm, tn), lambda m, n, k: (m, n)),
            scratch_shapes=[pltpu.VMEM((tm, tn), jnp.float32)],
        ),
        compiler_params=pltpu.CompilerParams(
            dimension_semantics=("parallel", "parallel", "arbitrary")),
    )(a_p, b_p, bias_p)
    if Mp != M or Np != N:
        out = out[:M, :N]
    return out


def _ln_kernel(x_ref, g_ref, b_ref, o_ref):
    x = x_ref[...]
    mu = jnp.mean(x, axis=-1, keepdims=True)
    var = jnp.mean(jnp.square(x - mu), axis=-1, keepdims=True)
    o_ref[...] = (x - mu) * jax.lax.rsqrt(var + 1e-5) * g_ref[...] + b_ref[...]


def _ln_res_kernel(x_ref, r_ref, g_ref, b_ref, o_ref):
    x = x_ref[...] + r_ref[...]                       # fused residual add
    mu = jnp.mean(x, axis=-1, keepdims=True)
    var = jnp.mean(jnp.square(x - mu), axis=-1, keepdims=True)
    o_ref[...] = (x - mu) * jax.lax.rsqrt(var + 1e-5) * g_ref[...] + b_ref[...]


@jax.jit
def pallas_layernorm(x, gamma, beta, residual=None):
    """Row-tiled LayerNorm over last dim (eps=1e-5); optional fused residual."""
    R, D = x.shape
    Rp = _round_up(R, 8)
    tr = Rp if Rp <= 256 else 128
    Rp = _round_up(Rp, tr)

    def pad_rows(v):
        return v if v.shape[0] == Rp else jnp.zeros((Rp, D), v.dtype).at[:R].set(v)

    row_spec = pl.BlockSpec((tr, D), lambda i: (i, 0))
    vec_spec = pl.BlockSpec((1, D), lambda i: (0, 0))
    if residual is None:
        kernel = _ln_kernel
        ins = [pad_rows(x), gamma.reshape(1, D), beta.reshape(1, D)]
        in_specs = [row_spec, vec_spec, vec_spec]
    else:
        kernel = _ln_res_kernel
        ins = [pad_rows(x), pad_rows(residual),
               gamma.reshape(1, D), beta.reshape(1, D)]
        in_specs = [row_spec, row_spec, vec_spec, vec_spec]

    out = pl.pallas_call(
        kernel,
        out_shape=jax.ShapeDtypeStruct((Rp, D), jnp.float32),
        grid=(Rp // tr,),
        in_specs=in_specs,
        out_specs=row_spec,
        compiler_params=pltpu.CompilerParams(dimension_semantics=("parallel",)),
    )(*ins)
    return out if Rp == R else out[:R]


def _gn_gelu_kernel(x_ref, g_ref, b_ref, o_ref):
    # GroupNorm(512, 512): one channel per group -> normalize over length only.
    x = x_ref[...]                                    # [1, L, 128]
    mu = jnp.mean(x, axis=1, keepdims=True)
    var = jnp.mean(jnp.square(x - mu), axis=1, keepdims=True)
    y = (x - mu) * jax.lax.rsqrt(var + 1e-5) * g_ref[...] + b_ref[...]
    o_ref[...] = jax.nn.gelu(y, approximate=False)


@jax.jit
def pallas_groupnorm_gelu(x, gamma, beta):
    """x:[B,L,C], per-(batch,channel) norm over L, affine per channel, gelu."""
    B, L, C = x.shape
    tc = 128
    grid = (B, C // tc)
    return pl.pallas_call(
        _gn_gelu_kernel,
        out_shape=jax.ShapeDtypeStruct((B, L, C), jnp.float32),
        grid=grid,
        in_specs=[pl.BlockSpec((1, L, tc), lambda b, c: (b, 0, c)),
                  pl.BlockSpec((1, 1, tc), lambda b, c: (0, 0, c)),
                  pl.BlockSpec((1, 1, tc), lambda b, c: (0, 0, c))],
        out_specs=pl.BlockSpec((1, L, tc), lambda b, c: (b, 0, c)),
        compiler_params=pltpu.CompilerParams(
            dimension_semantics=("parallel", "parallel")),
    )(x, gamma.reshape(1, 1, C), beta.reshape(1, 1, C))


def _attn_kernel(q_ref, k_ref, v_ref, o_ref, *, scale):
    # All heads of one batch element per grid step.
    q = q_ref[0].astype(jnp.bfloat16)                 # [H, F, Dh]
    k = k_ref[0].astype(jnp.bfloat16)
    v = v_ref[0].astype(jnp.bfloat16)
    s = jnp.einsum("hqd,hkd->hqk", q, k,
                   preferred_element_type=jnp.float32) * scale
    s = s - jnp.max(s, axis=-1, keepdims=True)
    p = jnp.exp(s)
    l = jnp.sum(p, axis=-1, keepdims=True)
    ctx = jnp.einsum("hqk,hkd->hqd", p.astype(jnp.bfloat16), v,
                     preferred_element_type=jnp.float32)
    o_ref[0] = (ctx * pl.reciprocal(l, approx=True)).astype(o_ref.dtype)


@jax.jit
def pallas_attention(q, k, v):
    """q,k,v: [B, H, F, Dh]. Fused softmax(QK^T/sqrt(Dh)) V, heads batched."""
    # TODO(synk): flash-style KV tiling for very long F (full-F scores per step).
    B, H, F, Dh = q.shape
    scale = 1.0 / math.sqrt(Dh)
    spec = pl.BlockSpec((1, H, F, Dh), lambda b: (b, 0, 0, 0))
    return pl.pallas_call(
        functools.partial(_attn_kernel, scale=scale),
        out_shape=jax.ShapeDtypeStruct((B, H, F, Dh), jnp.float32),
        grid=(B,),
        in_specs=[spec, spec, spec],
        out_specs=spec,
        compiler_params=pltpu.CompilerParams(dimension_semantics=("parallel",)),
    )(q, k, v)


def _posconv_kernel(p_ref, w_ref, b_ref, o_ref):
    a = p_ref[0].astype(jnp.bfloat16)                 # [tm, Cg*k]
    w = w_ref[0].astype(jnp.bfloat16)                 # [Cg*k, Cg]
    r = jnp.dot(a, w, preferred_element_type=jnp.float32) + b_ref[0]
    o_ref[0] = jax.nn.gelu(r, approximate=False)


@jax.jit
def pallas_grouped_posconv(patches, weights, bias):
    """All 16 groups of the positional conv in one call.
    patches:[G,M,Cg*k], weights:[G,Cg*k,Cg], bias:[G,1,Cg] -> gelu(conv) [G,M,Cg]."""
    G, M, Ck = patches.shape
    Cg = weights.shape[-1]
    Mp = _round_up(M, 8)
    tm = Mp if Mp <= 256 else 128
    Mp = _round_up(Mp, tm)
    if Mp != M:
        patches = jnp.zeros((G, Mp, Ck), patches.dtype).at[:, :M].set(patches)
    out = pl.pallas_call(
        _posconv_kernel,
        out_shape=jax.ShapeDtypeStruct((G, Mp, Cg), jnp.float32),
        grid=(G, Mp // tm),
        in_specs=[pl.BlockSpec((1, tm, Ck), lambda g, m: (g, m, 0)),
                  pl.BlockSpec((1, Ck, Cg), lambda g, m: (g, 0, 0)),
                  pl.BlockSpec((1, 1, Cg), lambda g, m: (g, 0, 0))],
        out_specs=pl.BlockSpec((1, tm, Cg), lambda g, m: (g, m, 0)),
        compiler_params=pltpu.CompilerParams(
            dimension_semantics=("parallel", "parallel")),
    )(patches, weights, bias)
    return out if Mp == M else out[:, :M]


# ----------------------------------------------------------------------------
# Model building blocks (JAX glue around the Pallas kernels)
# ----------------------------------------------------------------------------
def conv1d_im2col(x_nlc, w, stride, act="none", bias=None):
    """x:[B,L,Cin], w:[Cout,Cin,k] (PyTorch layout). Valid conv via im2col + matmul."""
    # TODO(synk): replace the im2col gather with a direct strided-window conv
    #             kernel to avoid the ~k/stride activation duplication in HBM.
    B, L, Cin = x_nlc.shape
    Cout, _, k = w.shape
    nf = (L - k) // stride + 1
    idx = jnp.arange(nf)[:, None] * stride + jnp.arange(k)[None, :]      # [nf,k]
    patches = x_nlc[:, idx, :]                                           # [B,nf,k,Cin]
    patches = patches.transpose(0, 1, 3, 2).reshape(B * nf, Cin * k)     # (Cin,k) order
    w2 = w.reshape(Cout, Cin * k).T
    b = bias if bias is not None else jnp.zeros((Cout,), jnp.float32)
    y = pallas_matmul(patches, w2, b, act=act)
    return y.reshape(B, nf, Cout)


def feature_extractor(x_nlc, p):
    h = conv1d_im2col(x_nlc, p["conv0_w"], 5)                 # [B,nf,512]
    h = pallas_groupnorm_gelu(h, p["gn_g"], p["gn_b"])
    h = conv1d_im2col(h, p["conv1_w"], 2, act="gelu")
    h = conv1d_im2col(h, p["conv2_w"], 2, act="gelu")
    h = conv1d_im2col(h, p["conv3_w"], 2, act="gelu")
    h = conv1d_im2col(h, p["conv4_w"], 2, act="gelu")
    h = conv1d_im2col(h, p["conv5_w"], 2, act="gelu")
    h = conv1d_im2col(h, p["conv6_w"], 2, act="gelu")
    return h                                                  # [B, F, 512]


def feature_projection(x, p):
    B, F, D = x.shape
    h = pallas_layernorm(x.reshape(B * F, D), p["fp_ln_g"], p["fp_ln_b"])
    h = pallas_matmul(h, p["fp_w"], p["fp_b"])                # 512 -> 768
    return h.reshape(B, F, 768)


def positional_conv_embedding(x, p):
    """Grouped Conv1d(768,768,k=128,pad=64,groups=16)+bias, gelu, drop last frame."""
    # weight_norm is a parametrization only; forward uses the effective weight.
    B, F, D = x.shape
    G, Cg, k, pad = 16, 48, 128, 64
    xp = jnp.pad(x, ((0, 0), (pad, pad), (0, 0)))             # [B, F+128, 768]
    nf = F + 2 * pad - k + 1                                  # F + 1
    idx = jnp.arange(nf)[:, None] + jnp.arange(k)[None, :]    # [nf, k]
    g = xp[:, idx, :]                                         # [B, nf, k, 768]
    patches = (g.reshape(B, nf, k, G, Cg)
                .transpose(3, 0, 1, 4, 2)
                .reshape(G, B * nf, Cg * k))                  # per-group (cin,k) order
    weights = p["pos_w"].reshape(G, Cg, Cg * k).transpose(0, 2, 1)   # [G, Cg*k, Cg]
    bias = p["pos_b"].reshape(G, 1, Cg)
    y = pallas_grouped_posconv(patches, weights, bias)        # [G, B*nf, Cg] (gelu'd)
    y = y.transpose(1, 0, 2).reshape(B, nf, D)                # [B, F+1, 768]
    return y[:, :-1, :]                                       # drop last frame


def transformer_layer(x, lp):
    """PyTorch TransformerEncoderLayer (post-norm, erf gelu, 12 heads), eval mode."""
    B, F, D = x.shape
    H, Dh = 12, D // 12
    xr = x.reshape(B * F, D)

    qkv = pallas_matmul(xr, lp["wqkv"], lp["bqkv"])           # [B*F, 3D]
    qkv = qkv.reshape(B, F, 3, H, Dh)
    q = qkv[:, :, 0].transpose(0, 2, 1, 3)                    # [B, H, F, Dh]
    k = qkv[:, :, 1].transpose(0, 2, 1, 3)
    v = qkv[:, :, 2].transpose(0, 2, 1, 3)

    ctx = pallas_attention(q, k, v)                           # [B, H, F, Dh]
    ctx = ctx.transpose(0, 2, 1, 3).reshape(B * F, D)
    attn = pallas_matmul(ctx, lp["wo"], lp["bo"])

    x1 = pallas_layernorm(attn, lp["ln1_g"], lp["ln1_b"], residual=xr)
    h = pallas_matmul(x1, lp["w1"], lp["b1"], act="gelu")
    h = pallas_matmul(h, lp["w2"], lp["b2"])
    x2 = pallas_layernorm(h, lp["ln2_g"], lp["ln2_b"], residual=x1)
    return x2.reshape(B, F, D)


def cosine_logits(x, emb):
    """torch.cosine_similarity(x[:,:,None,:], emb[None,None,:,:], dim=-1) / 0.1"""
    B, F, D = x.shape
    xn = x / jnp.maximum(jnp.linalg.norm(x, axis=-1, keepdims=True), 1e-8)
    en = emb / jnp.maximum(jnp.linalg.norm(emb, axis=-1, keepdims=True), 1e-8)
    sim = pallas_matmul(xn.reshape(B * F, D), en.T,
                        jnp.zeros((emb.shape[0],), jnp.float32))
    return sim.reshape(B, F, emb.shape[0]) / 0.1


def hubert_forward(x_b1t, params):
    """x: [B,1,T] (PyTorch layout). Returns (logits [B,F,100], mask=None)."""
    x_nlc = jnp.transpose(x_b1t, (0, 2, 1))                   # -> [B, T, 1]
    h = feature_extractor(x_nlc, params)                      # [B, F, 512]
    h = feature_projection(h, params)                         # [B, F, 768]
    # TODO(synk): training-time span masking (_compute_mask + masked_spec_embed)
    #             not implemented; eval mode returns mask=None as in PyTorch.
    mask = None
    pos = positional_conv_embedding(h, params)                # [B, F, 768]
    B, F, D = h.shape
    h = pallas_layernorm(h.reshape(B * F, D),
                         params["norm_g"], params["norm_b"],
                         residual=pos.reshape(B * F, D)).reshape(B, F, D)
    for lp in params["layers"]:
        h = transformer_layer(h, lp)
    proj = pallas_matmul(h.reshape(B * F, D), params["proj_w"],
                         params["proj_b"]).reshape(B, F, 256)
    logits = cosine_logits(proj, params["label_emb"])
    return logits, mask


# ----------------------------------------------------------------------------
# Deterministic parameter init (shapes from the PyTorch __init__)
# ----------------------------------------------------------------------------
def init_params(key):
    cnt = [0]

    def nk():
        cnt[0] += 1
        return jax.random.fold_in(key, cnt[0])

    def rnd(shape, scale=0.02):
        return scale * jax.random.normal(nk(), shape, jnp.float32)

    p = {
        "conv0_w": rnd((512, 1, 10), 0.3),
        "gn_g": jnp.ones((512,), jnp.float32),
        "gn_b": jnp.zeros((512,), jnp.float32),
        "conv1_w": rnd((512, 512, 3)),
        "conv2_w": rnd((512, 512, 3)),
        "conv3_w": rnd((512, 512, 3)),
        "conv4_w": rnd((512, 512, 3)),
        "conv5_w": rnd((512, 512, 2)),
        "conv6_w": rnd((512, 512, 2)),
        "fp_ln_g": jnp.ones((512,), jnp.float32),
        "fp_ln_b": jnp.zeros((512,), jnp.float32),
        "fp_w": rnd((512, 768)),
        "fp_b": rnd((768,)),
        # effective weight of weight-normalized grouped conv (768, 768/16, 128)
        "pos_w": rnd((768, 48, 128), 0.01),
        "pos_b": rnd((768,)),
        "norm_g": jnp.ones((768,), jnp.float32),
        "norm_b": jnp.zeros((768,), jnp.float32),
        "proj_w": rnd((768, 256)),
        "proj_b": rnd((256,)),
        "label_emb": rnd((100, 256), 1.0),
        "masked_spec_embed": jax.random.uniform(nk(), (768,), jnp.float32),
    }
    layers = []
    for _ in range(12):
        layers.append({
            "wqkv": rnd((768, 3 * 768)), "bqkv": rnd((3 * 768,)),
            "wo": rnd((768, 768)), "bo": rnd((768,)),
            "ln1_g": jnp.ones((768,), jnp.float32),
            "ln1_b": jnp.zeros((768,), jnp.float32),
            "w1": rnd((768, 3072)), "b1": rnd((3072,)),
            "w2": rnd((3072, 768)), "b2": rnd((768,)),
            "ln2_g": jnp.ones((768,), jnp.float32),
            "ln2_b": jnp.zeros((768,), jnp.float32),
        })
    p["layers"] = layers
    return p


if __name__ == "__main__":
    key = jax.random.PRNGKey(0)
    k_param, k_x = jax.random.split(key)

    params = init_params(k_param)

    # Small wav input: B=2, T=2640 samples -> F=8 frames after the conv stack.
    B, T = 2, 2640
    x = jax.random.normal(k_x, (B, 1, T), jnp.float32)

    fwd = jax.jit(hubert_forward)
    logits, mask = fwd(x, params)
    logits = jax.block_until_ready(logits)

    assert logits.shape == (B, 8, 100), logits.shape
    assert mask is None
    assert bool(jnp.all(jnp.isfinite(logits)))
    print("KERNEL_OK")
</pallas_src>

<mosaic_0001>
module attributes {stable_mosaic.version = 11 : i64} {
  func.func @_mm_kernel(%arg0: i32, %arg1: i32, %arg2: i32, %arg3: memref<1056x128xf32, #tpu.memory_space<vmem>>, %arg4: memref<128x256xf32, #tpu.memory_space<vmem>>, %arg5: memref<1x256xf32, #tpu.memory_space<vmem>>, %arg6: memref<1056x256xf32, #tpu.memory_space<vmem>>, %arg7: memref<1056x256xf32, #tpu.memory_space<vmem>>) attributes {dimension_semantics = [#tpu.dimension_semantics<parallel>, #tpu.dimension_semantics<parallel>, #tpu.dimension_semantics<arbitrary>], iteration_bounds = array<i64: 1, 2, 1>, scalar_prefetch = 0 : i64, scratch_operands = 1 : i64, tpu.core_type = #tpu.core_type<tc>, window_params = [{transform_indices = @transform_0, window_bounds = array<i64: 1056, 128>}, {transform_indices = @transform_1, window_bounds = array<i64: 128, 256>}, {transform_indices = @transform_2, window_bounds = array<i64: 1, 256>}, {transform_indices = @transform_3, window_bounds = array<i64: 1056, 256>}]} {
    %c0_i32 = arith.constant 0 : i32
    %0 = arith.cmpi eq, %arg2, %c0_i32 : i32
    %1 = arith.extui %0 : i1 to i32
    %c0_i32_0 = arith.constant 0 : i32
    %2 = arith.cmpi ne, %1, %c0_i32_0 : i32
    scf.if %2 {
      %cst_10 = arith.constant 0.000000e+00 : f32
      %14 = vector.broadcast %cst_10 : f32 to vector<1056x256xf32>
      %c0_11 = arith.constant 0 : index
      %c0_12 = arith.constant 0 : index
      %15 = vector.load %arg7[%c0_11, %c0_12] : memref<1056x256xf32, #tpu.memory_space<vmem>>, vector<1056x256xf32>
      tpu.vector_store %arg7[%c0_11, %c0_12], %14 {strides = array<i32>} : memref<1056x256xf32, #tpu.memory_space<vmem>>, vector<1056x256xf32>,
    } else {
    }
    %c0 = arith.constant 0 : index
    %c0_1 = arith.constant 0 : index
    %3 = vector.load %arg7[%c0, %c0_1] : memref<1056x256xf32, #tpu.memory_space<vmem>>, vector<1056x256xf32>
    %c0_2 = arith.constant 0 : index
    %c0_3 = arith.constant 0 : index
    %4 = vector.load %arg3[%c0_2, %c0_3] : memref<1056x128xf32, #tpu.memory_space<vmem>>, vector<1056x128xf32>
    %5 = arith.truncf %4 : vector<1056x128xf32> to vector<1056x128xbf16>
    %c0_4 = arith.constant 0 : index
    %c0_5 = arith.constant 0 : index
    %6 = vector.load %arg4[%c0_4, %c0_5] : memref<128x256xf32, #tpu.memory_space<vmem>>, vector<128x256xf32>
    %7 = arith.truncf %6 : vector<128x256xf32> to vector<128x256xbf16>
    %cst = arith.constant dense<0.000000e+00> : vector<1056x256xf32>
    %8 = tpu.matmul %5, %7, %cst {dimension_numbers = #tpu.dot_dimension_numbers<[1], [0], [0], [1], [0, 0, 1, 1], [], []>} : vector<1056x128xbf16>, vector<128x256xbf16>, vector<1056x256xf32> -> vector<1056x256xf32>
    %9 = arith.addf %3, %8 : vector<1056x256xf32>
    %c0_6 = arith.constant 0 : index
    %c0_7 = arith.constant 0 : index
    %10 = vector.load %arg7[%c0_6, %c0_7] : memref<1056x256xf32, #tpu.memory_space<vmem>>, vector<1056x256xf32>
    tpu.vector_store %arg7[%c0_6, %c0_7], %9 {strides = array<i32>} : memref<1056x256xf32, #tpu.memory_space<vmem>>, vector<1056x256xf32>,
    %c0_i32_8 = arith.constant 0 : i32
    %11 = arith.cmpi eq, %arg2, %c0_i32_8 : i32
    %12 = arith.extui %11 : i1 to i32
    %c0_i32_9 = arith.constant 0 : i32
    %13 = arith.cmpi ne, %12, %c0_i32_9 : i32
    scf.if %13 {
      %c0_10 = arith.constant 0 : index
      %c0_11 = arith.constant 0 : index
      %14 = vector.load %arg7[%c0_10, %c0_11] : memref<1056x256xf32, #tpu.memory_space<vmem>>, vector<1056x256xf32>
      %c0_12 = arith.constant 0 : index
      %c0_13 = arith.constant 0 : index
      %15 = vector.load %arg5[%c0_12, %c0_13] : memref<1x256xf32, #tpu.memory_space<vmem>>, vector<1x256xf32>
      %16 = vector.broadcast %15 : vector<1x256xf32> to vector<1056x256xf32>
      %17 = arith.addf %14, %16 : vector<1056x256xf32>
      %c0_14 = arith.constant 0 : index
      %c0_15 = arith.constant 0 : index
      %18 = vector.load %arg6[%c0_14, %c0_15] : memref<1056x256xf32, #tpu.memory_space<vmem>>, vector<1056x256xf32>
      tpu.vector_store %arg6[%c0_14, %c0_15], %17 {strides = array<i32>} : memref<1056x256xf32, #tpu.memory_space<vmem>>, vector<1056x256xf32>,
    } else {
    }
    return
  }
  func.func @transform_0(%arg0: i32, %arg1: i32, %arg2: i32) -> (i32, i32) {
    %c0_i32 = arith.constant 0 : i32
    return %arg0, %arg2 : i32, i32
  }
  func.func @transform_1(%arg0: i32, %arg1: i32, %arg2: i32) -> (i32, i32) {
    %c0_i32 = arith.constant 0 : i32
    return %arg2, %arg1 : i32, i32
  }
  func.func @transform_2(%arg0: i32, %arg1: i32, %arg2: i32) -> (i32, i32) {
    %c0_i32 = arith.constant 0 : i32
    %c0_i32_0 = arith.constant 0 : i32
    return %c0_i32, %arg1 : i32, i32
  }
  func.func @transform_3(%arg0: i32, %arg1: i32, %arg2: i32) -> (i32, i32) {
    %c0_i32 = arith.constant 0 : i32
    return %arg0, %arg1 : i32, i32
  }
}

</mosaic_0001>

<llo_original>
// kernel: pallas_matmul.1
$region0: #{pallas_matmul.1}
  #allocation0 [shape = 'u32[]', space=smem, size = 0x4, offset = 0x4, fixed_abs, tag = 'smem constant byte address 0x4 - core index']
  #allocation1 [shape = 'u32[144,128]{1,0:T(1,128)}', space=vmem, size = 0x12000, scoped, tag = 'internal scratch']
  #allocation2 [shape = 'f32[1056,256]{1,0:T(8,128)}', space=vmem, size = 0x108000, scoped, tag = 'scratch operand']
  %s0 = inlined_call_operand.vmem [shape: f32[1056,128], index: 0, kind: input, shape index: {}]
  %s1 = inlined_call_operand.vmem [shape: f32[128,512], index: 1, kind: input, shape index: {}]
  %s2 = inlined_call_operand.hbm [shape: f32[1,512], index: 2, kind: input, shape index: {}]
  %s3 = inlined_call_operand.hbm [shape: f32[1056,512], index: 3, kind: output, shape index: {}]
  %s4 = sld [smem:[#allocation0]]
  $region80: #{pallas_matmul.1} parent=0
    _
  %s6 = ssub.s32 1, %s4
  %s7 = scalar_select 0, %s6, %s4
  $region1: #{pallas_matmul.1} parent=0
    #allocation3 [shape = 'u8[262144]{0}', space=vmem, size = 0x40000, scoped, tag = 'input window, operand 1']
    #allocation4 [shape = 'u8[2048]{0}', space=vmem, size = 0x800, scoped, tag = 'input window, operand 2']
    #allocation5 [shape = 's32[2]{0}', space=sflag, size = 0x8, scoped, tag = 'scoped memory for pallas_matmul.1']
    #allocation6 [shape = 's32[2]{0}', space=sflag, size = 0x8, scoped, tag = 'scoped memory for pallas_matmul.1']
    #allocation7 [shape = 'u8[2162688]{0}', space=vmem, size = 0x210000, scoped, tag = 'output window, operand 0']
    %8 = vsyncpa [#allocation5], 0
    %s9 = scalar_lea.sflag [#allocation5], 1
    %10 = vsyncpa %s9, 0
    %11 = vsyncpa [#allocation6], 0
    %s12 = scalar_lea.sflag [#allocation6], 1
    %13 = vsyncpa %s12, 0
    loop: start=0, step=1, limit=4
    $region2: #{pallas_matmul.1} parent=1 // loop_pre_header
      _
    $region3: #{pallas_matmul.1} parent=1 // loop_header
      %s15 = sphi 0, %s19
      %p16 = scmp.ge.s32.totalorder %s15, 4
      %s22 = sphi 0, %s41
      %s23 = sphi 0, %s37
      %s24 = sphi 0, %s33
      %s25 = sphi 0, %s22
      %s26 = sphi 0, %s23
      %s27 = sphi 0, %s24
      %s28 = sphi 0, %s25
      %s29 = sphi 0, %s26
      %s30 = sphi 0, %s27
      %s46 = sphi 0, %s48
      %s49 = sphi 0, %s46
      %s50 = sphi 0, %s49
      %s66 = sphi 0, %s50
      %s74 = sphi 0, %s76
      %s77 = sphi 0, %s74
      %s78 = sphi 0, %s77
      %s94 = sphi 0, %s78
      %s100 = sphi 0, %s102
      %s103 = sphi 0, %s100
      %s104 = sphi 0, %s103
      %s120 = sphi 0, %s104
      %s128 = sphi 0, %s130
      %s131 = sphi 0, %s128
      %s132 = sphi 0, %s131
      %s148 = sphi 0, %s132
    $region4: #{pallas_matmul.1} parent=1 // loop_header_branch
      %18 = sbr.rel (%p16) target = $region8
    $region5: #{pallas_matmul.1} parent=1 // loop_body
      %s20 = ssub.s32 %s15, 1
      %s21 = ssub.s32 %s15, 2
      %s31 = sadd.s32 1, %s24
      %p32 = scmp.ge.s32.totalorder %s31, 1
      %s33 = scalar_select %p32, 0, %s31
      %s34 = sadd.s32 1, %s23
      %s35 = scalar_select %p32, %s34, %s23
      %p36 = scmp.ge.s32.totalorder %s35, 2
      %s37 = scalar_select %p36, 0, %s35
      %s38 = sadd.s32 1, %s22
      %s39 = scalar_select %p36, %s38, %s22
      %p40 = scmp.ge.s32.totalorder %s39, 1
      %s41 = scalar_select %p40, 0, %s39
      %s42 = ssub.s32 %s22, %s41
      %s43 = ssub.s32 %s24, %s33
      %s44 = sor.u32 %s42, %s43
      %p45 = scmp.eq.s32.totalorder %s44, 0
      %s47 = sadd.s32 %s46, 1
      %s48 = scalar_select %p45, %s46, %s47
      %p51 = pneg %p45
      %p52 = scmp.eq.s32.totalorder %s15, 1
      %p53 = por %p51, %p52
      %p54 = scmp.ne.s32.totalorder %s46, %s49
      %p55 = scmp.eq.s32.totalorder %s15, 0
      %p56 = por %p54, %p55
      %p57 = scmp.ne.s32.totalorder %s46, %s49
      %p58 = scmp.eq.s32.totalorder %s20, 1
      %p59 = por %p57, %p58
      %p60 = scmp.ne.s32.totalorder %s49, %s50
      %p61 = scmp.eq.s32.totalorder %s20, 0
      %p62 = por %p60, %p61
      %p63 = scmp.ne.s32.totalorder %s49, %s50
      %p64 = scmp.eq.s32.totalorder %s21, 1
      %p65 = por %p63, %p64
      %p67 = scmp.ne.s32.totalorder %s50, %s66
      %p68 = scmp.eq.s32.totalorder %s21, 0
      %p69 = por %p67, %p68
      %s70 = ssub.s32 %s24, %s33
      %s71 = ssub.s32 %s23, %s37
      %s72 = sor.u32 %s70, %s71
      %p73 = scmp.eq.s32.totalorder %s72, 0
      %s75 = sadd.s32 %s74, 1
      %s76 = scalar_select %p73, %s74, %s75
      %p79 = pneg %p73
      %p80 = scmp.eq.s32.totalorder %s15, 1
      %p81 = por %p79, %p80
      %p82 = scmp.ne.s32.totalorder %s74, %s77
      %p83 = scmp.eq.s32.totalorder %s15, 0
      %p84 = por %p82, %p83
      %p85 = scmp.ne.s32.totalorder %s74, %s77
      %p86 = scmp.eq.s32.totalorder %s20, 1
      %p87 = por %p85, %p86
      %p88 = scmp.ne.s32.totalorder %s77, %s78
      %p89 = scmp.eq.s32.totalorder %s20, 0
      %p90 = por %p88, %p89
      %p91 = scmp.ne.s32.totalorder %s77, %s78
      %p92 = scmp.eq.s32.totalorder %s21, 1
      %p93 = por %p91, %p92
      %p95 = scmp.ne.s32.totalorder %s78, %s94
      %p96 = scmp.eq.s32.totalorder %s21, 0
      %p97 = por %p95, %p96
      %s98 = ssub.s32 %s23, %s37
      %p99 = scmp.eq.s32.totalorder %s98, 0
      %s101 = sadd.s32 %s100, 1
      %s102 = scalar_select %p99, %s100, %s101
      %p105 = pneg %p99
      %p106 = scmp.eq.s32.totalorder %s15, 1
      %p107 = por %p105, %p106
      %p108 = scmp.ne.s32.totalorder %s100, %s103
      %p109 = scmp.eq.s32.totalorder %s15, 0
      %p110 = por %p108, %p109
      %p111 = scmp.ne.s32.totalorder %s100, %s103
      %p112 = scmp.eq.s32.totalorder %s20, 1
      %p113 = por %p111, %p112
      %p114 = scmp.ne.s32.totalorder %s103, %s104
      %p115 = scmp.eq.s32.totalorder %s20, 0
      %p116 = por %p114, %p115
      %p117 = scmp.ne.s32.totalorder %s103, %s104
      %p118 = scmp.eq.s32.totalorder %s21, 1
      %p119 = por %p117, %p118
      %p121 = scmp.ne.s32.totalorder %s104, %s120
      %p122 = scmp.eq.s32.totalorder %s21, 0
      %p123 = por %p121, %p122
      %s124 = ssub.s32 %s22, %s41
      %s125 = ssub.s32 %s23, %s37
      %s126 = sor.u32 %s124, %s125
      %p127 = scmp.eq.s32.totalorder %s126, 0
      %s129 = sadd.s32 %s128, 1
      %s130 = scalar_select %p127, %s128, %s129
      %p133 = pneg %p127
      %p134 = scmp.eq.s32.totalorder %s15, 1
      %p135 = por %p133, %p134
      %p136 = scmp.ne.s32.totalorder %s128, %s131
      %p137 = scmp.eq.s32.totalorder %s15, 0
      %p138 = por %p136, %p137
      %p139 = scmp.ne.s32.totalorder %s128, %s131
      %p140 = scmp.eq.s32.totalorder %s20, 1
      %p141 = por %p139, %p140
      %p142 = scmp.ne.s32.totalorder %s131, %s132
      %p143 = scmp.eq.s32.totalorder %s20, 0
      %p144 = por %p142, %p143
      %p145 = scmp.ne.s32.totalorder %s131, %s132
      %p146 = scmp.eq.s32.totalorder %s21, 1
      %p147 = por %p145, %p146
      %p149 = scmp.ne.s32.totalorder %s132, %s148
      %p150 = scmp.eq.s32.totalorder %s21, 0
      %p151 = por %p149, %p150
      %p152 = scmp.le.s32.totalorder 1, %s15
      %p153 = scmp.lt.s32.totalorder %s15, 3
      %p154 = pnand %p152, %p153
      %p155 = pneg %p154
      // Predicated region
      $region9: #{pallas_matmul.1} parent=5 // pred_check
        _
      $region10: #{pallas_matmul.1} parent=5 // pred_check_branch
        %157 = sbr.rel (%p154) target = $region12
      $region11: #{pallas_matmul.1} parent=5 // pred_region
        %s158 = ssub.s32 %s15, 1
        // Predicated region
        $region13: #{pallas_matmul.1} parent=11 // pred_check
          %p159 = pneg %p62
        $region14: #{pallas_matmul.1} parent=11 // pred_check_branch
          %161 = sbr.rel (%p159) target = $region16
        $region15: #{pallas_matmul.1} parent=11 // pred_region
          %s162 = smul.u32 132, %s25
          %p163 = scmp.lt.s32.totalorder %s162, 131
          %s164 = scalar_select %p163, %s162, 131
          %p165 = scmp.lt.s32.totalorder %s27, 0
          %s166 = scalar_select %p165, %s27, 0
          %s167 = sadd.s32 %s166, %s164
          %s168 = smul.addr %s167, 8
          %s169 = scalar_lea.vmem %s0, %s168
          %s170 = smul.u32 132, %s25
        $region16: #{pallas_matmul.1} parent=11 // pred_fallthru
          _
      $region12: #{pallas_matmul.1} parent=5 // pred_fallthru
        _
      %p171 = scmp.lt.s32.totalorder %s15, 2
      // Predicated region
      $region17: #{pallas_matmul.1} parent=5 // pred_check
        %p172 = pneg %p171
      $region18: #{pallas_matmul.1} parent=5 // pred_check_branch
        %174 = sbr.rel (%p172) target = $region20
      $region19: #{pallas_matmul.1} parent=5 // pred_region
        // Predicated region
        $region21: #{pallas_matmul.1} parent=19 // pred_check
          %p175 = pneg %p84
        $region22: #{pallas_matmul.1} parent=19 // pred_check_branch
          %177 = sbr.rel (%p175) target = $region24
        $region23: #{pallas_matmul.1} parent=19 // pred_region
          %s178 = sand.u32 %s74, 1
          %s179 = sand.u32 %s74, 1
          %s180 = smul.addr %s179, 256
          %s181 = scalar_lea.vmem [#allocation3], %s180
          %s182 = smul.u32 16, %s24
          %s183 = smul.u32 2, %s23
          %s184 = smul.addr %s182, 4
          %s185 = sadd.s32 %s183, %s184
          %s186 = smul.addr %s185, 8
          %s187 = scalar_lea.vmem %s1, %s186
          // Predicated region
          $region25: #{pallas_matmul.1} parent=23 // pred_check
            _
          $region26: #{pallas_matmul.1} parent=23 // pred_check_branch
            %189 = sbr.rel (0) target = $region28
          $region27: #{pallas_matmul.1} parent=23 // pred_region
            // Predicated region
            $region29: #{pallas_matmul.1} parent=27 // pred_check
              _
            $region30: #{pallas_matmul.1} parent=27 // pred_check_branch
              %191 = sbr.rel (0) target = $region32
            $region31: #{pallas_matmul.1} parent=27 // pred_region
              loop: start=0, step=1, limit=1
              $region33: #{pallas_matmul.1} parent=31 // loop_pre_header
                _
              $region34: #{pallas_matmul.1} parent=31 // loop_header
                %s193 = sphi 0, %s197
                %p194 = scmp.ge.s32.totalorder %s193, 1
                %s198 = sphi %s187, %s187
                %s199 = sphi %s181, %s181
              $region35: #{pallas_matmul.1} parent=31 // loop_header_branch
                %196 = sbr.rel (%p194) target = $region39
              $region36: #{pallas_matmul.1} parent=31 // loop_body
                %v200 = vld [vmem:[%s198] sm:$0xff]
                %201 = vst [vmem:[%s199] sm:$0xff] %v200
                %v202 = vld [vmem:[%s198 + $0x8] sm:$0xff]
                %203 = vst [vmem:[%s199 + $0x8] sm:$0xff] %v202
                %v204 = vld [vmem:[%s198 + $0x20] sm:$0xff]
                %205 = vst [vmem:[%s199 + $0x10] sm:$0xff] %v204
                %v206 = vld [vmem:[%s198 + $0x28] sm:$0xff]
                %207 = vst [vmem:[%s199 + $0x18] sm:$0xff] %v206
                %v208 = vld [vmem:[%s198 + $0x40] sm:$0xff]
                %209 = vst [vmem:[%s199 + $0x20] sm:$0xff] %v208
                %v210 = vld [vmem:[%s198 + $0x48] sm:$0xff]
                %211 = vst [vmem:[%s199 + $0x28] sm:$0xff] %v210
                %v212 = vld [vmem:[%s198 + $0x60] sm:$0xff]
                %213 = vst [vmem:[%s199 + $0x30] sm:$0xff] %v212
                %v214 = vld [vmem:[%s198 + $0x68] sm:$0xff]
                %215 = vst [vmem:[%s199 + $0x38] sm:$0xff] %v214
                %v216 = vld [vmem:[%s198 + $0x80] sm:$0xff]
                %217 = vst [vmem:[%s199 + $0x40] sm:$0xff] %v216
                %v218 = vld [vmem:[%s198 + $0x88] sm:$0xff]
                %219 = vst [vmem:[%s199 + $0x48] sm:$0xff] %v218
                %v220 = vld [vmem:[%s198 + $0xa0] sm:$0xff]
                %221 = vst [vmem:[%s199 + $0x50] sm:$0xff] %v220
                %v222 = vld [vmem:[%s198 + $0xa8] sm:$0xff]
                %223 = vst [vmem:[%s199 + $0x58] sm:$0xff] %v222
                %v224 = vld [vmem:[%s198 + $0xc0] sm:$0xff]
                %225 = vst [vmem:[%s199 + $0x60] sm:$0xff] %v224
                %v226 = vld [vmem:[%s198 + $0xc8] sm:$0xff]
                %227 = vst [vmem:[%s199 + $0x68] sm:$0xff] %v226
                %v228 = vld [vmem:[%s198 + $0xe0] sm:$0xff]
                %229 = vst [vmem:[%s199 + $0x70] sm:$0xff] %v228
                %v230 = vld [vmem:[%s198 + $0xe8] sm:$0xff]
                %231 = vst [vmem:[%s199 + $0x78] sm:$0xff] %v230
                %v232 = vld [vmem:[%s198 + $0x100] sm:$0xff]
                %233 = vst [vmem:[%s199 + $0x80] sm:$0xff] %v232
                %v234 = vld [vmem:[%s198 + $0x108] sm:$0xff]
                %235 = vst [vmem:[%s199 + $0x88] sm:$0xff] %v234
                %v236 = vld [vmem:[%s198 + $0x120] sm:$0xff]
                %237 = vst [vmem:[%s199 + $0x90] sm:$0xff] %v236
                %v238 = vld [vmem:[%s198 + $0x128] sm:$0xff]
                %239 = vst [vmem:[%s199 + $0x98] sm:$0xff] %v238
                %v240 = vld [vmem:[%s198 + $0x140] sm:$0xff]
                %241 = vst [vmem:[%s199 + $0xa0] sm:$0xff] %v240
                %v242 = vld [vmem:[%s198 + $0x148] sm:$0xff]
                %243 = vst [vmem:[%s199 + $0xa8] sm:$0xff] %v242
                %v244 = vld [vmem:[%s198 + $0x160] sm:$0xff]
                %245 = vst [vmem:[%s199 + $0xb0] sm:$0xff] %v244
                %v246 = vld [vmem:[%s198 + $0x168] sm:$0xff]
                %247 = vst [vmem:[%s199 + $0xb8] sm:$0xff] %v246
                %v248 = vld [vmem:[%s198 + $0x180] sm:$0xff]
                %249 = vst [vmem:[%s199 + $0xc0] sm:$0xff] %v248
                %v250 = vld [vmem:[%s198 + $0x188] sm:$0xff]
                %251 = vst [vmem:[%s199 + $0xc8] sm:$0xff] %v250
                %v252 = vld [vmem:[%s198 + $0x1a0] sm:$0xff]
                %253 = vst [vmem:[%s199 + $0xd0] sm:$0xff] %v252
                %v254 = vld [vmem:[%s198 + $0x1a8] sm:$0xff]
                %255 = vst [vmem:[%s199 + $0xd8] sm:$0xff] %v254
                %v256 = vld [vmem:[%s198 + $0x1c0] sm:$0xff]
                %257 = vst [vmem:[%s199 + $0xe0] sm:$0xff] %v256
                %v258 = vld [vmem:[%s198 + $0x1c8] sm:$0xff]
                %259 = vst [vmem:[%s199 + $0xe8] sm:$0xff] %v258
                %v260 = vld [vmem:[%s198 + $0x1e0] sm:$0xff]
                %261 = vst [vmem:[%s199 + $0xf0] sm:$0xff] %v260
                %v262 = vld [vmem:[%s198 + $0x1e8] sm:$0xff]
                %263 = vst [vmem:[%s199 + $0xf8] sm:$0xff] %v262
              $region37: #{pallas_matmul.1} parent=31 // loop_footer
                %s197 = sadd.s32 1, %s193
              $region38: #{pallas_matmul.1} parent=31 // loop_footer_branch
                %192 = sbr.rel target = $region34
              $region39: #{pallas_matmul.1} parent=31 // loop_exit
                _
            $region32: #{pallas_matmul.1} parent=27 // pred_fallthru
              _
            // Predicated region
            $region40: #{pallas_matmul.1} parent=27 // pred_check
              _
            $region41: #{pallas_matmul.1} parent=27 // pred_check_branch
              %265 = sbr.rel target = $region43
            $region42: #{pallas_matmul.1} parent=27 // pred_region
              _
            $region43: #{pallas_matmul.1} parent=27 // pred_fallthru
              _
          $region28: #{pallas_matmul.1} parent=23 // pred_fallthru
            _
          %266 = vnop
        $region24: #{pallas_matmul.1} parent=19 // pred_fallthru
          _
        // Predicated region
        $region44: #{pallas_matmul.1} parent=19 // pred_check
          %p267 = pneg %p110
        $region45: #{pallas_matmul.1} parent=19 // pred_check_branch
          %269 = sbr.rel (%p267) target = $region47
        $region46: #{pallas_matmul.1} parent=19 // pred_region
          %s270 = sand.u32 %s100, 1
          %s271 = scalar_lea.sflag [#allocation5], %s270
          %s272 = sand.u32 %s100, 1
          %s273 = smul.addr %s272, 2
          %s274 = scalar_lea.vmem [#allocation4], %s273
          %s275 = smul.u32 2, %s23
          %s277 = ssub.s32 32, 32
          %278 = vsyncadd %s271, %s277
          %s279 = smul.addr %s275, 16
          %s280 = scalar_lea.hbm %s2, %s279
          %s282 = sshll.u32 %s274, 4
          %s283 = int_to_ptr.vmem [resolvable:$true] %s282
          %285 = dma.hbm_to_vmem [thread:$0]  %s280, 32, %s283, %s271
        $region47: #{pallas_matmul.1} parent=19 // pred_fallthru
          _
      $region20: #{pallas_matmul.1} parent=5 // pred_fallthru
        _
      %p286 = scmp.le.s32.totalorder 1, %s15
      %p287 = scmp.lt.s32.totalorder %s15, 3
      %p288 = pnand %p286, %p287
      %p289 = pneg %p288
      // Predicated region
      $region48: #{pallas_matmul.1} parent=5 // pred_check
        _
      $region49: #{pallas_matmul.1} parent=5 // pred_check_branch
        %291 = sbr.rel (%p288) target = $region51
      $region50: #{pallas_matmul.1} parent=5 // pred_region
        %s292 = ssub.s32 %s15, 1
        %s293 = sand.u32 %s77, 1
        %s294 = sand.u32 %s77, 1
        %s295 = smul.addr %s294, 256
        %s296 = scalar_lea.vmem [#allocation3], %s295
        // Predicated region
        $region52: #{pallas_matmul.1} parent=50 // pred_check
          %p297 = pneg %p90
        $region53: #{pallas_matmul.1} parent=50 // pred_check_branch
          %299 = sbr.rel (%p297) target = $region55
        $region54: #{pallas_matmul.1} parent=50 // pred_region
          _
        $region55: #{pallas_matmul.1} parent=50 // pred_fallthru
          _
        %s300 = sand.u32 %s103, 1
        %s301 = scalar_lea.sflag [#allocation5], %s300
        %s302 = sand.u32 %s103, 1
        %s303 = smul.addr %s302, 2
        %s304 = scalar_lea.vmem [#allocation4], %s303
        // Predicated region
        $region56: #{pallas_matmul.1} parent=50 // pred_check
          %p305 = pneg %p116
        $region57: #{pallas_matmul.1} parent=50 // pred_check_branch
          %307 = sbr.rel (%p305) target = $region59
        $region58: #{pallas_matmul.1} parent=50 // pred_region
          %308 = dma.done %s301, 32
        $region59: #{pallas_matmul.1} parent=50 // pred_fallthru
          _
        %s309 = smul.u32 132, %s25
        %p310 = scmp.lt.s32.totalorder %s309, 131
        %s311 = scalar_select %p310, %s309, 131
        %p312 = scmp.lt.s32.totalorder %s27, 0
        %s313 = scalar_select %p312, %s27, 0
        %s314 = sadd.s32 %s313, %s311
        %s315 = smul.addr %s314, 8
        %s316 = scalar_lea.vmem %s0, %s315
        %p317 = pneg %p62
        %p318 = pneg %p59
        %s319 = sand.u32 %s77, 1
        %s320 = sand.u32 %s77, 1
        %s321 = smul.addr %s320, 256
        %s322 = scalar_lea.vmem [#allocation3], %s321
        %p323 = pneg %p90
        %p324 = pneg %p87
        %s325 = sand.u32 %s103, 1
        %s326 = scalar_lea.sflag [#allocation5], %s325
        %s327 = sand.u32 %s103, 1
        %s328 = smul.addr %s327, 2
        %s329 = scalar_lea.vmem [#allocation4], %s328
        %p330 = pneg %p116
        %p331 = pneg %p113
        %p332 = pneg %p144
        %p333 = pneg %p141
        %s334 = sand.u32 %s131, 1
        %s335 = scalar_lea.sflag [#allocation6], %s334
        %s336 = sand.u32 %s131, 1
        %s337 = smul.addr %s336, 2112
        %s338 = scalar_lea.vmem [#allocation7], %s337
        %s339 = smul.u32 132, %s25
        %p340 = scmp.lt.s32.totalorder %s339, 131
        %s341 = scalar_select %p340, %s339, 131
        %p342 = scmp.lt.s32.totalorder %s27, 0
        %s343 = scalar_select %p342, %s27, 0
        %s344 = sadd.s32 %s343, %s341
        %s345 = smul.addr %s344, 8
        %s346 = scalar_lea.vmem %s0, %s345
        %s347 = smul.u32 132, %s25
        %s348 = smul.u32 16, %s27
        %s349 = smul.u32 2, %s26
        %s350 = smul.u32 2, %s26
        %s351 = smul.u32 132, %s25
        %s352 = smul.u32 2, %s26
        %p354 = scmp.eq.s32.totalorder %s27, 0
        // Predicated region
        $region60: #{pallas_matmul.1} parent=50 // pred_check
          %p355 = pneg %p354
        $region61: #{pallas_matmul.1} parent=50 // pred_check_branch
          %357 = sbr.rel (%p355) target = $region63
        $region62: #{pallas_matmul.1} parent=50 // pred_region
          %358 = vst [vmem:[#allocation2] sm:$0xff] 0.0
          %359 = vst [vmem:[#allocation2 + $0x8] sm:$0xff] 0.0
          %360 = vst [vmem:[#allocation2 + $0x10] sm:$0xff] 0.0
          %361 = vst [vmem:[#allocation2 + $0x18] sm:$0xff] 0.0
          %362 = vst [vmem:[#allocation2 + $0x20] sm:$0xff] 0.0
          %363 = vst [vmem:[#allocation2 + $0x28] sm:$0xff] 0.0
          %364 = vst [vmem:[#allocation2 + $0x30] sm:$0xff] 0.0
          %365 = vst [vmem:[#allocation2 + $0x38] sm:$0xff] 0.0
          %366 = vst [vmem:[#allocation2 + $0x40] sm:$0xff] 0.0
          %367 = vst [vmem:[#allocation2 + $0x48] sm:$0xff] 0.0
          %368 = vst [vmem:[#allocation2 + $0x50] sm:$0xff] 0.0
          %369 = vst [vmem:[#allocation2 + $0x58] sm:$0xff] 0.0
          %370 = vst [vmem:[#allocation2 + $0x60] sm:$0xff] 0.0
          %371 = vst [vmem:[#allocation2 + $0x68] sm:$0xff] 0.0
          %372 = vst [vmem:[#allocation2 + $0x70] sm:$0xff] 0.0
          %373 = vst [vmem:[#allocation2 + $0x78] sm:$0xff] 0.0
          %374 = vst [vmem:[#allocation2 + $0x80] sm:$0xff] 0.0
          %375 = vst [vmem:[#allocation2 + $0x88] sm:$0xff] 0.0
          %376 = vst [vmem:[#allocation2 + $0x90] sm:$0xff] 0.0
          %377 = vst [vmem:[#allocation2 + $0x98] sm:$0xff] 0.0
          %378 = vst [vmem:[#allocation2 + $0xa0] sm:$0xff] 0.0
          %379 = vst [vmem:[#allocation2 + $0xa8] sm:$0xff] 0.0
          %380 = vst [vmem:[#allocation2 + $0xb0] sm:$0xff] 0.0
          %381 = vst [vmem:[#allocation2 + $0xb8] sm:$0xff] 0.0
          %382 = vst [vmem:[#allocation2 + $0xc0] sm:$0xff] 0.0
          %383 = vst [vmem:[#allocation2 + $0xc8] sm:$0xff] 0.0
          %384 = vst [vmem:[#allocation2 + $0xd0] sm:$0xff] 0.0
          %385 = vst [vmem:[#allocation2 + $0xd8] sm:$0xff] 0.0
          %386 = vst [vmem:[#allocation2 + $0xe0] sm:$0xff] 0.0
          %387 = vst [vmem:[#allocation2 + $0xe8] sm:$0xff] 0.0
          %388 = vst [vmem:[#allocation2 + $0xf0] sm:$0xff] 0.0
          %389 = vst [vmem:[#allocation2 + $0xf8] sm:$0xff] 0.0
          %390 = vst [vmem:[#allocation2 + $0x100] sm:$0xff] 0.0
          %391 = vst [vmem:[#allocation2 + $0x108] sm:$0xff] 0.0
          %392 = vst [vmem:[#allocation2 + $0x110] sm:$0xff] 0.0
          %393 = vst [vmem:[#allocation2 + $0x118] sm:$0xff] 0.0
          %394 = vst [vmem:[#allocation2 + $0x120] sm:$0xff] 0.0
          %395 = vst [vmem:[#allocation2 + $0x128] sm:$0xff] 0.0
          %396 = vst [vmem:[#allocation2 + $0x130] sm:$0xff] 0.0
          %397 = vst [vmem:[#allocation2 + $0x138] sm:$0xff] 0.0
          %398 = vst [vmem:[#allocation2 + $0x140] sm:$0xff] 0.0
          %399 = vst [vmem:[#allocation2 + $0x148] sm:$0xff] 0.0
          %400 = vst [vmem:[#allocation2 + $0x150] sm:$0xff] 0.0
          %401 = vst [vmem:[#allocation2 + $0x158] sm:$0xff] 0.0
          %402 = vst [vmem:[#allocation2 + $0x160] sm:$0xff] 0.0
          %403 = vst [vmem:[#allocation2 + $0x168] sm:$0xff] 0.0
          %404 = vst [vmem:[#allocation2 + $0x170] sm:$0xff] 0.0
          %405 = vst [vmem:[#allocation2 + $0x178] sm:$0xff] 0.0
          %406 = vst [vmem:[#allocation2 + $0x180] sm:$0xff] 0.0
          %407 = vst [vmem:[#allocation2 + $0x188] sm:$0xff] 0.0
          %408 = vst [vmem:[#allocation2 + $0x190] sm:$0xff] 0.0
          %409 = vst [vmem:[#allocation2 + $0x198] sm:$0xff] 0.0
          %410 = vst [vmem:[#allocation2 + $0x1a0] sm:$0xff] 0.0
          %411 = vst [vmem:[#allocation2 + $0x1a8] sm:$0xff] 0.0
          %412 = vst [vmem:[#allocation2 + $0x1b0] sm:$0xff] 0.0
          %413 = vst [vmem:[#allocation2 + $0x1b8] sm:$0xff] 0.0
          %414 = vst [vmem:[#allocation2 + $0x1c0] sm:$0xff] 0.0
          %415 = vst [vmem:[#allocation2 + $0x1c8] sm:$0xff] 0.0
          %416 = vst [vmem:[#allocation2 + $0x1d0] sm:$0xff] 0.0
          %417 = vst [vmem:[#allocation2 + $0x1d8] sm:$0xff] 0.0
          %418 = vst [vmem:[#allocation2 + $0x1e0] sm:$0xff] 0.0
          %419 = vst [vmem:[#allocation2 + $0x1e8] sm:$0xff] 0.0
          %420 = vst [vmem:[#allocation2 + $0x1f0] sm:$0xff] 0.0
          %421 = vst [vmem:[#allocation2 + $0x1f8] sm:$0xff] 0.0
          %422 = vst [vmem:[#allocation2 + $0x200] sm:$0xff] 0.0
          %423 = vst [vmem:[#allocation2 + $0x208] sm:$0xff] 0.0
          %424 = vst [vmem:[#allocation2 + $0x210] sm:$0xff] 0.0
          %425 = vst [vmem:[#allocation2 + $0x218] sm:$0xff] 0.0
          %426 = vst [vmem:[#allocation2 + $0x220] sm:$0xff] 0.0
          %427 = vst [vmem:[#allocation2 + $0x228] sm:$0xff] 0.0
          %428 = vst [vmem:[#allocation2 + $0x230] sm:$0xff] 0.0
          %429 = vst [vmem:[#allocation2 + $0x238] sm:$0xff] 0.0
          %430 = vst [vmem:[#allocation2 + $0x240] sm:$0xff] 0.0
          %431 = vst [vmem:[#allocation2 + $0x248] sm:$0xff] 0.0
          %432 = vst [vmem:[#allocation2 + $0x250] sm:$0xff] 0.0
          %433 = vst [vmem:[#allocation2 + $0x258] sm:$0xff] 0.0
          %434 = vst [vmem:[#allocation2 + $0x260] sm:$0xff] 0.0
          %435 = vst [vmem:[#allocation2 + $0x268] sm:$0xff] 0.0
          %436 = vst [vmem:[#allocation2 + $0x270] sm:$0xff] 0.0
          %437 = vst [vmem:[#allocation2 + $0x278] sm:$0xff] 0.0
          %438 = vst [vmem:[#allocation2 + $0x280] sm:$0xff] 0.0
          %439 = vst [vmem:[#allocation2 + $0x288] sm:$0xff] 0.0
          %440 = vst [vmem:[#allocation2 + $0x290] sm:$0xff] 0.0
          %441 = vst [vmem:[#allocation2 + $0x298] sm:$0xff] 0.0
          %442 = vst [vmem:[#allocation2 + $0x2a0] sm:$0xff] 0.0
          %443 = vst [vmem:[#allocation2 + $0x2a8] sm:$0xff] 0.0
          %444 = vst [vmem:[#allocation2 + $0x2b0] sm:$0xff] 0.0
          %445 = vst [vmem:[#allocation2 + $0x2b8] sm:$0xff] 0.0
          %446 = vst [vmem:[#allocation2 + $0x2c0] sm:$0xff] 0.0
          %447 = vst [vmem:[#allocation2 + $0x2c8] sm:$0xff] 0.0
          %448 = vst [vmem:[#allocation2 + $0x2d0] sm:$0xff] 0.0
          %449 = vst [vmem:[#allocation2 + $0x2d8] sm:$0xff] 0.0
          %450 = vst [vmem:[#allocation2 + $0x2e0] sm:$0xff] 0.0
          %451 = vst [vmem:[#allocation2 + $0x2e8] sm:$0xff] 0.0
          %452 = vst [vmem:[#allocation2 + $0x2f0] sm:$0xff] 0.0
          %453 = vst [vmem:[#allocation2 + $0x2f8] sm:$0xff] 0.0
          %454 = vst [vmem:[#allocation2 + $0x300] sm:$0xff] 0.0
          %455 = vst [vmem:[#allocation2 + $0x308] sm:$0xff] 0.0
          %456 = vst [vmem:[#allocation2 + $0x310] sm:$0xff] 0.0
          %457 = vst [vmem:[#allocation2 + $0x318] sm:$0xff] 0.0
          %458 = vst [vmem:[#allocation2 + $0x320] sm:$0xff] 0.0
          %459 = vst [vmem:[#allocation2 + $0x328] sm:$0xff] 0.0
          %460 = vst [vmem:[#allocation2 + $0x330] sm:$0xff] 0.0
          %461 = vst [vmem:[#allocation2 + $0x338] sm:$0xff] 0.0
          %462 = vst [vmem:[#allocation2 + $0x340] sm:$0xff] 0.0
          %463 = vst [vmem:[#allocation2 + $0x348] sm:$0xff] 0.0
          %464 = vst [vmem:[#allocation2 + $0x350] sm:$0xff] 0.0
          %465 = vst [vmem:[#allocation2 + $0x358] sm:$0xff] 0.0
          %466 = vst [vmem:[#allocation2 + $0x360] sm:$0xff] 0.0
          %467 = vst [vmem:[#allocation2 + $0x368] sm:$0xff] 0.0
          %468 = vst [vmem:[#allocation2 + $0x370] sm:$0xff] 0.0
          %469 = vst [vmem:[#allocation2 + $0x378] sm:$0xff] 0.0
          %470 = vst [vmem:[#allocation2 + $0x380] sm:$0xff] 0.0
          %471 = vst [vmem:[#allocation2 + $0x388] sm:$0xff] 0.0
          %472 = vst [vmem:[#allocation2 + $0x390] sm:$0xff] 0.0
          %473 = vst [vmem:[#allocation2 + $0x398] sm:$0xff] 0.0
          %474 = vst [vmem:[#allocation2 + $0x3a0] sm:$0xff] 0.0
          %475 = vst [vmem:[#allocation2 + $0x3a8] sm:$0xff] 0.0
          %476 = vst [vmem:[#allocation2 + $0x3b0] sm:$0xff] 0.0
          %477 = vst [vmem:[#allocation2 + $0x3b8] sm:$0xff] 0.0
          %478 = vst [vmem:[#allocation2 + $0x3c0] sm:$0xff] 0.0
          %479 = vst [vmem:[#allocation2 + $0x3c8] sm:$0xff] 0.0
          %480 = vst [vmem:[#allocation2 + $0x3d0] sm:$0xff] 0.0
          %481 = vst [vmem:[#allocation2 + $0x3d8] sm:$0xff] 0.0
          %482 = vst [vmem:[#allocation2 + $0x3e0] sm:$0xff] 0.0
          %483 = vst [vmem:[#allocation2 + $0x3e8] sm:$0xff] 0.0
          %484 = vst [vmem:[#allocation2 + $0x3f0] sm:$0xff] 0.0
          %485 = vst [vmem:[#allocation2 + $0x3f8] sm:$0xff] 0.0
          %486 = vst [vmem:[#allocation2 + $0x400] sm:$0xff] 0.0
          %487 = vst [vmem:[#allocation2 + $0x408] sm:$0xff] 0.0
          %488 = vst [vmem:[#allocation2 + $0x410] sm:$0xff] 0.0
          %489 = vst [vmem:[#allocation2 + $0x418] sm:$0xff] 0.0
          %490 = vst [vmem:[#allocation2 + $0x420] sm:$0xff] 0.0
          %491 = vst [vmem:[#allocation2 + $0x428] sm:$0xff] 0.0
          %492 = vst [vmem:[#allocation2 + $0x430] sm:$0xff] 0.0
          %493 = vst [vmem:[#allocation2 + $0x438] sm:$0xff] 0.0
          %494 = vst [vmem:[#allocation2 + $0x440] sm:$0xff] 0.0
          %495 = vst [vmem:[#allocation2 + $0x448] sm:$0xff] 0.0
          %496 = vst [vmem:[#allocation2 + $0x450] sm:$0xff] 0.0
          %497 = vst [vmem:[#allocation2 + $0x458] sm:$0xff] 0.0
          %498 = vst [vmem:[#allocation2 + $0x460] sm:$0xff] 0.0
          %499 = vst [vmem:[#allocation2 + $0x468] sm:$0xff] 0.0
          %500 = vst [vmem:[#allocation2 + $0x470] sm:$0xff] 0.0
          %501 = vst [vmem:[#allocation2 + $0x478] sm:$0xff] 0.0
          %502 = vst [vmem:[#allocation2 + $0x480] sm:$0xff] 0.0
          %503 = vst [vmem:[#allocation2 + $0x488] sm:$0xff] 0.0
          %504 = vst [vmem:[#allocation2 + $0x490] sm:$0xff] 0.0
          %505 = vst [vmem:[#allocation2 + $0x498] sm:$0xff] 0.0
          %506 = vst [vmem:[#allocation2 + $0x4a0] sm:$0xff] 0.0
          %507 = vst [vmem:[#allocation2 + $0x4a8] sm:$0xff] 0.0
          %508 = vst [vmem:[#allocation2 + $0x4b0] sm:$0xff] 0.0
          %509 = vst [vmem:[#allocation2 + $0x4b8] sm:$0xff] 0.0
          %510 = vst [vmem:[#allocation2 + $0x4c0] sm:$0xff] 0.0
          %511 = vst [vmem:[#allocation2 + $0x4c8] sm:$0xff] 0.0
          %512 = vst [vmem:[#allocation2 + $0x4d0] sm:$0xff] 0.0
          %513 = vst [vmem:[#allocation2 + $0x4d8] sm:$0xff] 0.0
          %514 = vst [vmem:[#allocation2 + $0x4e0] sm:$0xff] 0.0
          %515 = vst [vmem:[#allocation2 + $0x4e8] sm:$0xff] 0.0
          %516 = vst [vmem:[#allocation2 + $0x4f0] sm:$0xff] 0.0
          %517 = vst [vmem:[#allocation2 + $0x4f8] sm:$0xff] 0.0
          %518 = vst [vmem:[#allocation2 + $0x500] sm:$0xff] 0.0
          %519 = vst [vmem:[#allocation2 + $0x508] sm:$0xff] 0.0
          %520 = vst [vmem:[#allocation2 + $0x510] sm:$0xff] 0.0
          %521 = vst [vmem:[#allocation2 + $0x518] sm:$0xff] 0.0
          %522 = vst [vmem:[#allocation2 + $0x520] sm:$0xff] 0.0
          %523 = vst [vmem:[#allocation2 + $0x528] sm:$0xff] 0.0
          %524 = vst [vmem:[#allocation2 + $0x530] sm:$0xff] 0.0
          %525 = vst [vmem:[#allocation2 + $0x538] sm:$0xff] 0.0
          %526 = vst [vmem:[#allocation2 + $0x540] sm:$0xff] 0.0
          %527 = vst [vmem:[#allocation2 + $0x548] sm:$0xff] 0.0
          %528 = vst [vmem:[#allocation2 + $0x550] sm:$0xff] 0.0
          %529 = vst [vmem:[#allocation2 + $0x558] sm:$0xff] 0.0
          %530 = vst [vmem:[#allocation2 + $0x560] sm:$0xff] 0.0
          %531 = vst [vmem:[#allocation2 + $0x568] sm:$0xff] 0.0
          %532 = vst [vmem:[#allocation2 + $0x570] sm:$0xff] 0.0
          %533 = vst [vmem:[#allocation2 + $0x578] sm:$0xff] 0.0
          %534 = vst [vmem:[#allocation2 + $0x580] sm:$0xff] 0.0
          %535 = vst [vmem:[#allocation2 + $0x588] sm:$0xff] 0.0
          %536 = vst [vmem:[#allocation2 + $0x590] sm:$0xff] 0.0
          %537 = vst [vmem:[#allocation2 + $0x598] sm:$0xff] 0.0
          %538 = vst [vmem:[#allocation2 + $0x5a0] sm:$0xff] 0.0
          %539 = vst [vmem:[#allocation2 + $0x5a8] sm:$0xff] 0.0
          %540 = vst [vmem:[#allocation2 + $0x5b0] sm:$0xff] 0.0
          %541 = vst [vmem:[#allocation2 + $0x5b8] sm:$0xff] 0.0
          %542 = vst [vmem:[#allocation2 + $0x5c0] sm:$0xff] 0.0
          %543 = vst [vmem:[#allocation2 + $0x5c8] sm:$0xff] 0.0
          %544 = vst [vmem:[#allocation2 + $0x5d0] sm:$0xff] 0.0
          %545 = vst [vmem:[#allocation2 + $0x5d8] sm:$0xff] 0.0
          %546 = vst [vmem:[#allocation2 + $0x5e0] sm:$0xff] 0.0
          %547 = vst [vmem:[#allocation2 + $0x5e8] sm:$0xff] 0.0
          %548 = vst [vmem:[#allocation2 + $0x5f0] sm:$0xff] 0.0
          %549 = vst [vmem:[#allocation2 + $0x5f8] sm:$0xff] 0.0
          %550 = vst [vmem:[#allocation2 + $0x600] sm:$0xff] 0.0
          %551 = vst [vmem:[#allocation2 + $0x608] sm:$0xff] 0.0
          %552 = vst [vmem:[#allocation2 + $0x610] sm:$0xff] 0.0
          %553 = vst [vmem:[#allocation2 + $0x618] sm:$0xff] 0.0
          %554 = vst [vmem:[#allocation2 + $0x620] sm:$0xff] 0.0
          %555 = vst [vmem:[#allocation2 + $0x628] sm:$0xff] 0.0
          %556 = vst [vmem:[#allocation2 + $0x630] sm:$0xff] 0.0
          %557 = vst [vmem:[#allocation2 + $0x638] sm:$0xff] 0.0
          %558 = vst [vmem:[#allocation2 + $0x640] sm:$0xff] 0.0
          %559 = vst [vmem:[#allocation2 + $0x648] sm:$0xff] 0.0
          %560 = vst [vmem:[#allocation2 + $0x650] sm:$0xff] 0.0
          %561 = vst [vmem:[#allocation2 + $0x658] sm:$0xff] 0.0
          %562 = vst [vmem:[#allocation2 + $0x660] sm:$0xff] 0.0
          %563 = vst [vmem:[#allocation2 + $0x668] sm:$0xff] 0.0
          %564 = vst [vmem:[#allocation2 + $0x670] sm:$0xff] 0.0
          %565 = vst [vmem:[#allocation2 + $0x678] sm:$0xff] 0.0
          %566 = vst [vmem:[#allocation2 + $0x680] sm:$0xff] 0.0
          %567 = vst [vmem:[#allocation2 + $0x688] sm:$0xff] 0.0
          %568 = vst [vmem:[#allocation2 + $0x690] sm:$0xff] 0.0
          %569 = vst [vmem:[#allocation2 + $0x698] sm:$0xff] 0.0
          %570 = vst [vmem:[#allocation2 + $0x6a0] sm:$0xff] 0.0
          %571 = vst [vmem:[#allocation2 + $0x6a8] sm:$0xff] 0.0
          %572 = vst [vmem:[#allocation2 + $0x6b0] sm:$0xff] 0.0
          %573 = vst [vmem:[#allocation2 + $0x6b8] sm:$0xff] 0.0
          %574 = vst [vmem:[#allocation2 + $0x6c0] sm:$0xff] 0.0
          %575 = vst [vmem:[#allocation2 + $0x6c8] sm:$0xff] 0.0
          %576 = vst [vmem:[#allocation2 + $0x6d0] sm:$0xff] 0.0
          %577 = vst [vmem:[#allocation2 + $0x6d8] sm:$0xff] 0.0
          %578 = vst [vmem:[#allocation2 + $0x6e0] sm:$0xff] 0.0
          %579 = vst [vmem:[#allocation2 + $0x6e8] sm:$0xff] 0.0
          %580 = vst [vmem:[#allocation2 + $0x6f0] sm:$0xff] 0.0
          %581 = vst [vmem:[#allocation2 + $0x6f8] sm:$0xff] 0.0
          %582 = vst [vmem:[#allocation2 + $0x700] sm:$0xff] 0.0
          %583 = vst [vmem:[#allocation2 + $0x708] sm:$0xff] 0.0
          %584 = vst [vmem:[#allocation2 + $0x710] sm:$0xff] 0.0
          %585 = vst [vmem:[#allocation2 + $0x718] sm:$0xff] 0.0
          %586 = vst [vmem:[#allocation2 + $0x720] sm:$0xff] 0.0
          %587 = vst [vmem:[#allocation2 + $0x728] sm:$0xff] 0.0
          %588 = vst [vmem:[#allocation2 + $0x730] sm:$0xff] 0.0
          %589 = vst [vmem:[#allocation2 + $0x738] sm:$0xff] 0.0
          %590 = vst [vmem:[#allocation2 + $0x740] sm:$0xff] 0.0
          %591 = vst [vmem:[#allocation2 + $0x748] sm:$0xff] 0.0
          %592 = vst [vmem:[#allocation2 + $0x750] sm:$0xff] 0.0
          %593 = vst [vmem:[#allocation2 + $0x758] sm:$0xff] 0.0
          %594 = vst [vmem:[#allocation2 + $0x760] sm:$0xff] 0.0
          %595 = vst [vmem:[#allocation2 + $0x768] sm:$0xff] 0.0
          %596 = vst [vmem:[#allocation2 + $0x770] sm:$0xff] 0.0
          %597 = vst [vmem:[#allocation2 + $0x778] sm:$0xff] 0.0
          %598 = vst [vmem:[#allocation2 + $0x780] sm:$0xff] 0.0
          %599 = vst [vmem:[#allocation2 + $0x788] sm:$0xff] 0.0
          %600 = vst [vmem:[#allocation2 + $0x790] sm:$0xff] 0.0
          %601 = vst [vmem:[#allocation2 + $0x798] sm:$0xff] 0.0
          %602 = vst [vmem:[#allocation2 + $0x7a0] sm:$0xff] 0.0
          %603 = vst [vmem:[#allocation2 + $0x7a8] sm:$0xff] 0.0
          %604 = vst [vmem:[#allocation2 + $0x7b0] sm:$0xff] 0.0
          %605 = vst [vmem:[#allocation2 + $0x7b8] sm:$0xff] 0.0
          %606 = vst [vmem:[#allocation2 + $0x7c0] sm:$0xff] 0.0
          %607 = vst [vmem:[#allocation2 + $0x7c8] sm:$0xff] 0.0
          %608 = vst [vmem:[#allocation2 + $0x7d0] sm:$0xff] 0.0
          %609 = vst [vmem:[#allocation2 + $0x7d8] sm:$0xff] 0.0
          %610 = vst [vmem:[#allocation2 + $0x7e0] sm:$0xff] 0.0
          %611 = vst [vmem:[#allocation2 + $0x7e8] sm:$0xff] 0.0
          %612 = vst [vmem:[#allocation2 + $0x7f0] sm:$0xff] 0.0
          %613 = vst [vmem:[#allocation2 + $0x7f8] sm:$0xff] 0.0
          %614 = vst [vmem:[#allocation2 + $0x800] sm:$0xff] 0.0
          %615 = vst [vmem:[#allocation2 + $0x808] sm:$0xff] 0.0
          %616 = vst [vmem:[#allocation2 + $0x810] sm:$0xff] 0.0
          %617 = vst [vmem:[#allocation2 + $0x818] sm:$0xff] 0.0
          %618 = vst [vmem:[#allocation2 + $0x820] sm:$0xff] 0.0
          %619 = vst [vmem:[#allocation2 + $0x828] sm:$0xff] 0.0
          %620 = vst [vmem:[#allocation2 + $0x830] sm:$0xff] 0.0
          %621 = vst [vmem:[#allocation2 + $0x838] sm:$0xff] 0.0
        $region63: #{pallas_matmul.1} parent=50 // pred_fallthru
          _
        %v622 = vld [vmem:[#allocation2] sm:$0xff]
        %v623 = vld [vmem:[#allocation2 + $0x8] sm:$0xff]
        %v624 = vld [vmem:[#allocation2 + $0x10] sm:$0xff]
        %v625 = vld [vmem:[#allocation2 + $0x18] sm:$0xff]
        %v626 = vld [vmem:[#allocation2 + $0x20] sm:$0xff]
        %v627 = vld [vmem:[#allocation2 + $0x28] sm:$0xff]
        %v628 = vld [vmem:[#allocation2 + $0x30] sm:$0xff]
        %v629 = vld [vmem:[#allocation2 + $0x38] sm:$0xff]
        %v630 = vld [vmem:[#allocation2 + $0x40] sm:$0xff]
        %v631 = vld [vmem:[#allocation2 + $0x48] sm:$0xff]
        %v632 = vld [vmem:[#allocation2 + $0x50] sm:$0xff]
        %v633 = vld [vmem:[#allocation2 + $0x58] sm:$0xff]
        %v634 = vld [vmem:[#allocation2 + $0x60] sm:$0xff]
        %v635 = vld [vmem:[#allocation2 + $0x68] sm:$0xff]
        %v636 = vld [vmem:[#allocation2 + $0x70] sm:$0xff]
        %v637 = vld [vmem:[#allocation2 + $0x78] sm:$0xff]
        %v638 = vld [vmem:[#allocation2 + $0x80] sm:$0xff]
        %v639 = vld [vmem:[#allocation2 + $0x88] sm:$0xff]
        %v640 = vld [vmem:[#allocation2 + $0x90] sm:$0xff]
        %v641 = vld [vmem:[#allocation2 + $0x98] sm:$0xff]
        %v642 = vld [vmem:[#allocation2 + $0xa0] sm:$0xff]
        %v643 = vld [vmem:[#allocation2 + $0xa8] sm:$0xff]
        %v644 = vld [vmem:[#allocation2 + $0xb0] sm:$0xff]
        %v645 = vld [vmem:[#allocation2 + $0xb8] sm:$0xff]
        %v646 = vld [vmem:[#allocation2 + $0xc0] sm:$0xff]
        %v647 = vld [vmem:[#allocation2 + $0xc8] sm:$0xff]
        %v648 = vld [vmem:[#allocation2 + $0xd0] sm:$0xff]
        %v649 = vld [vmem:[#allocation2 + $0xd8] sm:$0xff]
        %v650 = vld [vmem:[#allocation2 + $0xe0] sm:$0xff]
        %v651 = vld [vmem:[#allocation2 + $0xe8] sm:$0xff]
        %v652 = vld [vmem:[#allocation2 + $0xf0] sm:$0xff]
        %v653 = vld [vmem:[#allocation2 + $0xf8] sm:$0xff]
        %v654 = vld [vmem:[#allocation2 + $0x100] sm:$0xff]
        %v655 = vld [vmem:[#allocation2 + $0x108] sm:$0xff]
        %v656 = vld [vmem:[#allocation2 + $0x110] sm:$0xff]
        %v657 = vld [vmem:[#allocation2 + $0x118] sm:$0xff]
        %v658 = vld [vmem:[#allocation2 + $0x120] sm:$0xff]
        %v659 = vld [vmem:[#allocation2 + $0x128] sm:$0xff]
        %v660 = vld [vmem:[#allocation2 + $0x130] sm:$0xff]
        %v661 = vld [vmem:[#allocation2 + $0x138] sm:$0xff]
        %v662 = vld [vmem:[#allocation2 + $0x140] sm:$0xff]
        %v663 = vld [vmem:[#allocation2 + $0x148] sm:$0xff]
        %v664 = vld [vmem:[#allocation2 + $0x150] sm:$0xff]
        %v665 = vld [vmem:[#allocation2 + $0x158] sm:$0xff]
        %v666 = vld [vmem:[#allocation2 + $0x160] sm:$0xff]
        %v667 = vld [vmem:[#allocation2 + $0x168] sm:$0xff]
        %v668 = vld [vmem:[#allocation2 + $0x170] sm:$0xff]
        %v669 = vld [vmem:[#allocation2 + $0x178] sm:$0xff]
        %v670 = vld [vmem:[#allocation2 + $0x180] sm:$0xff]
        %v671 = vld [vmem:[#allocation2 + $0x188] sm:$0xff]
        %v672 = vld [vmem:[#allocation2 + $0x190] sm:$0xff]
        %v673 = vld [vmem:[#allocation2 + $0x198] sm:$0xff]
        %v674 = vld [vmem:[#allocation2 + $0x1a0] sm:$0xff]
        %v675 = vld [vmem:[#allocation2 + $0x1a8] sm:$0xff]
        %v676 = vld [vmem:[#allocation2 + $0x1b0] sm:$0xff]
        %v677 = vld [vmem:[#allocation2 + $0x1b8] sm:$0xff]
        %v678 = vld [vmem:[#allocation2 + $0x1c0] sm:$0xff]
        %v679 = vld [vmem:[#allocation2 + $0x1c8] sm:$0xff]
        %v680 = vld [vmem:[#allocation2 + $0x1d0] sm:$0xff]
        %v681 = vld [vmem:[#allocation2 + $0x1d8] sm:$0xff]
        %v682 = vld [vmem:[#allocation2 + $0x1e0] sm:$0xff]
        %v683 = vld [vmem:[#allocation2 + $0x1e8] sm:$0xff]
        %v684 = vld [vmem:[#allocation2 + $0x1f0] sm:$0xff]
        %v685 = vld [vmem:[#allocation2 + $0x1f8] sm:$0xff]
        %v686 = vld [vmem:[#allocation2 + $0x200] sm:$0xff]
        %v687 = vld [vmem:[#allocation2 + $0x208] sm:$0xff]
        %v688 = vld [vmem:[#allocation2 + $0x210] sm:$0xff]
        %v689 = vld [vmem:[#allocation2 + $0x218] sm:$0xff]
        %v690 = vld [vmem:[#allocation2 + $0x220] sm:$0xff]
        %v691 = vld [vmem:[#allocation2 + $0x228] sm:$0xff]
        %v692 = vld [vmem:[#allocation2 + $0x230] sm:$0xff]
        %v693 = vld [vmem:[#allocation2 + $0x238] sm:$0xff]
        %v694 = vld [vmem:[#allocation2 + $0x240] sm:$0xff]
        %v695 = vld [vmem:[#allocation2 + $0x248] sm:$0xff]
        %v696 = vld [vmem:[#allocation2 + $0x250] sm:$0xff]
        %v697 = vld [vmem:[#allocation2 + $0x258] sm:$0xff]
        %v698 = vld [vmem:[#allocation2 + $0x260] sm:$0xff]
        %v699 = vld [vmem:[#allocation2 + $0x268] sm:$0xff]
        %v700 = vld [vmem:[#allocation2 + $0x270] sm:$0xff]
        %v701 = vld [vmem:[#allocation2 + $0x278] sm:$0xff]
        %v702 = vld [vmem:[#allocation2 + $0x280] sm:$0xff]
        %v703 = vld [vmem:[#allocation2 + $0x288] sm:$0xff]
        %v704 = vld [vmem:[#allocation2 + $0x290] sm:$0xff]
        %v705 = vld [vmem:[#allocation2 + $0x298] sm:$0xff]
        %v706 = vld [vmem:[#allocation2 + $0x2a0] sm:$0xff]
        %v707 = vld [vmem:[#allocation2 + $0x2a8] sm:$0xff]
        %v708 = vld [vmem:[#allocation2 + $0x2b0] sm:$0xff]
        %v709 = vld [vmem:[#allocation2 + $0x2b8] sm:$0xff]
        %v710 = vld [vmem:[#allocation2 + $0x2c0] sm:$0xff]
        %v711 = vld [vmem:[#allocation2 + $0x2c8] sm:$0xff]
        %v712 = vld [vmem:[#allocation2 + $0x2d0] sm:$0xff]
        %v713 = vld [vmem:[#allocation2 + $0x2d8] sm:$0xff]
        %v714 = vld [vmem:[#allocation2 + $0x2e0] sm:$0xff]
        %v715 = vld [vmem:[#allocation2 + $0x2e8] sm:$0xff]
        %v716 = vld [vmem:[#allocation2 + $0x2f0] sm:$0xff]
        %v717 = vld [vmem:[#allocation2 + $0x2f8] sm:$0xff]
        %v718 = vld [vmem:[#allocation2 + $0x300] sm:$0xff]
        %v719 = vld [vmem:[#allocation2 + $0x308] sm:$0xff]
        %v720 = vld [vmem:[#allocation2 + $0x310] sm:$0xff]
        %v721 = vld [vmem:[#allocation2 + $0x318] sm:$0xff]
        %v722 = vld [vmem:[#allocation2 + $0x320] sm:$0xff]
        %v723 = vld [vmem:[#allocation2 + $0x328] sm:$0xff]
        %v724 = vld [vmem:[#allocation2 + $0x330] sm:$0xff]
        %v725 = vld [vmem:[#allocation2 + $0x338] sm:$0xff]
        %v726 = vld [vmem:[#allocation2 + $0x340] sm:$0xff]
        %v727 = vld [vmem:[#allocation2 + $0x348] sm:$0xff]
        %v728 = vld [vmem:[#allocation2 + $0x350] sm:$0xff]
        %v729 = vld [vmem:[#allocation2 + $0x358] sm:$0xff]
        %v730 = vld [vmem:[#allocation2 + $0x360] sm:$0xff]
        %v731 = vld [vmem:[#allocation2 + $0x368] sm:$0xff]
        %v732 = vld [vmem:[#allocation2 + $0x370] sm:$0xff]
        %v733 = vld [vmem:[#allocation2 + $0x378] sm:$0xff]
        %v734 = vld [vmem:[#allocation2 + $0x380] sm:$0xff]
        %v735 = vld [vmem:[#allocation2 + $0x388] sm:$0xff]
        %v736 = vld [vmem:[#allocation2 + $0x390] sm:$0xff]
        %v737 = vld [vmem:[#allocation2 + $0x398] sm:$0xff]
        %v738 = vld [vmem:[#allocation2 + $0x3a0] sm:$0xff]
        %v739 = vld [vmem:[#allocation2 + $0x3a8] sm:$0xff]
        %v740 = vld [vmem:[#allocation2 + $0x3b0] sm:$0xff]
        %v741 = vld [vmem:[#allocation2 + $0x3b8] sm:$0xff]
        %v742 = vld [vmem:[#allocation2 + $0x3c0] sm:$0xff]
        %v743 = vld [vmem:[#allocation2 + $0x3c8] sm:$0xff]
        %v744 = vld [vmem:[#allocation2 + $0x3d0] sm:$0xff]
        %v745 = vld [vmem:[#allocation2 + $0x3d8] sm:$0xff]
        %v746 = vld [vmem:[#allocation2 + $0x3e0] sm:$0xff]
        %v747 = vld [vmem:[#allocation2 + $0x3e8] sm:$0xff]
        %v748 = vld [vmem:[#allocation2 + $0x3f0] sm:$0xff]
        %v749 = vld [vmem:[#allocation2 + $0x3f8] sm:$0xff]
        %v750 = vld [vmem:[#allocation2 + $0x400] sm:$0xff]
        %v751 = vld [vmem:[#allocation2 + $0x408] sm:$0xff]
        %v752 = vld [vmem:[#allocation2 + $0x410] sm:$0xff]
        %v753 = vld [vmem:[#allocation2 + $0x418] sm:$0xff]
        %v754 = vld [vmem:[#allocation2 + $0x420] sm:$0xff]
        %v755 = vld [vmem:[#allocation2 + $0x428] sm:$0xff]
        %v756 = vld [vmem:[#allocation2 + $0x430] sm:$0xff]
        %v757 = vld [vmem:[#allocation2 + $0x438] sm:$0xff]
        %v758 = vld [vmem:[#allocation2 + $0x440] sm:$0xff]
        %v759 = vld [vmem:[#allocation2 + $0x448] sm:$0xff]
        %v760 = vld [vmem:[#allocation2 + $0x450] sm:$0xff]
        %v761 = vld [vmem:[#allocation2 + $0x458] sm:$0xff]
        %v762 = vld [vmem:[#allocation2 + $0x460] sm:$0xff]
        %v763 = vld [vmem:[#allocation2 + $0x468] sm:$0xff]
        %v764 = vld [vmem:[#allocation2 + $0x470] sm:$0xff]
        %v765 = vld [vmem:[#allocation2 + $0x478] sm:$0xff]
        %v766 = vld [vmem:[#allocation2 + $0x480] sm:$0xff]
        %v767 = vld [vmem:[#allocation2 + $0x488] sm:$0xff]
        %v768 = vld [vmem:[#allocation2 + $0x490] sm:$0xff]
        %v769 = vld [vmem:[#allocation2 + $0x498] sm:$0xff]
        %v770 = vld [vmem:[#allocation2 + $0x4a0] sm:$0xff]
        %v771 = vld [vmem:[#allocation2 + $0x4a8] sm:$0xff]
        %v772 = vld [vmem:[#allocation2 + $0x4b0] sm:$0xff]
        %v773 = vld [vmem:[#allocation2 + $0x4b8] sm:$0xff]
        %v774 = vld [vmem:[#allocation2 + $0x4c0] sm:$0xff]
        %v775 = vld [vmem:[#allocation2 + $0x4c8] sm:$0xff]
        %v776 = vld [vmem:[#allocation2 + $0x4d0] sm:$0xff]
        %v777 = vld [vmem:[#allocation2 + $0x4d8] sm:$0xff]
        %v778 = vld [vmem:[#allocation2 + $0x4e0] sm:$0xff]
        %v779 = vld [vmem:[#allocation2 + $0x4e8] sm:$0xff]
        %v780 = vld [vmem:[#allocation2 + $0x4f0] sm:$0xff]
        %v781 = vld [vmem:[#allocation2 + $0x4f8] sm:$0xff]
        %v782 = vld [vmem:[#allocation2 + $0x500] sm:$0xff]
        %v783 = vld [vmem:[#allocation2 + $0x508] sm:$0xff]
        %v784 = vld [vmem:[#allocation2 + $0x510] sm:$0xff]
        %v785 = vld [vmem:[#allocation2 + $0x518] sm:$0xff]
        %v786 = vld [vmem:[#allocation2 + $0x520] sm:$0xff]
        %v787 = vld [vmem:[#allocation2 + $0x528] sm:$0xff]
        %v788 = vld [vmem:[#allocation2 + $0x530] sm:$0xff]
        %v789 = vld [vmem:[#allocation2 + $0x538] sm:$0xff]
        %v790 = vld [vmem:[#allocation2 + $0x540] sm:$0xff]
        %v791 = vld [vmem:[#allocation2 + $0x548] sm:$0xff]
        %v792 = vld [vmem:[#allocation2 + $0x550] sm:$0xff]
        %v793 = vld [vmem:[#allocation2 + $0x558] sm:$0xff]
        %v794 = vld [vmem:[#allocation2 + $0x560] sm:$0xff]
        %v795 = vld [vmem:[#allocation2 + $0x568] sm:$0xff]
        %v796 = vld [vmem:[#allocation2 + $0x570] sm:$0xff]
        %v797 = vld [vmem:[#allocation2 + $0x578] sm:$0xff]
        %v798 = vld [vmem:[#allocation2 + $0x580] sm:$0xff]
        %v799 = vld [vmem:[#allocation2 + $0x588] sm:$0xff]
        %v800 = vld [vmem:[#allocation2 + $0x590] sm:$0xff]
        %v801 = vld [vmem:[#allocation2 + $0x598] sm:$0xff]
        %v802 = vld [vmem:[#allocation2 + $0x5a0] sm:$0xff]
        %v803 = vld [vmem:[#allocation2 + $0x5a8] sm:$0xff]
        %v804 = vld [vmem:[#allocation2 + $0x5b0] sm:$0xff]
        %v805 = vld [vmem:[#allocation2 + $0x5b8] sm:$0xff]
        %v806 = vld [vmem:[#allocation2 + $0x5c0] sm:$0xff]
        %v807 = vld [vmem:[#allocation2 + $0x5c8] sm:$0xff]
        %v808 = vld [vmem:[#allocation2 + $0x5d0] sm:$0xff]
        %v809 = vld [vmem:[#allocation2 + $0x5d8] sm:$0xff]
        %v810 = vld [vmem:[#allocation2 + $0x5e0] sm:$0xff]
        %v811 = vld [vmem:[#allocation2 + $0x5e8] sm:$0xff]
        %v812 = vld [vmem:[#allocation2 + $0x5f0] sm:$0xff]
        %v813 = vld [vmem:[#allocation2 + $0x5f8] sm:$0xff]
        %v814 = vld [vmem:[#allocation2 + $0x600] sm:$0xff]
        %v815 = vld [vmem:[#allocation2 + $0x608] sm:$0xff]
        %v816 = vld [vmem:[#allocation2 + $0x610] sm:$0xff]
        %v817 = vld [vmem:[#allocation2 + $0x618] sm:$0xff]
        %v818 = vld [vmem:[#allocation2 + $0x620] sm:$0xff]
        %v819 = vld [vmem:[#allocation2 + $0x628] sm:$0xff]
        %v820 = vld [vmem:[#allocation2 + $0x630] sm:$0xff]
        %v821 = vld [vmem:[#allocation2 + $0x638] sm:$0xff]
        %v822 = vld [vmem:[#allocation2 + $0x640] sm:$0xff]
        %v823 = vld [vmem:[#allocation2 + $0x648] sm:$0xff]
        %v824 = vld [vmem:[#allocation2 + $0x650] sm:$0xff]
        %v825 = vld [vmem:[#allocation2 + $0x658] sm:$0xff]
        %v826 = vld [vmem:[#allocation2 + $0x660] sm:$0xff]
        %v827 = vld [vmem:[#allocation2 + $0x668] sm:$0xff]
        %v828 = vld [vmem:[#allocation2 + $0x670] sm:$0xff]
        %v829 = vld [vmem:[#allocation2 + $0x678] sm:$0xff]
        %v830 = vld [vmem:[#allocation2 + $0x680] sm:$0xff]
        %v831 = vld [vmem:[#allocation2 + $0x688] sm:$0xff]
        %v832 = vld [vmem:[#allocation2 + $0x690] sm:$0xff]
        %v833 = vld [vmem:[#allocation2 + $0x698] sm:$0xff]
        %v834 = vld [vmem:[#allocation2 + $0x6a0] sm:$0xff]
        %v835 = vld [vmem:[#allocation2 + $0x6a8] sm:$0xff]
        %v836 = vld [vmem:[#allocation2 + $0x6b0] sm:$0xff]
        %v837 = vld [vmem:[#allocation2 + $0x6b8] sm:$0xff]
        %v838 = vld [vmem:[#allocation2 + $0x6c0] sm:$0xff]
        %v839 = vld [vmem:[#allocation2 + $0x6c8] sm:$0xff]
        %v840 = vld [vmem:[#allocation2 + $0x6d0] sm:$0xff]
        %v841 = vld [vmem:[#allocation2 + $0x6d8] sm:$0xff]
        %v842 = vld [vmem:[#allocation2 + $0x6e0] sm:$0xff]
        %v843 = vld [vmem:[#allocation2 + $0x6e8] sm:$0xff]
        %v844 = vld [vmem:[#allocation2 + $0x6f0] sm:$0xff]
        %v845 = vld [vmem:[#allocation2 + $0x6f8] sm:$0xff]
        %v846 = vld [vmem:[#allocation2 + $0x700] sm:$0xff]
        %v847 = vld [vmem:[#allocation2 + $0x708] sm:$0xff]
        %v848 = vld [vmem:[#allocation2 + $0x710] sm:$0xff]
        %v849 = vld [vmem:[#allocation2 + $0x718] sm:$0xff]
        %v850 = vld [vmem:[#allocation2 + $0x720] sm:$0xff]
        %v851 = vld [vmem:[#allocation2 + $0x728] sm:$0xff]
        %v852 = vld [vmem:[#allocation2 + $0x730] sm:$0xff]
        %v853 = vld [vmem:[#allocation2 + $0x738] sm:$0xff]
        %v854 = vld [vmem:[#allocation2 + $0x740] sm:$0xff]
        %v855 = vld [vmem:[#allocation2 + $0x748] sm:$0xff]
        %v856 = vld [vmem:[#allocation2 + $0x750] sm:$0xff]
        %v857 = vld [vmem:[#allocation2 + $0x758] sm:$0xff]
        %v858 = vld [vmem:[#allocation2 + $0x760] sm:$0xff]
        %v859 = vld [vmem:[#allocation2 + $0x768] sm:$0xff]
        %v860 = vld [vmem:[#allocation2 + $0x770] sm:$0xff]
        %v861 = vld [vmem:[#allocation2 + $0x778] sm:$0xff]
        %v862 = vld [vmem:[#allocation2 + $0x780] sm:$0xff]
        %v863 = vld [vmem:[#allocation2 + $0x788] sm:$0xff]
        %v864 = vld [vmem:[#allocation2 + $0x790] sm:$0xff]
        %v865 = vld [vmem:[#allocation2 + $0x798] sm:$0xff]
        %v866 = vld [vmem:[#allocation2 + $0x7a0] sm:$0xff]
        %v867 = vld [vmem:[#allocation2 + $0x7a8] sm:$0xff]
        %v868 = vld [vmem:[#allocation2 + $0x7b0] sm:$0xff]
        %v869 = vld [vmem:[#allocation2 + $0x7b8] sm:$0xff]
        %v870 = vld [vmem:[#allocation2 + $0x7c0] sm:$0xff]
        %v871 = vld [vmem:[#allocation2 + $0x7c8] sm:$0xff]
        %v872 = vld [vmem:[#allocation2 + $0x7d0] sm:$0xff]
        %v873 = vld [vmem:[#allocation2 + $0x7d8] sm:$0xff]
        %v874 = vld [vmem:[#allocation2 + $0x7e0] sm:$0xff]
        %v875 = vld [vmem:[#allocation2 + $0x7e8] sm:$0xff]
        %v876 = vld [vmem:[#allocation2 + $0x7f0] sm:$0xff]
        %v877 = vld [vmem:[#allocation2 + $0x7f8] sm:$0xff]
        %v878 = vld [vmem:[#allocation2 + $0x800] sm:$0xff]
        %v879 = vld [vmem:[#allocation2 + $0x808] sm:$0xff]
        %v880 = vld [vmem:[#allocation2 + $0x810] sm:$0xff]
        %v881 = vld [vmem:[#allocation2 + $0x818] sm:$0xff]
        %v882 = vld [vmem:[#allocation2 + $0x820] sm:$0xff]
        %v883 = vld [vmem:[#allocation2 + $0x828] sm:$0xff]
        %v884 = vld [vmem:[#allocation2 + $0x830] sm:$0xff]
        %v885 = vld [vmem:[#allocation2 + $0x838] sm:$0xff]
        %v886 = vld [vmem:[%s346] sm:$0xff]
        %v887 = vld [vmem:[%s346 + $0x8] sm:$0xff]
        %v888 = vld [vmem:[%s346 + $0x10] sm:$0xff]
        %v889 = vld [vmem:[%s346 + $0x18] sm:$0xff]
        %v890 = vld [vmem:[%s346 + $0x20] sm:$0xff]
        %v891 = vld [vmem:[%s346 + $0x28] sm:$0xff]
        %v892 = vld [vmem:[%s346 + $0x30] sm:$0xff]
        %v893 = vld [vmem:[%s346 + $0x38] sm:$0xff]
        %v894 = vld [vmem:[%s346 + $0x40] sm:$0xff]
        %v895 = vld [vmem:[%s346 + $0x48] sm:$0xff]
        %v896 = vld [vmem:[%s346 + $0x50] sm:$0xff]
        %v897 = vld [vmem:[%s346 + $0x58] sm:$0xff]
        %v898 = vld [vmem:[%s346 + $0x60] sm:$0xff]
        %v899 = vld [vmem:[%s346 + $0x68] sm:$0xff]
        %v900 = vld [vmem:[%s346 + $0x70] sm:$0xff]
        %v901 = vld [vmem:[%s346 + $0x78] sm:$0xff]
        %v902 = vld [vmem:[%s346 + $0x80] sm:$0xff]
        %v903 = vld [vmem:[%s346 + $0x88] sm:$0xff]
        %v904 = vld [vmem:[%s346 + $0x90] sm:$0xff]
        %v905 = vld [vmem:[%s346 + $0x98] sm:$0xff]
        %v906 = vld [vmem:[%s346 + $0xa0] sm:$0xff]
        %v907 = vld [vmem:[%s346 + $0xa8] sm:$0xff]
        %v908 = vld [vmem:[%s346 + $0xb0] sm:$0xff]
        %v909 = vld [vmem:[%s346 + $0xb8] sm:$0xff]
        %v910 = vld [vmem:[%s346 + $0xc0] sm:$0xff]
        %v911 = vld [vmem:[%s346 + $0xc8] sm:$0xff]
        %v912 = vld [vmem:[%s346 + $0xd0] sm:$0xff]
        %v913 = vld [vmem:[%s346 + $0xd8] sm:$0xff]
        %v914 = vld [vmem:[%s346 + $0xe0] sm:$0xff]
        %v915 = vld [vmem:[%s346 + $0xe8] sm:$0xff]
        %v916 = vld [vmem:[%s346 + $0xf0] sm:$0xff]
        %v917 = vld [vmem:[%s346 + $0xf8] sm:$0xff]
        %v918 = vld [vmem:[%s346 + $0x100] sm:$0xff]
        %v919 = vld [vmem:[%s346 + $0x108] sm:$0xff]
        %v920 = vld [vmem:[%s346 + $0x110] sm:$0xff]
        %v921 = vld [vmem:[%s346 + $0x118] sm:$0xff]
        %v922 = vld [vmem:[%s346 + $0x120] sm:$0xff]
        %v923 = vld [vmem:[%s346 + $0x128] sm:$0xff]
        %v924 = vld [vmem:[%s346 + $0x130] sm:$0xff]
        %v925 = vld [vmem:[%s346 + $0x138] sm:$0xff]
        %v926 = vld [vmem:[%s346 + $0x140] sm:$0xff]
        %v927 = vld [vmem:[%s346 + $0x148] sm:$0xff]
        %v928 = vld [vmem:[%s346 + $0x150] sm:$0xff]
        %v929 = vld [vmem:[%s346 + $0x158] sm:$0xff]
        %v930 = vld [vmem:[%s346 + $0x160] sm:$0xff]
        %v931 = vld [vmem:[%s346 + $0x168] sm:$0xff]
        %v932 = vld [vmem:[%s346 + $0x170] sm:$0xff]
        %v933 = vld [vmem:[%s346 + $0x178] sm:$0xff]
        %v934 = vld [vmem:[%s346 + $0x180] sm:$0xff]
        %v935 = vld [vmem:[%s346 + $0x188] sm:$0xff]
        %v936 = vld [vmem:[%s346 + $0x190] sm:$0xff]
        %v937 = vld [vmem:[%s346 + $0x198] sm:$0xff]
        %v938 = vld [vmem:[%s346 + $0x1a0] sm:$0xff]
        %v939 = vld [vmem:[%s346 + $0x1a8] sm:$0xff]
        %v940 = vld [vmem:[%s346 + $0x1b0] sm:$0xff]
        %v941 = vld [vmem:[%s346 + $0x1b8] sm:$0xff]
        %v942 = vld [vmem:[%s346 + $0x1c0] sm:$0xff]
        %v943 = vld [vmem:[%s346 + $0x1c8] sm:$0xff]
        %v944 = vld [vmem:[%s346 + $0x1d0] sm:$0xff]
        %v945 = vld [vmem:[%s346 + $0x1d8] sm:$0xff]
        %v946 = vld [vmem:[%s346 + $0x1e0] sm:$0xff]
        %v947 = vld [vmem:[%s346 + $0x1e8] sm:$0xff]
        %v948 = vld [vmem:[%s346 + $0x1f0] sm:$0xff]
        %v949 = vld [vmem:[%s346 + $0x1f8] sm:$0xff]
        %v950 = vld [vmem:[%s346 + $0x200] sm:$0xff]
        %v951 = vld [vmem:[%s346 + $0x208] sm:$0xff]
        %v952 = vld [vmem:[%s346 + $0x210] sm:$0xff]
        %v953 = vld [vmem:[%s346 + $0x218] sm:$0xff]
        %v954 = vld [vmem:[%s346 + $0x220] sm:$0xff]
        %v955 = vld [vmem:[%s346 + $0x228] sm:$0xff]
        %v956 = vld [vmem:[%s346 + $0x230] sm:$0xff]
        %v957 = vld [vmem:[%s346 + $0x238] sm:$0xff]
        %v958 = vld [vmem:[%s346 + $0x240] sm:$0xff]
        %v959 = vld [vmem:[%s346 + $0x248] sm:$0xff]
        %v960 = vld [vmem:[%s346 + $0x250] sm:$0xff]
        %v961 = vld [vmem:[%s346 + $0x258] sm:$0xff]
        %v962 = vld [vmem:[%s346 + $0x260] sm:$0xff]
        %v963 = vld [vmem:[%s346 + $0x268] sm:$0xff]
        %v964 = vld [vmem:[%s346 + $0x270] sm:$0xff]
        %v965 = vld [vmem:[%s346 + $0x278] sm:$0xff]
        %v966 = vld [vmem:[%s346 + $0x280] sm:$0xff]
        %v967 = vld [vmem:[%s346 + $0x288] sm:$0xff]
        %v968 = vld [vmem:[%s346 + $0x290] sm:$0xff]
        %v969 = vld [vmem:[%s346 + $0x298] sm:$0xff]
        %v970 = vld [vmem:[%s346 + $0x2a0] sm:$0xff]
        %v971 = vld [vmem:[%s346 + $0x2a8] sm:$0xff]
        %v972 = vld [vmem:[%s346 + $0x2b0] sm:$0xff]
        %v973 = vld [vmem:[%s346 + $0x2b8] sm:$0xff]
        %v974 = vld [vmem:[%s346 + $0x2c0] sm:$0xff]
        %v975 = vld [vmem:[%s346 + $0x2c8] sm:$0xff]
        %v976 = vld [vmem:[%s346 + $0x2d0] sm:$0xff]
        %v977 = vld [vmem:[%s346 + $0x2d8] sm:$0xff]
        %v978 = vld [vmem:[%s346 + $0x2e0] sm:$0xff]
        %v979 = vld [vmem:[%s346 + $0x2e8] sm:$0xff]
        %v980 = vld [vmem:[%s346 + $0x2f0] sm:$0xff]
        %v981 = vld [vmem:[%s346 + $0x2f8] sm:$0xff]
        %v982 = vld [vmem:[%s346 + $0x300] sm:$0xff]
        %v983 = vld [vmem:[%s346 + $0x308] sm:$0xff]
        %v984 = vld [vmem:[%s346 + $0x310] sm:$0xff]
        %v985 = vld [vmem:[%s346 + $0x318] sm:$0xff]
        %v986 = vld [vmem:[%s346 + $0x320] sm:$0xff]
        %v987 = vld [vmem:[%s346 + $0x328] sm:$0xff]
        %v988 = vld [vmem:[%s346 + $0x330] sm:$0xff]
        %v989 = vld [vmem:[%s346 + $0x338] sm:$0xff]
        %v990 = vld [vmem:[%s346 + $0x340] sm:$0xff]
        %v991 = vld [vmem:[%s346 + $0x348] sm:$0xff]
        %v992 = vld [vmem:[%s346 + $0x350] sm:$0xff]
        %v993 = vld [vmem:[%s346 + $0x358] sm:$0xff]
        %v994 = vld [vmem:[%s346 + $0x360] sm:$0xff]
        %v995 = vld [vmem:[%s346 + $0x368] sm:$0xff]
        %v996 = vld [vmem:[%s346 + $0x370] sm:$0xff]
        %v997 = vld [vmem:[%s346 + $0x378] sm:$0xff]
        %v998 = vld [vmem:[%s346 + $0x380] sm:$0xff]
        %v999 = vld [vmem:[%s346 + $0x388] sm:$0xff]
        %v1000 = vld [vmem:[%s346 + $0x390] sm:$0xff]
        %v1001 = vld [vmem:[%s346 + $0x398] sm:$0xff]
        %v1002 = vld [vmem:[%s346 + $0x3a0] sm:$0xff]
        %v1003 = vld [vmem:[%s346 + $0x3a8] sm:$0xff]
        %v1004 = vld [vmem:[%s346 + $0x3b0] sm:$0xff]
        %v1005 = vld [vmem:[%s346 + $0x3b8] sm:$0xff]
        %v1006 = vld [vmem:[%s346 + $0x3c0] sm:$0xff]
        %v1007 = vld [vmem:[%s346 + $0x3c8] sm:$0xff]
        %v1008 = vld [vmem:[%s346 + $0x3d0] sm:$0xff]
        %v1009 = vld [vmem:[%s346 + $0x3d8] sm:$0xff]
        %v1010 = vld [vmem:[%s346 + $0x3e0] sm:$0xff]
        %v1011 = vld [vmem:[%s346 + $0x3e8] sm:$0xff]
        %v1012 = vld [vmem:[%s346 + $0x3f0] sm:$0xff]
        %v1013 = vld [vmem:[%s346 + $0x3f8] sm:$0xff]
        %v1014 = vld [vmem:[%s346 + $0x400] sm:$0xff]
        %v1015 = vld [vmem:[%s346 + $0x408] sm:$0xff]
        %v1016 = vld [vmem:[%s346 + $0x410] sm:$0xff]
        %v1017 = vld [vmem:[%s346 + $0x418] sm:$0xff]
        %v1018 = vpack.c.bf16 %v887, %v886
        %v1019 = vpack.c.bf16 %v889, %v888
        %v1020 = vpack.c.bf16 %v891, %v890
        %v1021 = vpack.c.bf16 %v893, %v892
        %v1022 = vpack.c.bf16 %v895, %v894
        %v1023 = vpack.c.bf16 %v897, %v896
        %v1024 = vpack.c.bf16 %v899, %v898
        %v1025 = vpack.c.bf16 %v901, %v900
        %v1026 = vpack.c.bf16 %v903, %v902
        %v1027 = vpack.c.bf16 %v905, %v904
        %v1028 = vpack.c.bf16 %v907, %v906
        %v1029 = vpack.c.bf16 %v909, %v908
        %v1030 = vpack.c.bf16 %v911, %v910
        %v1031 = vpack.c.bf16 %v913, %v912
        %v1032 = vpack.c.bf16 %v915, %v914
        %v1033 = vpack.c.bf16 %v917, %v916
        %v1034 = vpack.c.bf16 %v919, %v918
        %v1035 = vpack.c.bf16 %v921, %v920
        %v1036 = vpack.c.bf16 %v923, %v922
        %v1037 = vpack.c.bf16 %v925, %v924
        %v1038 = vpack.c.bf16 %v927, %v926
        %v1039 = vpack.c.bf16 %v929, %v928
        %v1040 = vpack.c.bf16 %v931, %v930
        %v1041 = vpack.c.bf16 %v933, %v932
        %v1042 = vpack.c.bf16 %v935, %v934
        %v1043 = vpack.c.bf16 %v937, %v936
        %v1044 = vpack.c.bf16 %v939, %v938
        %v1045 = vpack.c.bf16 %v941, %v940
        %v1046 = vpack.c.bf16 %v943, %v942
        %v1047 = vpack.c.bf16 %v945, %v944
        %v1048 = vpack.c.bf16 %v947, %v946
        %v1049 = vpack.c.bf16 %v949, %v948
        %v1050 = vpack.c.bf16 %v951, %v950
        %v1051 = vpack.c.bf16 %v953, %v952
        %v1052 = vpack.c.bf16 %v955, %v954
        %v1053 = vpack.c.bf16 %v957, %v956
        %v1054 = vpack.c.bf16 %v959, %v958
        %v1055 = vpack.c.bf16 %v961, %v960
        %v1056 = vpack.c.bf16 %v963, %v962
        %v1057 = vpack.c.bf16 %v965, %v964
        %v1058 = vpack.c.bf16 %v967, %v966
        %v1059 = vpack.c.bf16 %v969, %v968
        %v1060 = vpack.c.bf16 %v971, %v970
        %v1061 = vpack.c.bf16 %v973, %v972
        %v1062 = vpack.c.bf16 %v975, %v974
        %v1063 = vpack.c.bf16 %v977, %v976
        %v1064 = vpack.c.bf16 %v979, %v978
        %v1065 = vpack.c.bf16 %v981, %v980
        %v1066 = vpack.c.bf16 %v983, %v982
        %v1067 = vpack.c.bf16 %v985, %v984
        %v1068 = vpack.c.bf16 %v987, %v986
        %v1069 = vpack.c.bf16 %v989, %v988
        %v1070 = vpack.c.bf16 %v991, %v990
        %v1071 = vpack.c.bf16 %v993, %v992
        %v1072 = vpack.c.bf16 %v995, %v994
        %v1073 = vpack.c.bf16 %v997, %v996
        %v1074 = vpack.c.bf16 %v999, %v998
        %v1075 = vpack.c.bf16 %v1001, %v1000
        %v1076 = vpack.c.bf16 %v1003, %v1002
        %v1077 = vpack.c.bf16 %v1005, %v1004
        %v1078 = vpack.c.bf16 %v1007, %v1006
        %v1079 = vpack.c.bf16 %v1009, %v1008
        %v1080 = vpack.c.bf16 %v1011, %v1010
        %v1081 = vpack.c.bf16 %v1013, %v1012
        %v1082 = vpack.c.bf16 %v1015, %v1014
        %v1083 = vpack.c.bf16 %v1017, %v1016
        %v1084 = vld [vmem:[%s296] sm:$0xff]
        %v1085 = vld [vmem:[%s296 + $0x8] sm:$0xff]
        %v1086 = vld [vmem:[%s296 + $0x10] sm:$0xff]
        %v1087 = vld [vmem:[%s296 + $0x18] sm:$0xff]
        %v1088 = vld [vmem:[%s296 + $0x20] sm:$0xff]
        %v1089 = vld [vmem:[%s296 + $0x28] sm:$0xff]
        %v1090 = vld [vmem:[%s296 + $0x30] sm:$0xff]
        %v1091 = vld [vmem:[%s296 + $0x38] sm:$0xff]
        %v1092 = vld [vmem:[%s296 + $0x40] sm:$0xff]
        %v1093 = vld [vmem:[%s296 + $0x48] sm:$0xff]
        %v1094 = vld [vmem:[%s296 + $0x50] sm:$0xff]
        %v1095 = vld [vmem:[%s296 + $0x58] sm:$0xff]
        %v1096 = vld [vmem:[%s296 + $0x60] sm:$0xff]
        %v1097 = vld [vmem:[%s296 + $0x68] sm:$0xff]
        %v1098 = vld [vmem:[%s296 + $0x70] sm:$0xff]
        %v1099 = vld [vmem:[%s296 + $0x78] sm:$0xff]
        %v1100 = vld [vmem:[%s296 + $0x80] sm:$0xff]
        %v1101 = vld [vmem:[%s296 + $0x88] sm:$0xff]
        %v1102 = vld [vmem:[%s296 + $0x90] sm:$0xff]
        %v1103 = vld [vmem:[%s296 + $0x98] sm:$0xff]
        %v1104 = vld [vmem:[%s296 + $0xa0] sm:$0xff]
        %v1105 = vld [vmem:[%s296 + $0xa8] sm:$0xff]
        %v1106 = vld [vmem:[%s296 + $0xb0] sm:$0xff]
        %v1107 = vld [vmem:[%s296 + $0xb8] sm:$0xff]
        %v1108 = vld [vmem:[%s296 + $0xc0] sm:$0xff]
        %v1109 = vld [vmem:[%s296 + $0xc8] sm:$0xff]
        %v1110 = vld [vmem:[%s296 + $0xd0] sm:$0xff]
        %v1111 = vld [vmem:[%s296 + $0xd8] sm:$0xff]
        %v1112 = vld [vmem:[%s296 + $0xe0] sm:$0xff]
        %v1113 = vld [vmem:[%s296 + $0xe8] sm:$0xff]
        %v1114 = vld [vmem:[%s296 + $0xf0] sm:$0xff]
        %v1115 = vld [vmem:[%s296 + $0xf8] sm:$0xff]
        %v1116 = vpack.c.bf16 %v1086, %v1084
        %v1117 = vpack.c.bf16 %v1087, %v1085
        %v1118 = vpack.c.bf16 %v1090, %v1088
        %v1119 = vpack.c.bf16 %v1091, %v1089
        %v1120 = vpack.c.bf16 %v1094, %v1092
        %v1121 = vpack.c.bf16 %v1095, %v1093
        %v1122 = vpack.c.bf16 %v1098, %v1096
        %v1123 = vpack.c.bf16 %v1099, %v1097
        %v1124 = vpack.c.bf16 %v1102, %v1100
        %v1125 = vpack.c.bf16 %v1103, %v1101
        %v1126 = vpack.c.bf16 %v1106, %v1104
        %v1127 = vpack.c.bf16 %v1107, %v1105
        %v1128 = vpack.c.bf16 %v1110, %v1108
        %v1129 = vpack.c.bf16 %v1111, %v1109
        %v1130 = vpack.c.bf16 %v1114, %v1112
        %v1131 = vpack.c.bf16 %v1115, %v1113
        %1132 = vmatprep.subr.bf16.mxu0 %v1117
        %1133 = vmatpush1.bf16.msra.mxu0 %v1116
        %1134 = vmatprep.subr.bf16.mxu0 %v1119
        %1135 = vmatpush1.bf16.msra.mxu0 %v1118
        %1136 = vmatprep.subr.bf16.mxu0 %v1121
        %1137 = vmatpush1.bf16.msra.mxu0 %v1120
        %1138 = vmatprep.subr.bf16.mxu0 %v1123
        %1139 = vmatpush1.bf16.msra.mxu0 %v1122
        %1140 = vmatprep.subr.bf16.mxu0 %v1125
        %1141 = vmatpush1.bf16.msra.mxu0 %v1124
        %1142 = vmatprep.subr.bf16.mxu0 %v1127
        %1143 = vmatpush1.bf16.msra.mxu0 %v1126
        %1144 = vmatprep.subr.bf16.mxu0 %v1129
        %1145 = vmatpush1.bf16.msra.mxu0 %v1128
        %1146 = vmatprep.subr.bf16.mxu0 %v1131
        %1147 = vmatpush1.bf16.msra.mxu0 %v1130
        %1148 = vmatprep.subr.bf16.mxu0 0
        %1149 = vmatpush1.bf16.msra.mxu0 0
        %1150 = vmatprep.subr.bf16.mxu0 0
        %1151 = vmatpush1.bf16.msra.mxu0 0
        %1152 = vmatprep.subr.bf16.mxu0 0
        %1153 = vmatpush1.bf16.msra.mxu0 0
        %1154 = vmatprep.subr.bf16.mxu0 0
        %1155 = vmatpush1.bf16.msra.mxu0 0
        %1156 = vmatprep.subr.bf16.mxu0 0
        %1157 = vmatpush1.bf16.msra.mxu0 0
        %1158 = vmatprep.subr.bf16.mxu0 0
        %1159 = vmatpush1.bf16.msra.mxu0 0
        %1160 = vmatprep.subr.bf16.mxu0 0
        %1161 = vmatpush1.bf16.msra.mxu0 0
        %1162 = vmatprep.subr.bf16.mxu0 0
        %1163 = vmatpush1.bf16.msra.mxu0 0
        %1164 = vmatprep.mubr.bf16.mxu0 0
        %1165 = vmatmul.mubr.bf16.gmra.mrb[0].mxu0 %v1018
        %v1166 = vpop.f32.mrb[0].mxu0
        %v1167 = vadd.f32 0.0, %v1166
        %v1168 = vpop.f32.mrb[0].mxu0
        %v1169 = vadd.f32 0.0, %v1168
        %v1170 = vpop.f32.mrb[0].mxu0
        %v1171 = vadd.f32 0.0, %v1170
        %v1172 = vpop.f32.mrb[0].mxu0
        %v1173 = vadd.f32 0.0, %v1172
        %1174 = vmatprep.mubr.bf16.mxu0 0
        %1175 = vmatmul.mubr.bf16.gmra.mrb[0].mxu0 %v1019
        %v1176 = vpop.f32.mrb[0].mxu0
        %v1177 = vadd.f32 0.0, %v1176
        %v1178 = vpop.f32.mrb[0].mxu0
        %v1179 = vadd.f32 0.0, %v1178
        %v1180 = vpop.f32.mrb[0].mxu0
        %v1181 = vadd.f32 0.0, %v1180
        %v1182 = vpop.f32.mrb[0].mxu0
        %v1183 = vadd.f32 0.0, %v1182
        %1184 = vmatprep.mubr.bf16.mxu0 0
        %1185 = vmatmul.mubr.bf16.gmra.mrb[0].mxu0 %v1020
        %v1186 = vpop.f32.mrb[0].mxu0
        %v1187 = vadd.f32 0.0, %v1186
        %v1188 = vpop.f32.mrb[0].mxu0
        %v1189 = vadd.f32 0.0, %v1188
        %v1190 = vpop.f32.mrb[0].mxu0
        %v1191 = vadd.f32 0.0, %v1190
        %v1192 = vpop.f32.mrb[0].mxu0
        %v1193 = vadd.f32 0.0, %v1192
        %1194 = vmatprep.mubr.bf16.mxu0 0
        %1195 = vmatmul.mubr.bf16.gmra.mrb[0].mxu0 %v1021
        %v1196 = vpop.f32.mrb[0].mxu0
        %v1197 = vadd.f32 0.0, %v1196
        %v1198 = vpop.f32.mrb[0].mxu0
        %v1199 = vadd.f32 0.0, %v1198
        %v1200 = vpop.f32.mrb[0].mxu0
        %v1201 = vadd.f32 0.0, %v1200
        %v1202 = vpop.f32.mrb[0].mxu0
        %v1203 = vadd.f32 0.0, %v1202
        %1204 = vmatprep.mubr.bf16.mxu0 0
        %1205 = vmatmul.mubr.bf16.gmra.mrb[0].mxu0 %v1022
        %v1206 = vpop.f32.mrb[0].mxu0
        %v1207 = vadd.f32 0.0, %v1206
        %v1208 = vpop.f32.mrb[0].mxu0
        %v1209 = vadd.f32 0.0, %v1208
        %v1210 = vpop.f32.mrb[0].mxu0
        %v1211 = vadd.f32 0.0, %v1210
        %v1212 = vpop.f32.mrb[0].mxu0
        %v1213 = vadd.f32 0.0, %v1212
        %1214 = vmatprep.mubr.bf16.mxu0 0
        %1215 = vmatmul.mubr.bf16.gmra.mrb[0].mxu0 %v1023
        %v1216 = vpop.f32.mrb[0].mxu0
        %v1217 = vadd.f32 0.0, %v1216
        %v1218 = vpop.f32.mrb[0].mxu0
        %v1219 = vadd.f32 0.0, %v1218
        %v1220 = vpop.f32.mrb[0].mxu0
        %v1221 = vadd.f32 0.0, %v1220
        %v1222 = vpop.f32.mrb[0].mxu0
        %v1223 = vadd.f32 0.0, %v1222
        %1224 = vmatprep.mubr.bf16.mxu0 0
        %1225 = vmatmul.mubr.bf16.gmra.mrb[0].mxu0 %v1024
        %v1226 = vpop.f32.mrb[0].mxu0
        %v1227 = vadd.f32 0.0, %v1226
        %v1228 = vpop.f32.mrb[0].mxu0
        %v1229 = vadd.f32 0.0, %v1228
        %v1230 = vpop.f32.mrb[0].mxu0
        %v1231 = vadd.f32 0.0, %v1230
        %v1232 = vpop.f32.mrb[0].mxu0
        %v1233 = vadd.f32 0.0, %v1232
        %1234 = vmatprep.mubr.bf16.mxu0 0
        %1235 = vmatmul.mubr.bf16.gmra.mrb[0].mxu0 %v1025
        %v1236 = vpop.f32.mrb[0].mxu0
        %v1237 = vadd.f32 0.0, %v1236
        %v1238 = vpop.f32.mrb[0].mxu0
        %v1239 = vadd.f32 0.0, %v1238
        %v1240 = vpop.f32.mrb[0].mxu0
        %v1241 = vadd.f32 0.0, %v1240
        %v1242 = vpop.f32.mrb[0].mxu0
        %v1243 = vadd.f32 0.0, %v1242
        %1244 = vmatprep.mubr.bf16.mxu0 0
        %1245 = vmatmul.mubr.bf16.gmra.mrb[0].mxu0 %v1026
        %v1246 = vpop.f32.mrb[0].mxu0
        %v1247 = vadd.f32 0.0, %v1246
        %v1248 = vpop.f32.mrb[0].mxu0
        %v1249 = vadd.f32 0.0, %v1248
        %v1250 = vpop.f32.mrb[0].mxu0
        %v1251 = vadd.f32 0.0, %v1250
        %v1252 = vpop.f32.mrb[0].mxu0
        %v1253 = vadd.f32 0.0, %v1252
        %1254 = vmatprep.mubr.bf16.mxu0 0
        %1255 = vmatmul.mubr.bf16.gmra.mrb[0].mxu0 %v1027
        %v1256 = vpop.f32.mrb[0].mxu0
        %v1257 = vadd.f32 0.0, %v1256
        %v1258 = vpop.f32.mrb[0].mxu0
        %v1259 = vadd.f32 0.0, %v1258
        %v1260 = vpop.f32.mrb[0].mxu0
        %v1261 = vadd.f32 0.0, %v1260
        %v1262 = vpop.f32.mrb[0].mxu0
        %v1263 = vadd.f32 0.0, %v1262
        %1264 = vmatprep.mubr.bf16.mxu0 0
        %1265 = vmatmul.mubr.bf16.gmra.mrb[0].mxu0 %v1028
        %v1266 = vpop.f32.mrb[0].mxu0
        %v1267 = vadd.f32 0.0, %v1266
        %v1268 = vpop.f32.mrb[0].mxu0
        %v1269 = vadd.f32 0.0, %v1268
        %v1270 = vpop.f32.mrb[0].mxu0
        %v1271 = vadd.f32 0.0, %v1270
        %v1272 = vpop.f32.mrb[0].mxu0
        %v1273 = vadd.f32 0.0, %v1272
        %1274 = vmatprep.mubr.bf16.mxu0 0
        %1275 = vmatmul.mubr.bf16.gmra.mrb[0].mxu0 %v1029
        %v1276 = vpop.f32.mrb[0].mxu0
        %v1277 = vadd.f32 0.0, %v1276
        %v1278 = vpop.f32.mrb[0].mxu0
        %v1279 = vadd.f32 0.0, %v1278
        %v1280 = vpop.f32.mrb[0].mxu0
        %v1281 = vadd.f32 0.0, %v1280
        %v1282 = vpop.f32.mrb[0].mxu0
        %v1283 = vadd.f32 0.0, %v1282
        %1284 = vmatprep.mubr.bf16.mxu0 0
        %1285 = vmatmul.mubr.bf16.gmra.mrb[0].mxu0 %v1030
        %v1286 = vpop.f32.mrb[0].mxu0
        %v1287 = vadd.f32 0.0, %v1286
        %v1288 = vpop.f32.mrb[0].mxu0
        %v1289 = vadd.f32 0.0, %v1288
        %v1290 = vpop.f32.mrb[0].mxu0
        %v1291 = vadd.f32 0.0, %v1290
        %v1292 = vpop.f32.mrb[0].mxu0
        %v1293 = vadd.f32 0.0, %v1292
        %1294 = vmatprep.mubr.bf16.mxu0 0
        %1295 = vmatmul.mubr.bf16.gmra.mrb[0].mxu0 %v1031
        %v1296 = vpop.f32.mrb[0].mxu0
        %v1297 = vadd.f32 0.0, %v1296
        %v1298 = vpop.f32.mrb[0].mxu0
        %v1299 = vadd.f32 0.0, %v1298
        %v1300 = vpop.f32.mrb[0].mxu0
        %v1301 = vadd.f32 0.0, %v1300
        %v1302 = vpop.f32.mrb[0].mxu0
        %v1303 = vadd.f32 0.0, %v1302
        %1304 = vmatprep.mubr.bf16.mxu0 0
        %1305 = vmatmul.mubr.bf16.gmra.mrb[0].mxu0 %v1032
        %v1306 = vpop.f32.mrb[0].mxu0
        %v1307 = vadd.f32 0.0, %v1306
        %v1308 = vpop.f32.mrb[0].mxu0
        %v1309 = vadd.f32 0.0, %v1308
        %v1310 = vpop.f32.mrb[0].mxu0
        %v1311 = vadd.f32 0.0, %v1310
        %v1312 = vpop.f32.mrb[0].mxu0
        %v1313 = vadd.f32 0.0, %v1312
        %1314 = vmatprep.mubr.bf16.mxu0 0
        %1315 = vmatmul.mubr.bf16.gmra.mrb[0].mxu0 %v1033
        %v1316 = vpop.f32.mrb[0].mxu0
        %v1317 = vadd.f32 0.0, %v1316
        %v1318 = vpop.f32.mrb[0].mxu0
        %v1319 = vadd.f32 0.0, %v1318
        %v1320 = vpop.f32.mrb[0].mxu0
        %v1321 = vadd.f32 0.0, %v1320
        %v1322 = vpop.f32.mrb[0].mxu0
        %v1323 = vadd.f32 0.0, %v1322
        %1324 = vmatprep.mubr.bf16.mxu0 0
        %1325 = vmatmul.mubr.bf16.gmra.mrb[0].mxu0 %v1034
        %v1326 = vpop.f32.mrb[0].mxu0
        %v1327 = vadd.f32 0.0, %v1326
        %v1328 = vpop.f32.mrb[0].mxu0
        %v1329 = vadd.f32 0.0, %v1328
        %v1330 = vpop.f32.mrb[0].mxu0
        %v1331 = vadd.f32 0.0, %v1330
        %v1332 = vpop.f32.mrb[0].mxu0
        %v1333 = vadd.f32 0.0, %v1332
        %1334 = vmatprep.mubr.bf16.mxu0 0
        %1335 = vmatmul.mubr.bf16.gmra.mrb[0].mxu0 %v1035
        %v1336 = vpop.f32.mrb[0].mxu0
        %v1337 = vadd.f32 0.0, %v1336
        %v1338 = vpop.f32.mrb[0].mxu0
        %v1339 = vadd.f32 0.0, %v1338
        %v1340 = vpop.f32.mrb[0].mxu0
        %v1341 = vadd.f32 0.0, %v1340
        %v1342 = vpop.f32.mrb[0].mxu0
        %v1343 = vadd.f32 0.0, %v1342
        %1344 = vmatprep.mubr.bf16.mxu0 0
        %1345 = vmatmul.mubr.bf16.gmra.mrb[0].mxu0 %v1036
        %v1346 = vpop.f32.mrb[0].mxu0
        %v1347 = vadd.f32 0.0, %v1346
        %v1348 = vpop.f32.mrb[0].mxu0
        %v1349 = vadd.f32 0.0, %v1348
        %v1350 = vpop.f32.mrb[0].mxu0
        %v1351 = vadd.f32 0.0, %v1350
        %v1352 = vpop.f32.mrb[0].mxu0
        %v1353 = vadd.f32 0.0, %v1352
        %1354 = vmatprep.mubr.bf16.mxu0 0
        %1355 = vmatmul.mubr.bf16.gmra.mrb[0].mxu0 %v1037
        %v1356 = vpop.f32.mrb[0].mxu0
        %v1357 = vadd.f32 0.0, %v1356
        %v1358 = vpop.f32.mrb[0].mxu0
        %v1359 = vadd.f32 0.0, %v1358
        %v1360 = vpop.f32.mrb[0].mxu0
        %v1361 = vadd.f32 0.0, %v1360
        %v1362 = vpop.f32.mrb[0].mxu0
        %v1363 = vadd.f32 0.0, %v1362
        %1364 = vmatprep.mubr.bf16.mxu0 0
        %1365 = vmatmul.mubr.bf16.gmra.mrb[0].mxu0 %v1038
        %v1366 = vpop.f32.mrb[0].mxu0
        %v1367 = vadd.f32 0.0, %v1366
        %v1368 = vpop.f32.mrb[0].mxu0
        %v1369 = vadd.f32 0.0, %v1368
        %v1370 = vpop.f32.mrb[0].mxu0
        %v1371 = vadd.f32 0.0, %v1370
        %v1372 = vpop.f32.mrb[0].mxu0
        %v1373 = vadd.f32 0.0, %v1372
        %1374 = vmatprep.mubr.bf16.mxu0 0
        %1375 = vmatmul.mubr.bf16.gmra.mrb[0].mxu0 %v1039
        %v1376 = vpop.f32.mrb[0].mxu0
        %v1377 = vadd.f32 0.0, %v1376
        %v1378 = vpop.f32.mrb[0].mxu0
        %v1379 = vadd.f32 0.0, %v1378
        %v1380 = vpop.f32.mrb[0].mxu0
        %v1381 = vadd.f32 0.0, %v1380
        %v1382 = vpop.f32.mrb[0].mxu0
        %v1383 = vadd.f32 0.0, %v1382
        %1384 = vmatprep.mubr.bf16.mxu0 0
        %1385 = vmatmul.mubr.bf16.gmra.mrb[0].mxu0 %v1040
        %v1386 = vpop.f32.mrb[0].mxu0
        %v1387 = vadd.f32 0.0, %v1386
        %v1388 = vpop.f32.mrb[0].mxu0
        %v1389 = vadd.f32 0.0, %v1388
        %v1390 = vpop.f32.mrb[0].mxu0
        %v1391 = vadd.f32 0.0, %v1390
        %v1392 = vpop.f32.mrb[0].mxu0
        %v1393 = vadd.f32 0.0, %v1392
        %1394 = vmatprep.mubr.bf16.mxu0 0
        %1395 = vmatmul.mubr.bf16.gmra.mrb[0].mxu0 %v1041
        %v1396 = vpop.f32.mrb[0].mxu0
        %v1397 = vadd.f32 0.0, %v1396
        %v1398 = vpop.f32.mrb[0].mxu0
        %v1399 = vadd.f32 0.0, %v1398
        %v1400 = vpop.f32.mrb[0].mxu0
        %v1401 = vadd.f32 0.0, %v1400
        %v1402 = vpop.f32.mrb[0].mxu0
        %v1403 = vadd.f32 0.0, %v1402
        %1404 = vmatprep.mubr.bf16.mxu0 0
        %1405 = vmatmul.mubr.bf16.gmra.mrb[0].mxu0 %v1042
        %v1406 = vpop.f32.mrb[0].mxu0
        %v1407 = vadd.f32 0.0, %v1406
        %v1408 = vpop.f32.mrb[0].mxu0
        %v1409 = vadd.f32 0.0, %v1408
        %v1410 = vpop.f32.mrb[0].mxu0
        %v1411 = vadd.f32 0.0, %v1410
        %v1412 = vpop.f32.mrb[0].mxu0
        %v1413 = vadd.f32 0.0, %v1412
        %1414 = vmatprep.mubr.bf16.mxu0 0
        %1415 = vmatmul.mubr.bf16.gmra.mrb[0].mxu0 %v1043
        %v1416 = vpop.f32.mrb[0].mxu0
        %v1417 = vadd.f32 0.0, %v1416
        %v1418 = vpop.f32.mrb[0].mxu0
        %v1419 = vadd.f32 0.0, %v1418
        %v1420 = vpop.f32.mrb[0].mxu0
        %v1421 = vadd.f32 0.0, %v1420
        %v1422 = vpop.f32.mrb[0].mxu0
        %v1423 = vadd.f32 0.0, %v1422
        %1424 = vmatprep.mubr.bf16.mxu0 0
        %1425 = vmatmul.mubr.bf16.gmra.mrb[0].mxu0 %v1044
        %v1426 = vpop.f32.mrb[0].mxu0
        %v1427 = vadd.f32 0.0, %v1426
        %v1428 = vpop.f32.mrb[0].mxu0
        %v1429 = vadd.f32 0.0, %v1428
        %v1430 = vpop.f32.mrb[0].mxu0
        %v1431 = vadd.f32 0.0, %v1430
        %v1432 = vpop.f32.mrb[0].mxu0
        %v1433 = vadd.f32 0.0, %v1432
        %1434 = vmatprep.mubr.bf16.mxu0 0
        %1435 = vmatmul.mubr.bf16.gmra.mrb[0].mxu0 %v1045
        %v1436 = vpop.f32.mrb[0].mxu0
        %v1437 = vadd.f32 0.0, %v1436
        %v1438 = vpop.f32.mrb[0].mxu0
        %v1439 = vadd.f32 0.0, %v1438
        %v1440 = vpop.f32.mrb[0].mxu0
        %v1441 = vadd.f32 0.0, %v1440
        %v1442 = vpop.f32.mrb[0].mxu0
        %v1443 = vadd.f32 0.0, %v1442
        %1444 = vmatprep.mubr.bf16.mxu0 0
        %1445 = vmatmul.mubr.bf16.gmra.mrb[0].mxu0 %v1046
        %v1446 = vpop.f32.mrb[0].mxu0
        %v1447 = vadd.f32 0.0, %v1446
        %v1448 = vpop.f32.mrb[0].mxu0
        %v1449 = vadd.f32 0.0, %v1448
        %v1450 = vpop.f32.mrb[0].mxu0
        %v1451 = vadd.f32 0.0, %v1450
        %v1452 = vpop.f32.mrb[0].mxu0
        %v1453 = vadd.f32 0.0, %v1452
        %1454 = vmatprep.mubr.bf16.mxu0 0
        %1455 = vmatmul.mubr.bf16.gmra.mrb[0].mxu0 %v1047
        %v1456 = vpop.f32.mrb[0].mxu0
        %v1457 = vadd.f32 0.0, %v1456
        %v1458 = vpop.f32.mrb[0].mxu0
        %v1459 = vadd.f32 0.0, %v1458
        %v1460 = vpop.f32.mrb[0].mxu0
        %v1461 = vadd.f32 0.0, %v1460
        %v1462 = vpop.f32.mrb[0].mxu0
        %v1463 = vadd.f32 0.0, %v1462
        %1464 = vmatprep.mubr.bf16.mxu0 0
        %1465 = vmatmul.mubr.bf16.gmra.mrb[0].mxu0 %v1048
        %v1466 = vpop.f32.mrb[0].mxu0
        %v1467 = vadd.f32 0.0, %v1466
        %v1468 = vpop.f32.mrb[0].mxu0
        %v1469 = vadd.f32 0.0, %v1468
        %v1470 = vpop.f32.mrb[0].mxu0
        %v1471 = vadd.f32 0.0, %v1470
        %v1472 = vpop.f32.mrb[0].mxu0
        %v1473 = vadd.f32 0.0, %v1472
        %1474 = vmatprep.mubr.bf16.mxu0 0
        %1475 = vmatmul.mubr.bf16.gmra.mrb[0].mxu0 %v1049
        %v1476 = vpop.f32.mrb[0].mxu0
        %v1477 = vadd.f32 0.0, %v1476
        %v1478 = vpop.f32.mrb[0].mxu0
        %v1479 = vadd.f32 0.0, %v1478
        %v1480 = vpop.f32.mrb[0].mxu0
        %v1481 = vadd.f32 0.0, %v1480
        %v1482 = vpop.f32.mrb[0].mxu0
        %v1483 = vadd.f32 0.0, %v1482
        %1484 = vmatprep.mubr.bf16.mxu0 0
        %1485 = vmatmul.mubr.bf16.gmra.mrb[0].mxu0 %v1050
        %v1486 = vpop.f32.mrb[0].mxu0
        %v1487 = vadd.f32 0.0, %v1486
        %v1488 = vpop.f32.mrb[0].mxu0
        %v1489 = vadd.f32 0.0, %v1488
        %v1490 = vpop.f32.mrb[0].mxu0
        %v1491 = vadd.f32 0.0, %v1490
        %v1492 = vpop.f32.mrb[0].mxu0
        %v1493 = vadd.f32 0.0, %v1492
        %1494 = vmatprep.mubr.bf16.mxu0 0
        %1495 = vmatmul.mubr.bf16.gmra.mrb[0].mxu0 %v1051
        %v1496 = vpop.f32.mrb[0].mxu0
        %v1497 = vadd.f32 0.0, %v1496
        %v1498 = vpop.f32.mrb[0].mxu0
        %v1499 = vadd.f32 0.0, %v1498
        %v1500 = vpop.f32.mrb[0].mxu0
        %v1501 = vadd.f32 0.0, %v1500
        %v1502 = vpop.f32.mrb[0].mxu0
        %v1503 = vadd.f32 0.0, %v1502
        %1504 = vmatprep.mubr.bf16.mxu0 0
        %1505 = vmatmul.mubr.bf16.gmra.mrb[0].mxu0 %v1052
        %v1506 = vpop.f32.mrb[0].mxu0
        %v1507 = vadd.f32 0.0, %v1506
        %v1508 = vpop.f32.mrb[0].mxu0
        %v1509 = vadd.f32 0.0, %v1508
        %v1510 = vpop.f32.mrb[0].mxu0
        %v1511 = vadd.f32 0.0, %v1510
        %v1512 = vpop.f32.mrb[0].mxu0
        %v1513 = vadd.f32 0.0, %v1512
        %1514 = vmatprep.mubr.bf16.mxu0 0
        %1515 = vmatmul.mubr.bf16.gmra.mrb[0].mxu0 %v1053
        %v1516 = vpop.f32.mrb[0].mxu0
        %v1517 = vadd.f32 0.0, %v1516
        %v1518 = vpop.f32.mrb[0].mxu0
        %v1519 = vadd.f32 0.0, %v1518
        %v1520 = vpop.f32.mrb[0].mxu0
        %v1521 = vadd.f32 0.0, %v1520
        %v1522 = vpop.f32.mrb[0].mxu0
        %v1523 = vadd.f32 0.0, %v1522
        %1524 = vmatprep.mubr.bf16.mxu0 0
        %1525 = vmatmul.mubr.bf16.gmra.mrb[0].mxu0 %v1054
        %v1526 = vpop.f32.mrb[0].mxu0
        %v1527 = vadd.f32 0.0, %v1526
        %v1528 = vpop.f32.mrb[0].mxu0
        %v1529 = vadd.f32 0.0, %v1528
        %v1530 = vpop.f32.mrb[0].mxu0
        %v1531 = vadd.f32 0.0, %v1530
        %v1532 = vpop.f32.mrb[0].mxu0
        %v1533 = vadd.f32 0.0, %v1532
        %1534 = vmatprep.mubr.bf16.mxu0 0
        %1535 = vmatmul.mubr.bf16.gmra.mrb[0].mxu0 %v1055
        %v1536 = vpop.f32.mrb[0].mxu0
        %v1537 = vadd.f32 0.0, %v1536
        %v1538 = vpop.f32.mrb[0].mxu0
        %v1539 = vadd.f32 0.0, %v1538
        %v1540 = vpop.f32.mrb[0].mxu0
        %v1541 = vadd.f32 0.0, %v1540
        %v1542 = vpop.f32.mrb[0].mxu0
        %v1543 = vadd.f32 0.0, %v1542
        %1544 = vmatprep.mubr.bf16.mxu0 0
        %1545 = vmatmul.mubr.bf16.gmra.mrb[0].mxu0 %v1056
        %v1546 = vpop.f32.mrb[0].mxu0
        %v1547 = vadd.f32 0.0, %v1546
        %v1548 = vpop.f32.mrb[0].mxu0
        %v1549 = vadd.f32 0.0, %v1548
        %v1550 = vpop.f32.mrb[0].mxu0
        %v1551 = vadd.f32 0.0, %v1550
        %v1552 = vpop.f32.mrb[0].mxu0
        %v1553 = vadd.f32 0.0, %v1552
        %1554 = vmatprep.mubr.bf16.mxu0 0
        %1555 = vmatmul.mubr.bf16.gmra.mrb[0].mxu0 %v1057
        %v1556 = vpop.f32.mrb[0].mxu0
        %v1557 = vadd.f32 0.0, %v1556
        %v1558 = vpop.f32.mrb[0].mxu0
        %v1559 = vadd.f32 0.0, %v1558
        %v1560 = vpop.f32.mrb[0].mxu0
        %v1561 = vadd.f32 0.0, %v1560
        %v1562 = vpop.f32.mrb[0].mxu0
        %v1563 = vadd.f32 0.0, %v1562
        %1564 = vmatprep.mubr.bf16.mxu0 0
        %1565 = vmatmul.mubr.bf16.gmra.mrb[0].mxu0 %v1058
        %v1566 = vpop.f32.mrb[0].mxu0
        %v1567 = vadd.f32 0.0, %v1566
        %v1568 = vpop.f32.mrb[0].mxu0
        %v1569 = vadd.f32 0.0, %v1568
        %v1570 = vpop.f32.mrb[0].mxu0
        %v1571 = vadd.f32 0.0, %v1570
        %v1572 = vpop.f32.mrb[0].mxu0
        %v1573 = vadd.f32 0.0, %v1572
        %1574 = vmatprep.mubr.bf16.mxu0 0
        %1575 = vmatmul.mubr.bf16.gmra.mrb[0].mxu0 %v1059
        %v1576 = vpop.f32.mrb[0].mxu0
        %v1577 = vadd.f32 0.0, %v1576
        %v1578 = vpop.f32.mrb[0].mxu0
        %v1579 = vadd.f32 0.0, %v1578
        %v1580 = vpop.f32.mrb[0].mxu0
        %v1581 = vadd.f32 0.0, %v1580
        %v1582 = vpop.f32.mrb[0].mxu0
        %v1583 = vadd.f32 0.0, %v1582
        %1584 = vmatprep.mubr.bf16.mxu0 0
        %1585 = vmatmul.mubr.bf16.gmra.mrb[0].mxu0 %v1060
        %v1586 = vpop.f32.mrb[0].mxu0
        %v1587 = vadd.f32 0.0, %v1586
        %v1588 = vpop.f32.mrb[0].mxu0
        %v1589 = vadd.f32 0.0, %v1588
        %v1590 = vpop.f32.mrb[0].mxu0
        %v1591 = vadd.f32 0.0, %v1590
        %v1592 = vpop.f32.mrb[0].mxu0
        %v1593 = vadd.f32 0.0, %v1592
        %1594 = vmatprep.mubr.bf16.mxu0 0
        %1595 = vmatmul.mubr.bf16.gmra.mrb[0].mxu0 %v1061
        %v1596 = vpop.f32.mrb[0].mxu0
        %v1597 = vadd.f32 0.0, %v1596
        %v1598 = vpop.f32.mrb[0].mxu0
        %v1599 = vadd.f32 0.0, %v1598
        %v1600 = vpop.f32.mrb[0].mxu0
        %v1601 = vadd.f32 0.0, %v1600
        %v1602 = vpop.f32.mrb[0].mxu0
        %v1603 = vadd.f32 0.0, %v1602
        %1604 = vmatprep.mubr.bf16.mxu0 0
        %1605 = vmatmul.mubr.bf16.gmra.mrb[0].mxu0 %v1062
        %v1606 = vpop.f32.mrb[0].mxu0
        %v1607 = vadd.f32 0.0, %v1606
        %v1608 = vpop.f32.mrb[0].mxu0
        %v1609 = vadd.f32 0.0, %v1608
        %v1610 = vpop.f32.mrb[0].mxu0
        %v1611 = vadd.f32 0.0, %v1610
        %v1612 = vpop.f32.mrb[0].mxu0
        %v1613 = vadd.f32 0.0, %v1612
        %1614 = vmatprep.mubr.bf16.mxu0 0
        %1615 = vmatmul.mubr.bf16.gmra.mrb[0].mxu0 %v1063
        %v1616 = vpop.f32.mrb[0].mxu0
        %v1617 = vadd.f32 0.0, %v1616
        %v1618 = vpop.f32.mrb[0].mxu0
        %v1619 = vadd.f32 0.0, %v1618
        %v1620 = vpop.f32.mrb[0].mxu0
        %v1621 = vadd.f32 0.0, %v1620
        %v1622 = vpop.f32.mrb[0].mxu0
        %v1623 = vadd.f32 0.0, %v1622
        %1624 = vmatprep.mubr.bf16.mxu0 0
        %1625 = vmatmul.mubr.bf16.gmra.mrb[0].mxu0 %v1064
        %v1626 = vpop.f32.mrb[0].mxu0
        %v1627 = vadd.f32 0.0, %v1626
        %v1628 = vpop.f32.mrb[0].mxu0
        %v1629 = vadd.f32 0.0, %v1628
        %v1630 = vpop.f32.mrb[0].mxu0
        %v1631 = vadd.f32 0.0, %v1630
        %v1632 = vpop.f32.mrb[0].mxu0
        %v1633 = vadd.f32 0.0, %v1632
        %1634 = vmatprep.mubr.bf16.mxu0 0
        %1635 = vmatmul.mubr.bf16.gmra.mrb[0].mxu0 %v1065
        %v1636 = vpop.f32.mrb[0].mxu0
        %v1637 = vadd.f32 0.0, %v1636
        %v1638 = vpop.f32.mrb[0].mxu0
        %v1639 = vadd.f32 0.0, %v1638
        %v1640 = vpop.f32.mrb[0].mxu0
        %v1641 = vadd.f32 0.0, %v1640
        %v1642 = vpop.f32.mrb[0].mxu0
        %v1643 = vadd.f32 0.0, %v1642
        %1644 = vmatprep.mubr.bf16.mxu0 0
        %1645 = vmatmul.mubr.bf16.gmra.mrb[0].mxu0 %v1066
        %v1646 = vpop.f32.mrb[0].mxu0
        %v1647 = vadd.f32 0.0, %v1646
        %v1648 = vpop.f32.mrb[0].mxu0
        %v1649 = vadd.f32 0.0, %v1648
        %v1650 = vpop.f32.mrb[0].mxu0
        %v1651 = vadd.f32 0.0, %v1650
        %v1652 = vpop.f32.mrb[0].mxu0
        %v1653 = vadd.f32 0.0, %v1652
        %1654 = vmatprep.mubr.bf16.mxu0 0
        %1655 = vmatmul.mubr.bf16.gmra.mrb[0].mxu0 %v1067
        %v1656 = vpop.f32.mrb[0].mxu0
        %v1657 = vadd.f32 0.0, %v1656
        %v1658 = vpop.f32.mrb[0].mxu0
        %v1659 = vadd.f32 0.0, %v1658
        %v1660 = vpop.f32.mrb[0].mxu0
        %v1661 = vadd.f32 0.0, %v1660
        %v1662 = vpop.f32.mrb[0].mxu0
        %v1663 = vadd.f32 0.0, %v1662
        %1664 = vmatprep.mubr.bf16.mxu0 0
        %1665 = vmatmul.mubr.bf16.gmra.mrb[0].mxu0 %v1068
        %v1666 = vpop.f32.mrb[0].mxu0
        %v1667 = vadd.f32 0.0, %v1666
        %v1668 = vpop.f32.mrb[0].mxu0
        %v1669 = vadd.f32 0.0, %v1668
        %v1670 = vpop.f32.mrb[0].mxu0
        %v1671 = vadd.f32 0.0, %v1670
        %v1672 = vpop.f32.mrb[0].mxu0
        %v1673 = vadd.f32 0.0, %v1672
        %1674 = vmatprep.mubr.bf16.mxu0 0
        %1675 = vmatmul.mubr.bf16.gmra.mrb[0].mxu0 %v1069
        %v1676 = vpop.f32.mrb[0].mxu0
        %v1677 = vadd.f32 0.0, %v1676
        %v1678 = vpop.f32.mrb[0].mxu0
        %v1679 = vadd.f32 0.0, %v1678
        %v1680 = vpop.f32.mrb[0].mxu0
        %v1681 = vadd.f32 0.0, %v1680
        %v1682 = vpop.f32.mrb[0].mxu0
        %v1683 = vadd.f32 0.0, %v1682
        %1684 = vmatprep.mubr.bf16.mxu0 0
        %1685 = vmatmul.mubr.bf16.gmra.mrb[0].mxu0 %v1070
        %v1686 = vpop.f32.mrb[0].mxu0
        %v1687 = vadd.f32 0.0, %v1686
        %v1688 = vpop.f32.mrb[0].mxu0
        %v1689 = vadd.f32 0.0, %v1688
        %v1690 = vpop.f32.mrb[0].mxu0
        %v1691 = vadd.f32 0.0, %v1690
        %v1692 = vpop.f32.mrb[0].mxu0
        %v1693 = vadd.f32 0.0, %v1692
        %1694 = vmatprep.mubr.bf16.mxu0 0
        %1695 = vmatmul.mubr.bf16.gmra.mrb[0].mxu0 %v1071
        %v1696 = vpop.f32.mrb[0].mxu0
        %v1697 = vadd.f32 0.0, %v1696
        %v1698 = vpop.f32.mrb[0].mxu0
        %v1699 = vadd.f32 0.0, %v1698
        %v1700 = vpop.f32.mrb[0].mxu0
        %v1701 = vadd.f32 0.0, %v1700
        %v1702 = vpop.f32.mrb[0].mxu0
        %v1703 = vadd.f32 0.0, %v1702
        %1704 = vmatprep.mubr.bf16.mxu0 0
        %1705 = vmatmul.mubr.bf16.gmra.mrb[0].mxu0 %v1072
        %v1706 = vpop.f32.mrb[0].mxu0
        %v1707 = vadd.f32 0.0, %v1706
        %v1708 = vpop.f32.mrb[0].mxu0
        %v1709 = vadd.f32 0.0, %v1708
        %v1710 = vpop.f32.mrb[0].mxu0
        %v1711 = vadd.f32 0.0, %v1710
        %v1712 = vpop.f32.mrb[0].mxu0
        %v1713 = vadd.f32 0.0, %v1712
        %1714 = vmatprep.mubr.bf16.mxu0 0
        %1715 = vmatmul.mubr.bf16.gmra.mrb[0].mxu0 %v1073
        %v1716 = vpop.f32.mrb[0].mxu0
        %v1717 = vadd.f32 0.0, %v1716
        %v1718 = vpop.f32.mrb[0].mxu0
        %v1719 = vadd.f32 0.0, %v1718
        %v1720 = vpop.f32.mrb[0].mxu0
        %v1721 = vadd.f32 0.0, %v1720
        %v1722 = vpop.f32.mrb[0].mxu0
        %v1723 = vadd.f32 0.0, %v1722
        %1724 = vmatprep.mubr.bf16.mxu0 0
        %1725 = vmatmul.mubr.bf16.gmra.mrb[0].mxu0 %v1074
        %v1726 = vpop.f32.mrb[0].mxu0
        %v1727 = vadd.f32 0.0, %v1726
        %v1728 = vpop.f32.mrb[0].mxu0
        %v1729 = vadd.f32 0.0, %v1728
        %v1730 = vpop.f32.mrb[0].mxu0
        %v1731 = vadd.f32 0.0, %v1730
        %v1732 = vpop.f32.mrb[0].mxu0
        %v1733 = vadd.f32 0.0, %v1732
        %1734 = vmatprep.mubr.bf16.mxu0 0
        %1735 = vmatmul.mubr.bf16.gmra.mrb[0].mxu0 %v1075
        %v1736 = vpop.f32.mrb[0].mxu0
        %v1737 = vadd.f32 0.0, %v1736
        %v1738 = vpop.f32.mrb[0].mxu0
        %v1739 = vadd.f32 0.0, %v1738
        %v1740 = vpop.f32.mrb[0].mxu0
        %v1741 = vadd.f32 0.0, %v1740
        %v1742 = vpop.f32.mrb[0].mxu0
        %v1743 = vadd.f32 0.0, %v1742
        %1744 = vmatprep.mubr.bf16.mxu0 0
        %1745 = vmatmul.mubr.bf16.gmra.mrb[0].mxu0 %v1076
        %v1746 = vpop.f32.mrb[0].mxu0
        %v1747 = vadd.f32 0.0, %v1746
        %v1748 = vpop.f32.mrb[0].mxu0
        %v1749 = vadd.f32 0.0, %v1748
        %v1750 = vpop.f32.mrb[0].mxu0
        %v1751 = vadd.f32 0.0, %v1750
        %v1752 = vpop.f32.mrb[0].mxu0
        %v1753 = vadd.f32 0.0, %v1752
        %1754 = vmatprep.mubr.bf16.mxu0 0
        %1755 = vmatmul.mubr.bf16.gmra.mrb[0].mxu0 %v1077
        %v1756 = vpop.f32.mrb[0].mxu0
        %v1757 = vadd.f32 0.0, %v1756
        %v1758 = vpop.f32.mrb[0].mxu0
        %v1759 = vadd.f32 0.0, %v1758
        %v1760 = vpop.f32.mrb[0].mxu0
        %v1761 = vadd.f32 0.0, %v1760
        %v1762 = vpop.f32.mrb[0].mxu0
        %v1763 = vadd.f32 0.0, %v1762
        %1764 = vmatprep.mubr.bf16.mxu0 0
        %1765 = vmatmul.mubr.bf16.gmra.mrb[0].mxu0 %v1078
        %v1766 = vpop.f32.mrb[0].mxu0
        %v1767 = vadd.f32 0.0, %v1766
        %v1768 = vpop.f32.mrb[0].mxu0
        %v1769 = vadd.f32 0.0, %v1768
        %v1770 = vpop.f32.mrb[0].mxu0
        %v1771 = vadd.f32 0.0, %v1770
        %v1772 = vpop.f32.mrb[0].mxu0
        %v1773 = vadd.f32 0.0, %v1772
        %1774 = vmatprep.mubr.bf16.mxu0 0
        %1775 = vmatmul.mubr.bf16.gmra.mrb[0].mxu0 %v1079
        %v1776 = vpop.f32.mrb[0].mxu0
        %v1777 = vadd.f32 0.0, %v1776
        %v1778 = vpop.f32.mrb[0].mxu0
        %v1779 = vadd.f32 0.0, %v1778
        %v1780 = vpop.f32.mrb[0].mxu0
        %v1781 = vadd.f32 0.0, %v1780
        %v1782 = vpop.f32.mrb[0].mxu0
        %v1783 = vadd.f32 0.0, %v1782
        %1784 = vmatprep.mubr.bf16.mxu0 0
        %1785 = vmatmul.mubr.bf16.gmra.mrb[0].mxu0 %v1080
        %v1786 = vpop.f32.mrb[0].mxu0
        %v1787 = vadd.f32 0.0, %v1786
        %v1788 = vpop.f32.mrb[0].mxu0
        %v1789 = vadd.f32 0.0, %v1788
        %v1790 = vpop.f32.mrb[0].mxu0
        %v1791 = vadd.f32 0.0, %v1790
        %v1792 = vpop.f32.mrb[0].mxu0
        %v1793 = vadd.f32 0.0, %v1792
        %1794 = vmatprep.mubr.bf16.mxu0 0
        %1795 = vmatmul.mubr.bf16.gmra.mrb[0].mxu0 %v1081
        %v1796 = vpop.f32.mrb[0].mxu0
        %v1797 = vadd.f32 0.0, %v1796
        %v1798 = vpop.f32.mrb[0].mxu0
        %v1799 = vadd.f32 0.0, %v1798
        %v1800 = vpop.f32.mrb[0].mxu0
        %v1801 = vadd.f32 0.0, %v1800
        %v1802 = vpop.f32.mrb[0].mxu0
        %v1803 = vadd.f32 0.0, %v1802
        %1804 = vmatprep.mubr.bf16.mxu0 0
        %1805 = vmatmul.mubr.bf16.gmra.mrb[0].mxu0 %v1082
        %v1806 = vpop.f32.mrb[0].mxu0
        %v1807 = vadd.f32 0.0, %v1806
        %v1808 = vpop.f32.mrb[0].mxu0
        %v1809 = vadd.f32 0.0, %v1808
        %v1810 = vpop.f32.mrb[0].mxu0
        %v1811 = vadd.f32 0.0, %v1810
        %v1812 = vpop.f32.mrb[0].mxu0
        %v1813 = vadd.f32 0.0, %v1812
        %1814 = vmatprep.mubr.bf16.mxu0 0
        %1815 = vmatmul.mubr.bf16.gmra.mrb[0].mxu0 %v1083
        %v1816 = vpop.f32.mrb[0].mxu0
        %v1817 = vadd.f32 0.0, %v1816
        %v1818 = vpop.f32.mrb[0].mxu0
        %v1819 = vadd.f32 0.0, %v1818
        %v1820 = vpop.f32.mrb[0].mxu0
        %v1821 = vadd.f32 0.0, %v1820
        %v1822 = vpop.f32.mrb[0].mxu0
        %v1823 = vadd.f32 0.0, %v1822
        %1824 = vdwg.mxu0
        %v1825 = vadd.f32 %v622, %v1167
        %v1826 = vadd.f32 %v623, %v1169
        %v1827 = vadd.f32 %v624, %v1171
        %v1828 = vadd.f32 %v625, %v1173
        %v1829 = vadd.f32 %v626, %v1177
        %v1830 = vadd.f32 %v627, %v1179
        %v1831 = vadd.f32 %v628, %v1181
        %v1832 = vadd.f32 %v629, %v1183
        %v1833 = vadd.f32 %v630, %v1187
        %v1834 = vadd.f32 %v631, %v1189
        %v1835 = vadd.f32 %v632, %v1191
        %v1836 = vadd.f32 %v633, %v1193
        %v1837 = vadd.f32 %v634, %v1197
        %v1838 = vadd.f32 %v635, %v1199
        %v1839 = vadd.f32 %v636, %v1201
        %v1840 = vadd.f32 %v637, %v1203
        %v1841 = vadd.f32 %v638, %v1207
        %v1842 = vadd.f32 %v639, %v1209
        %v1843 = vadd.f32 %v640, %v1211
        %v1844 = vadd.f32 %v641, %v1213
        %v1845 = vadd.f32 %v642, %v1217
        %v1846 = vadd.f32 %v643, %v1219
        %v1847 = vadd.f32 %v644, %v1221
        %v1848 = vadd.f32 %v645, %v1223
        %v1849 = vadd.f32 %v646, %v1227
        %v1850 = vadd.f32 %v647, %v1229
        %v1851 = vadd.f32 %v648, %v1231
        %v1852 = vadd.f32 %v649, %v1233
        %v1853 = vadd.f32 %v650, %v1237
        %v1854 = vadd.f32 %v651, %v1239
        %v1855 = vadd.f32 %v652, %v1241
        %v1856 = vadd.f32 %v653, %v1243
        %v1857 = vadd.f32 %v654, %v1247
        %v1858 = vadd.f32 %v655, %v1249
        %v1859 = vadd.f32 %v656, %v1251
        %v1860 = vadd.f32 %v657, %v1253
        %v1861 = vadd.f32 %v658, %v1257
        %v1862 = vadd.f32 %v659, %v1259
        %v1863 = vadd.f32 %v660, %v1261
        %v1864 = vadd.f32 %v661, %v1263
        %v1865 = vadd.f32 %v662, %v1267
        %v1866 = vadd.f32 %v663, %v1269
        %v1867 = vadd.f32 %v664, %v1271
        %v1868 = vadd.f32 %v665, %v1273
        %v1869 = vadd.f32 %v666, %v1277
        %v1870 = vadd.f32 %v667, %v1279
        %v1871 = vadd.f32 %v668, %v1281
        %v1872 = vadd.f32 %v669, %v1283
        %v1873 = vadd.f32 %v670, %v1287
        %v1874 = vadd.f32 %v671, %v1289
        %v1875 = vadd.f32 %v672, %v1291
        %v1876 = vadd.f32 %v673, %v1293
        %v1877 = vadd.f32 %v674, %v1297
        %v1878 = vadd.f32 %v675, %v1299
        %v1879 = vadd.f32 %v676, %v1301
        %v1880 = vadd.f32 %v677, %v1303
        %v1881 = vadd.f32 %v678, %v1307
        %v1882 = vadd.f32 %v679, %v1309
        %v1883 = vadd.f32 %v680, %v1311
        %v1884 = vadd.f32 %v681, %v1313
        %v1885 = vadd.f32 %v682, %v1317
        %v1886 = vadd.f32 %v683, %v1319
        %v1887 = vadd.f32 %v684, %v1321
        %v1888 = vadd.f32 %v685, %v1323
        %v1889 = vadd.f32 %v686, %v1327
        %v1890 = vadd.f32 %v687, %v1329
        %v1891 = vadd.f32 %v688, %v1331
        %v1892 = vadd.f32 %v689, %v1333
        %v1893 = vadd.f32 %v690, %v1337
        %v1894 = vadd.f32 %v691, %v1339
        %v1895 = vadd.f32 %v692, %v1341
        %v1896 = vadd.f32 %v693, %v1343
        %v1897 = vadd.f32 %v694, %v1347
        %v1898 = vadd.f32 %v695, %v1349
        %v1899 = vadd.f32 %v696, %v1351
        %v1900 = vadd.f32 %v697, %v1353
        %v1901 = vadd.f32 %v698, %v1357
        %v1902 = vadd.f32 %v699, %v1359
        %v1903 = vadd.f32 %v700, %v1361
        %v1904 = vadd.f32 %v701, %v1363
        %v1905 = vadd.f32 %v702, %v1367
        %v1906 = vadd.f32 %v703, %v1369
        %v1907 = vadd.f32 %v704, %v1371
        %v1908 = vadd.f32 %v705, %v1373
        %v1909 = vadd.f32 %v706, %v1377
        %v1910 = vadd.f32 %v707, %v1379
        %v1911 = vadd.f32 %v708, %v1381
        %v1912 = vadd.f32 %v709, %v1383
        %v1913 = vadd.f32 %v710, %v1387
        %v1914 = vadd.f32 %v711, %v1389
        %v1915 = vadd.f32 %v712, %v1391
        %v1916 = vadd.f32 %v713, %v1393
        %v1917 = vadd.f32 %v714, %v1397
        %v1918 = vadd.f32 %v715, %v1399
        %v1919 = vadd.f32 %v716, %v1401
        %v1920 = vadd.f32 %v717, %v1403
        %v1921 = vadd.f32 %v718, %v1407
        %v1922 = vadd.f32 %v719, %v1409
        %v1923 = vadd.f32 %v720, %v1411
        %v1924 = vadd.f32 %v721, %v1413
        %v1925 = vadd.f32 %v722, %v1417
        %v1926 = vadd.f32 %v723, %v1419
        %v1927 = vadd.f32 %v724, %v1421
        %v1928 = vadd.f32 %v725, %v1423
        %v1929 = vadd.f32 %v726, %v1427
        %v1930 = vadd.f32 %v727, %v1429
        %v1931 = vadd.f32 %v728, %v1431
        %v1932 = vadd.f32 %v729, %v1433
        %v1933 = vadd.f32 %v730, %v1437
        %v1934 = vadd.f32 %v731, %v1439
        %v1935 = vadd.f32 %v732, %v1441
        %v1936 = vadd.f32 %v733, %v1443
        %v1937 = vadd.f32 %v734, %v1447
        %v1938 = vadd.f32 %v735, %v1449
        %v1939 = vadd.f32 %v736, %v1451
        %v1940 = vadd.f32 %v737, %v1453
        %v1941 = vadd.f32 %v738, %v1457
        %v1942 = vadd.f32 %v739, %v1459
        %v1943 = vadd.f32 %v740, %v1461
        %v1944 = vadd.f32 %v741, %v1463
        %v1945 = vadd.f32 %v742, %v1467
        %v1946 = vadd.f32 %v743, %v1469
        %v1947 = vadd.f32 %v744, %v1471
        %v1948 = vadd.f32 %v745, %v1473
        %v1949 = vadd.f32 %v746, %v1477
        %v1950 = vadd.f32 %v747, %v1479
        %v1951 = vadd.f32 %v748, %v1481
        %v1952 = vadd.f32 %v749, %v1483
        %v1953 = vadd.f32 %v750, %v1487
        %v1954 = vadd.f32 %v751, %v1489
        %v1955 = vadd.f32 %v752, %v1491
        %v1956 = vadd.f32 %v753, %v1493
        %v1957 = vadd.f32 %v754, %v1497
        %v1958 = vadd.f32 %v755, %v1499
        %v1959 = vadd.f32 %v756, %v1501
        %v1960 = vadd.f32 %v757, %v1503
        %v1961 = vadd.f32 %v758, %v1507
        %v1962 = vadd.f32 %v759, %v1509
        %v1963 = vadd.f32 %v760, %v1511
        %v1964 = vadd.f32 %v761, %v1513
        %v1965 = vadd.f32 %v762, %v1517
        %v1966 = vadd.f32 %v763, %v1519
        %v1967 = vadd.f32 %v764, %v1521
        %v1968 = vadd.f32 %v765, %v1523
        %v1969 = vadd.f32 %v766, %v1527
        %v1970 = vadd.f32 %v767, %v1529
        %v1971 = vadd.f32 %v768, %v1531
        %v1972 = vadd.f32 %v769, %v1533
        %v1973 = vadd.f32 %v770, %v1537
        %v1974 = vadd.f32 %v771, %v1539
        %v1975 = vadd.f32 %v772, %v1541
        %v1976 = vadd.f32 %v773, %v1543
        %v1977 = vadd.f32 %v774, %v1547
        %v1978 = vadd.f32 %v775, %v1549
        %v1979 = vadd.f32 %v776, %v1551
        %v1980 = vadd.f32 %v777, %v1553
        %v1981 = vadd.f32 %v778, %v1557
        %v1982 = vadd.f32 %v779, %v1559
        %v1983 = vadd.f32 %v780, %v1561
        %v1984 = vadd.f32 %v781, %v1563
        %v1985 = vadd.f32 %v782, %v1567
        %v1986 = vadd.f32 %v783, %v1569
        %v1987 = vadd.f32 %v784, %v1571
        %v1988 = vadd.f32 %v785, %v1573
        %v1989 = vadd.f32 %v786, %v1577
        %v1990 = vadd.f32 %v787, %v1579
        %v1991 = vadd.f32 %v788, %v1581
        %v1992 = vadd.f32 %v789, %v1583
        %v1993 = vadd.f32 %v790, %v1587
        %v1994 = vadd.f32 %v791, %v1589
        %v1995 = vadd.f32 %v792, %v1591
        %v1996 = vadd.f32 %v793, %v1593
        %v1997 = vadd.f32 %v794, %v1597
        %v1998 = vadd.f32 %v795, %v1599
        %v1999 = vadd.f32 %v796, %v1601
        %v2000 = vadd.f32 %v797, %v1603
        %v2001 = vadd.f32 %v798, %v1607
        %v2002 = vadd.f32 %v799, %v1609
        %v2003 = vadd.f32 %v800, %v1611
        %v2004 = vadd.f32 %v801, %v1613
        %v2005 = vadd.f32 %v802, %v1617
        %v2006 = vadd.f32 %v803, %v1619
        %v2007 = vadd.f32 %v804, %v1621
        %v2008 = vadd.f32 %v805, %v1623
        %v2009 = vadd.f32 %v806, %v1627
        %v2010 = vadd.f32 %v807, %v1629
        %v2011 = vadd.f32 %v808, %v1631
        %v2012 = vadd.f32 %v809, %v1633
        %v2013 = vadd.f32 %v810, %v1637
        %v2014 = vadd.f32 %v811, %v1639
        %v2015 = vadd.f32 %v812, %v1641
        %v2016 = vadd.f32 %v813, %v1643
        %v2017 = vadd.f32 %v814, %v1647
        %v2018 = vadd.f32 %v815, %v1649
        %v2019 = vadd.f32 %v816, %v1651
        %v2020 = vadd.f32 %v817, %v1653
        %v2021 = vadd.f32 %v818, %v1657
        %v2022 = vadd.f32 %v819, %v1659
        %v2023 = vadd.f32 %v820, %v1661
        %v2024 = vadd.f32 %v821, %v1663
        %v2025 = vadd.f32 %v822, %v1667
        %v2026 = vadd.f32 %v823, %v1669
        %v2027 = vadd.f32 %v824, %v1671
        %v2028 = vadd.f32 %v825, %v1673
        %v2029 = vadd.f32 %v826, %v1677
        %v2030 = vadd.f32 %v827, %v1679
        %v2031 = vadd.f32 %v828, %v1681
        %v2032 = vadd.f32 %v829, %v1683
        %v2033 = vadd.f32 %v830, %v1687
        %v2034 = vadd.f32 %v831, %v1689
        %v2035 = vadd.f32 %v832, %v1691
        %v2036 = vadd.f32 %v833, %v1693
        %v2037 = vadd.f32 %v834, %v1697
        %v2038 = vadd.f32 %v835, %v1699
        %v2039 = vadd.f32 %v836, %v1701
        %v2040 = vadd.f32 %v837, %v1703
        %v2041 = vadd.f32 %v838, %v1707
        %v2042 = vadd.f32 %v839, %v1709
        %v2043 = vadd.f32 %v840, %v1711
        %v2044 = vadd.f32 %v841, %v1713
        %v2045 = vadd.f32 %v842, %v1717
        %v2046 = vadd.f32 %v843, %v1719
        %v2047 = vadd.f32 %v844, %v1721
        %v2048 = vadd.f32 %v845, %v1723
        %v2049 = vadd.f32 %v846, %v1727
        %v2050 = vadd.f32 %v847, %v1729
        %v2051 = vadd.f32 %v848, %v1731
        %v2052 = vadd.f32 %v849, %v1733
        %v2053 = vadd.f32 %v850, %v1737
        %v2054 = vadd.f32 %v851, %v1739
        %v2055 = vadd.f32 %v852, %v1741
        %v2056 = vadd.f32 %v853, %v1743
        %v2057 = vadd.f32 %v854, %v1747
        %v2058 = vadd.f32 %v855, %v1749
        %v2059 = vadd.f32 %v856, %v1751
        %v2060 = vadd.f32 %v857, %v1753
        %v2061 = vadd.f32 %v858, %v1757
        %v2062 = vadd.f32 %v859, %v1759
        %v2063 = vadd.f32 %v860, %v1761
        %v2064 = vadd.f32 %v861, %v1763
        %v2065 = vadd.f32 %v862, %v1767
        %v2066 = vadd.f32 %v863, %v1769
        %v2067 = vadd.f32 %v864, %v1771
        %v2068 = vadd.f32 %v865, %v1773
        %v2069 = vadd.f32 %v866, %v1777
        %v2070 = vadd.f32 %v867, %v1779
        %v2071 = vadd.f32 %v868, %v1781
        %v2072 = vadd.f32 %v869, %v1783
        %v2073 = vadd.f32 %v870, %v1787
        %v2074 = vadd.f32 %v871, %v1789
        %v2075 = vadd.f32 %v872, %v1791
        %v2076 = vadd.f32 %v873, %v1793
        %v2077 = vadd.f32 %v874, %v1797
        %v2078 = vadd.f32 %v875, %v1799
        %v2079 = vadd.f32 %v876, %v1801
        %v2080 = vadd.f32 %v877, %v1803
        %v2081 = vadd.f32 %v878, %v1807
        %v2082 = vadd.f32 %v879, %v1809
        %v2083 = vadd.f32 %v880, %v1811
        %v2084 = vadd.f32 %v881, %v1813
        %v2085 = vadd.f32 %v882, %v1817
        %v2086 = vadd.f32 %v883, %v1819
        %v2087 = vadd.f32 %v884, %v1821
        %v2088 = vadd.f32 %v885, %v1823
        %2089 = vst [vmem:[#allocation2] sm:$0xff] %v1825
        %2090 = vst [vmem:[#allocation2 + $0x8] sm:$0xff] %v1826
        %2091 = vst [vmem:[#allocation2 + $0x10] sm:$0xff] %v1827
        %2092 = vst [vmem:[#allocation2 + $0x18] sm:$0xff] %v1828
        %2093 = vst [vmem:[#allocation2 + $0x20] sm:$0xff] %v1829
        %2094 = vst [vmem:[#allocation2 + $0x28] sm:$0xff] %v1830
        %2095 = vst [vmem:[#allocation2 + $0x30] sm:$0xff] %v1831
        %2096 = vst [vmem:[#allocation2 + $0x38] sm:$0xff] %v1832
        %2097 = vst [vmem:[#allocation2 + $0x40] sm:$0xff] %v1833
        %2098 = vst [vmem:[#allocation2 + $0x48] sm:$0xff] %v1834
        %2099 = vst [vmem:[#allocation2 + $0x50] sm:$0xff] %v1835
        %2100 = vst [vmem:[#allocation2 + $0x58] sm:$0xff] %v1836
        %2101 = vst [vmem:[#allocation2 + $0x60] sm:$0xff] %v1837
        %2102 = vst [vmem:[#allocation2 + $0x68] sm:$0xff] %v1838
        %2103 = vst [vmem:[#allocation2 + $0x70] sm:$0xff] %v1839
        %2104 = vst [vmem:[#allocation2 + $0x78] sm:$0xff] %v1840
        %2105 = vst [vmem:[#allocation2 + $0x80] sm:$0xff] %v1841
        %2106 = vst [vmem:[#allocation2 + $0x88] sm:$0xff] %v1842
        %2107 = vst [vmem:[#allocation2 + $0x90] sm:$0xff] %v1843
        %2108 = vst [vmem:[#allocation2 + $0x98] sm:$0xff] %v1844
        %2109 = vst [vmem:[#allocation2 + $0xa0] sm:$0xff] %v1845
        %2110 = vst [vmem:[#allocation2 + $0xa8] sm:$0xff] %v1846
        %2111 = vst [vmem:[#allocation2 + $0xb0] sm:$0xff] %v1847
        %2112 = vst [vmem:[#allocation2 + $0xb8] sm:$0xff] %v1848
        %2113 = vst [vmem:[#allocation2 + $0xc0] sm:$0xff] %v1849
        %2114 = vst [vmem:[#allocation2 + $0xc8] sm:$0xff] %v1850
        %2115 = vst [vmem:[#allocation2 + $0xd0] sm:$0xff] %v1851
        %2116 = vst [vmem:[#allocation2 + $0xd8] sm:$0xff] %v1852
        %2117 = vst [vmem:[#allocation2 + $0xe0] sm:$0xff] %v1853
        %2118 = vst [vmem:[#allocation2 + $0xe8] sm:$0xff] %v1854
        %2119 = vst [vmem:[#allocation2 + $0xf0] sm:$0xff] %v1855
        %2120 = vst [vmem:[#allocation2 + $0xf8] sm:$0xff] %v1856
        %2121 = vst [vmem:[#allocation2 + $0x100] sm:$0xff] %v1857
        %2122 = vst [vmem:[#allocation2 + $0x108] sm:$0xff] %v1858
        %2123 = vst [vmem:[#allocation2 + $0x110] sm:$0xff] %v1859
        %2124 = vst [vmem:[#allocation2 + $0x118] sm:$0xff] %v1860
        %2125 = vst [vmem:[#allocation2 + $0x120] sm:$0xff] %v1861
        %2126 = vst [vmem:[#allocation2 + $0x128] sm:$0xff] %v1862
        %2127 = vst [vmem:[#allocation2 + $0x130] sm:$0xff] %v1863
        %2128 = vst [vmem:[#allocation2 + $0x138] sm:$0xff] %v1864
        %2129 = vst [vmem:[#allocation2 + $0x140] sm:$0xff] %v1865
        %2130 = vst [vmem:[#allocation2 + $0x148] sm:$0xff] %v1866
        %2131 = vst [vmem:[#allocation2 + $0x150] sm:$0xff] %v1867
        %2132 = vst [vmem:[#allocation2 + $0x158] sm:$0xff] %v1868
        %2133 = vst [vmem:[#allocation2 + $0x160] sm:$0xff] %v1869
        %2134 = vst [vmem:[#allocation2 + $0x168] sm:$0xff] %v1870
        %2135 = vst [vmem:[#allocation2 + $0x170] sm:$0xff] %v1871
        %2136 = vst [vmem:[#allocation2 + $0x178] sm:$0xff] %v1872
        %2137 = vst [vmem:[#allocation2 + $0x180] sm:$0xff] %v1873
        %2138 = vst [vmem:[#allocation2 + $0x188] sm:$0xff] %v1874
        %2139 = vst [vmem:[#allocation2 + $0x190] sm:$0xff] %v1875
        %2140 = vst [vmem:[#allocation2 + $0x198] sm:$0xff] %v1876
        %2141 = vst [vmem:[#allocation2 + $0x1a0] sm:$0xff] %v1877
        %2142 = vst [vmem:[#allocation2 + $0x1a8] sm:$0xff] %v1878
        %2143 = vst [vmem:[#allocation2 + $0x1b0] sm:$0xff] %v1879
        %2144 = vst [vmem:[#allocation2 + $0x1b8] sm:$0xff] %v1880
        %2145 = vst [vmem:[#allocation2 + $0x1c0] sm:$0xff] %v1881
        %2146 = vst [vmem:[#allocation2 + $0x1c8] sm:$0xff] %v1882
        %2147 = vst [vmem:[#allocation2 + $0x1d0] sm:$0xff] %v1883
        %2148 = vst [vmem:[#allocation2 + $0x1d8] sm:$0xff] %v1884
        %2149 = vst [vmem:[#allocation2 + $0x1e0] sm:$0xff] %v1885
        %2150 = vst [vmem:[#allocation2 + $0x1e8] sm:$0xff] %v1886
        %2151 = vst [vmem:[#allocation2 + $0x1f0] sm:$0xff] %v1887
        %2152 = vst [vmem:[#allocation2 + $0x1f8] sm:$0xff] %v1888
        %2153 = vst [vmem:[#allocation2 + $0x200] sm:$0xff] %v1889
        %2154 = vst [vmem:[#allocation2 + $0x208] sm:$0xff] %v1890
        %2155 = vst [vmem:[#allocation2 + $0x210] sm:$0xff] %v1891
        %2156 = vst [vmem:[#allocation2 + $0x218] sm:$0xff] %v1892
        %2157 = vst [vmem:[#allocation2 + $0x220] sm:$0xff] %v1893
        %2158 = vst [vmem:[#allocation2 + $0x228] sm:$0xff] %v1894
        %2159 = vst [vmem:[#allocation2 + $0x230] sm:$0xff] %v1895
        %2160 = vst [vmem:[#allocation2 + $0x238] sm:$0xff] %v1896
        %2161 = vst [vmem:[#allocation2 + $0x240] sm:$0xff] %v1897
        %2162 = vst [vmem:[#allocation2 + $0x248] sm:$0xff] %v1898
        %2163 = vst [vmem:[#allocation2 + $0x250] sm:$0xff] %v1899
        %2164 = vst [vmem:[#allocation2 + $0x258] sm:$0xff] %v1900
        %2165 = vst [vmem:[#allocation2 + $0x260] sm:$0xff] %v1901
        %2166 = vst [vmem:[#allocation2 + $0x268] sm:$0xff] %v1902
        %2167 = vst [vmem:[#allocation2 + $0x270] sm:$0xff] %v1903
        %2168 = vst [vmem:[#allocation2 + $0x278] sm:$0xff] %v1904
        %2169 = vst [vmem:[#allocation2 + $0x280] sm:$0xff] %v1905
        %2170 = vst [vmem:[#allocation2 + $0x288] sm:$0xff] %v1906
        %2171 = vst [vmem:[#allocation2 + $0x290] sm:$0xff] %v1907
        %2172 = vst [vmem:[#allocation2 + $0x298] sm:$0xff] %v1908
        %2173 = vst [vmem:[#allocation2 + $0x2a0] sm:$0xff] %v1909
        %2174 = vst [vmem:[#allocation2 + $0x2a8] sm:$0xff] %v1910
        %2175 = vst [vmem:[#allocation2 + $0x2b0] sm:$0xff] %v1911
        %2176 = vst [vmem:[#allocation2 + $0x2b8] sm:$0xff] %v1912
        %2177 = vst [vmem:[#allocation2 + $0x2c0] sm:$0xff] %v1913
        %2178 = vst [vmem:[#allocation2 + $0x2c8] sm:$0xff] %v1914
        %2179 = vst [vmem:[#allocation2 + $0x2d0] sm:$0xff] %v1915
        %2180 = vst [vmem:[#allocation2 + $0x2d8] sm:$0xff] %v1916
        %2181 = vst [vmem:[#allocation2 + $0x2e0] sm:$0xff] %v1917
        %2182 = vst [vmem:[#allocation2 + $0x2e8] sm:$0xff] %v1918
        %2183 = vst [vmem:[#allocation2 + $0x2f0] sm:$0xff] %v1919
        %2184 = vst [vmem:[#allocation2 + $0x2f8] sm:$0xff] %v1920
        %2185 = vst [vmem:[#allocation2 + $0x300] sm:$0xff] %v1921
        %2186 = vst [vmem:[#allocation2 + $0x308] sm:$0xff] %v1922
        %2187 = vst [vmem:[#allocation2 + $0x310] sm:$0xff] %v1923
        %2188 = vst [vmem:[#allocation2 + $0x318] sm:$0xff] %v1924
        %2189 = vst [vmem:[#allocation2 + $0x320] sm:$0xff] %v1925
        %2190 = vst [vmem:[#allocation2 + $0x328] sm:$0xff] %v1926
        %2191 = vst [vmem:[#allocation2 + $0x330] sm:$0xff] %v1927
        %2192 = vst [vmem:[#allocation2 + $0x338] sm:$0xff] %v1928
        %2193 = vst [vmem:[#allocation2 + $0x340] sm:$0xff] %v1929
        %2194 = vst [vmem:[#allocation2 + $0x348] sm:$0xff] %v1930
        %2195 = vst [vmem:[#allocation2 + $0x350] sm:$0xff] %v1931
        %2196 = vst [vmem:[#allocation2 + $0x358] sm:$0xff] %v1932
        %2197 = vst [vmem:[#allocation2 + $0x360] sm:$0xff] %v1933
        %2198 = vst [vmem:[#allocation2 + $0x368] sm:$0xff] %v1934
        %2199 = vst [vmem:[#allocation2 + $0x370] sm:$0xff] %v1935
        %2200 = vst [vmem:[#allocation2 + $0x378] sm:$0xff] %v1936
        %2201 = vst [vmem:[#allocation2 + $0x380] sm:$0xff] %v1937
        %2202 = vst [vmem:[#allocation2 + $0x388] sm:$0xff] %v1938
        %2203 = vst [vmem:[#allocation2 + $0x390] sm:$0xff] %v1939
        %2204 = vst [vmem:[#allocation2 + $0x398] sm:$0xff] %v1940
        %2205 = vst [vmem:[#allocation2 + $0x3a0] sm:$0xff] %v1941
        %2206 = vst [vmem:[#allocation2 + $0x3a8] sm:$0xff] %v1942
        %2207 = vst [vmem:[#allocation2 + $0x3b0] sm:$0xff] %v1943
        %2208 = vst [vmem:[#allocation2 + $0x3b8] sm:$0xff] %v1944
        %2209 = vst [vmem:[#allocation2 + $0x3c0] sm:$0xff] %v1945
        %2210 = vst [vmem:[#allocation2 + $0x3c8] sm:$0xff] %v1946
        %2211 = vst [vmem:[#allocation2 + $0x3d0] sm:$0xff] %v1947
        %2212 = vst [vmem:[#allocation2 + $0x3d8] sm:$0xff] %v1948
        %2213 = vst [vmem:[#allocation2 + $0x3e0] sm:$0xff] %v1949
        %2214 = vst [vmem:[#allocation2 + $0x3e8] sm:$0xff] %v1950
        %2215 = vst [vmem:[#allocation2 + $0x3f0] sm:$0xff] %v1951
        %2216 = vst [vmem:[#allocation2 + $0x3f8] sm:$0xff] %v1952
        %2217 = vst [vmem:[#allocation2 + $0x400] sm:$0xff] %v1953
        %2218 = vst [vmem:[#allocation2 + $0x408] sm:$0xff] %v1954
        %2219 = vst [vmem:[#allocation2 + $0x410] sm:$0xff] %v1955
        %2220 = vst [vmem:[#allocation2 + $0x418] sm:$0xff] %v1956
        %2221 = vst [vmem:[#allocation2 + $0x420] sm:$0xff] %v1957
        %2222 = vst [vmem:[#allocation2 + $0x428] sm:$0xff] %v1958
        %2223 = vst [vmem:[#allocation2 + $0x430] sm:$0xff] %v1959
        %2224 = vst [vmem:[#allocation2 + $0x438] sm:$0xff] %v1960
        %2225 = vst [vmem:[#allocation2 + $0x440] sm:$0xff] %v1961
        %2226 = vst [vmem:[#allocation2 + $0x448] sm:$0xff] %v1962
        %2227 = vst [vmem:[#allocation2 + $0x450] sm:$0xff] %v1963
        %2228 = vst [vmem:[#allocation2 + $0x458] sm:$0xff] %v1964
        %2229 = vst [vmem:[#allocation2 + $0x460] sm:$0xff] %v1965
        %2230 = vst [vmem:[#allocation2 + $0x468] sm:$0xff] %v1966
        %2231 = vst [vmem:[#allocation2 + $0x470] sm:$0xff] %v1967
        %2232 = vst [vmem:[#allocation2 + $0x478] sm:$0xff] %v1968
        %2233 = vst [vmem:[#allocation2 + $0x480] sm:$0xff] %v1969
        %2234 = vst [vmem:[#allocation2 + $0x488] sm:$0xff] %v1970
        %2235 = vst [vmem:[#allocation2 + $0x490] sm:$0xff] %v1971
        %2236 = vst [vmem:[#allocation2 + $0x498] sm:$0xff] %v1972
        %2237 = vst [vmem:[#allocation2 + $0x4a0] sm:$0xff] %v1973
        %2238 = vst [vmem:[#allocation2 + $0x4a8] sm:$0xff] %v1974
        %2239 = vst [vmem:[#allocation2 + $0x4b0] sm:$0xff] %v1975
        %2240 = vst [vmem:[#allocation2 + $0x4b8] sm:$0xff] %v1976
        %2241 = vst [vmem:[#allocation2 + $0x4c0] sm:$0xff] %v1977
        %2242 = vst [vmem:[#allocation2 + $0x4c8] sm:$0xff] %v1978
        %2243 = vst [vmem:[#allocation2 + $0x4d0] sm:$0xff] %v1979
        %2244 = vst [vmem:[#allocation2 + $0x4d8] sm:$0xff] %v1980
        %2245 = vst [vmem:[#allocation2 + $0x4e0] sm:$0xff] %v1981
        %2246 = vst [vmem:[#allocation2 + $0x4e8] sm:$0xff] %v1982
        %2247 = vst [vmem:[#allocation2 + $0x4f0] sm:$0xff] %v1983
        %2248 = vst [vmem:[#allocation2 + $0x4f8] sm:$0xff] %v1984
        %2249 = vst [vmem:[#allocation2 + $0x500] sm:$0xff] %v1985
        %2250 = vst [vmem:[#allocation2 + $0x508] sm:$0xff] %v1986
        %2251 = vst [vmem:[#allocation2 + $0x510] sm:$0xff] %v1987
        %2252 = vst [vmem:[#allocation2 + $0x518] sm:$0xff] %v1988
        %2253 = vst [vmem:[#allocation2 + $0x520] sm:$0xff] %v1989
        %2254 = vst [vmem:[#allocation2 + $0x528] sm:$0xff] %v1990
        %2255 = vst [vmem:[#allocation2 + $0x530] sm:$0xff] %v1991
        %2256 = vst [vmem:[#allocation2 + $0x538] sm:$0xff] %v1992
        %2257 = vst [vmem:[#allocation2 + $0x540] sm:$0xff] %v1993
        %2258 = vst [vmem:[#allocation2 + $0x548] sm:$0xff] %v1994
        %2259 = vst [vmem:[#allocation2 + $0x550] sm:$0xff] %v1995
        %2260 = vst [vmem:[#allocation2 + $0x558] sm:$0xff] %v1996
        %2261 = vst [vmem:[#allocation2 + $0x560] sm:$0xff] %v1997
        %2262 = vst [vmem:[#allocation2 + $0x568] sm:$0xff] %v1998
        %2263 = vst [vmem:[#allocation2 + $0x570] sm:$0xff] %v1999
        %2264 = vst [vmem:[#allocation2 + $0x578] sm:$0xff] %v2000
        %2265 = vst [vmem:[#allocation2 + $0x580] sm:$0xff] %v2001
        %2266 = vst [vmem:[#allocation2 + $0x588] sm:$0xff] %v2002
        %2267 = vst [vmem:[#allocation2 + $0x590] sm:$0xff] %v2003
        %2268 = vst [vmem:[#allocation2 + $0x598] sm:$0xff] %v2004
        %2269 = vst [vmem:[#allocation2 + $0x5a0] sm:$0xff] %v2005
        %2270 = vst [vmem:[#allocation2 + $0x5a8] sm:$0xff] %v2006
        %2271 = vst [vmem:[#allocation2 + $0x5b0] sm:$0xff] %v2007
        %2272 = vst [vmem:[#allocation2 + $0x5b8] sm:$0xff] %v2008
        %2273 = vst [vmem:[#allocation2 + $0x5c0] sm:$0xff] %v2009
        %2274 = vst [vmem:[#allocation2 + $0x5c8] sm:$0xff] %v2010
        %2275 = vst [vmem:[#allocation2 + $0x5d0] sm:$0xff] %v2011
        %2276 = vst [vmem:[#allocation2 + $0x5d8] sm:$0xff] %v2012
        %2277 = vst [vmem:[#allocation2 + $0x5e0] sm:$0xff] %v2013
        %2278 = vst [vmem:[#allocation2 + $0x5e8] sm:$0xff] %v2014
        %2279 = vst [vmem:[#allocation2 + $0x5f0] sm:$0xff] %v2015
        %2280 = vst [vmem:[#allocation2 + $0x5f8] sm:$0xff] %v2016
        %2281 = vst [vmem:[#allocation2 + $0x600] sm:$0xff] %v2017
        %2282 = vst [vmem:[#allocation2 + $0x608] sm:$0xff] %v2018
        %2283 = vst [vmem:[#allocation2 + $0x610] sm:$0xff] %v2019
        %2284 = vst [vmem:[#allocation2 + $0x618] sm:$0xff] %v2020
        %2285 = vst [vmem:[#allocation2 + $0x620] sm:$0xff] %v2021
        %2286 = vst [vmem:[#allocation2 + $0x628] sm:$0xff] %v2022
        %2287 = vst [vmem:[#allocation2 + $0x630] sm:$0xff] %v2023
        %2288 = vst [vmem:[#allocation2 + $0x638] sm:$0xff] %v2024
        %2289 = vst [vmem:[#allocation2 + $0x640] sm:$0xff] %v2025
        %2290 = vst [vmem:[#allocation2 + $0x648] sm:$0xff] %v2026
        %2291 = vst [vmem:[#allocation2 + $0x650] sm:$0xff] %v2027
        %2292 = vst [vmem:[#allocation2 + $0x658] sm:$0xff] %v2028
        %2293 = vst [vmem:[#allocation2 + $0x660] sm:$0xff] %v2029
        %2294 = vst [vmem:[#allocation2 + $0x668] sm:$0xff] %v2030
        %2295 = vst [vmem:[#allocation2 + $0x670] sm:$0xff] %v2031
        %2296 = vst [vmem:[#allocation2 + $0x678] sm:$0xff] %v2032
        %2297 = vst [vmem:[#allocation2 + $0x680] sm:$0xff] %v2033
        %2298 = vst [vmem:[#allocation2 + $0x688] sm:$0xff] %v2034
        %2299 = vst [vmem:[#allocation2 + $0x690] sm:$0xff] %v2035
        %2300 = vst [vmem:[#allocation2 + $0x698] sm:$0xff] %v2036
        %2301 = vst [vmem:[#allocation2 + $0x6a0] sm:$0xff] %v2037
        %2302 = vst [vmem:[#allocation2 + $0x6a8] sm:$0xff] %v2038
        %2303 = vst [vmem:[#allocation2 + $0x6b0] sm:$0xff] %v2039
        %2304 = vst [vmem:[#allocation2 + $0x6b8] sm:$0xff] %v2040
        %2305 = vst [vmem:[#allocation2 + $0x6c0] sm:$0xff] %v2041
        %2306 = vst [vmem:[#allocation2 + $0x6c8] sm:$0xff] %v2042
        %2307 = vst [vmem:[#allocation2 + $0x6d0] sm:$0xff] %v2043
        %2308 = vst [vmem:[#allocation2 + $0x6d8] sm:$0xff] %v2044
        %2309 = vst [vmem:[#allocation2 + $0x6e0] sm:$0xff] %v2045
        %2310 = vst [vmem:[#allocation2 + $0x6e8] sm:$0xff] %v2046
        %2311 = vst [vmem:[#allocation2 + $0x6f0] sm:$0xff] %v2047
        %2312 = vst [vmem:[#allocation2 + $0x6f8] sm:$0xff] %v2048
        %2313 = vst [vmem:[#allocation2 + $0x700] sm:$0xff] %v2049
        %2314 = vst [vmem:[#allocation2 + $0x708] sm:$0xff] %v2050
        %2315 = vst [vmem:[#allocation2 + $0x710] sm:$0xff] %v2051
        %2316 = vst [vmem:[#allocation2 + $0x718] sm:$0xff] %v2052
        %2317 = vst [vmem:[#allocation2 + $0x720] sm:$0xff] %v2053
        %2318 = vst [vmem:[#allocation2 + $0x728] sm:$0xff] %v2054
        %2319 = vst [vmem:[#allocation2 + $0x730] sm:$0xff] %v2055
        %2320 = vst [vmem:[#allocation2 + $0x738] sm:$0xff] %v2056
        %2321 = vst [vmem:[#allocation2 + $0x740] sm:$0xff] %v2057
        %2322 = vst [vmem:[#allocation2 + $0x748] sm:$0xff] %v2058
        %2323 = vst [vmem:[#allocation2 + $0x750] sm:$0xff] %v2059
        %2324 = vst [vmem:[#allocation2 + $0x758] sm:$0xff] %v2060
        %2325 = vst [vmem:[#allocation2 + $0x760] sm:$0xff] %v2061
        %2326 = vst [vmem:[#allocation2 + $0x768] sm:$0xff] %v2062
        %2327 = vst [vmem:[#allocation2 + $0x770] sm:$0xff] %v2063
        %2328 = vst [vmem:[#allocation2 + $0x778] sm:$0xff] %v2064
        %2329 = vst [vmem:[#allocation2 + $0x780] sm:$0xff] %v2065
        %2330 = vst [vmem:[#allocation2 + $0x788] sm:$0xff] %v2066
        %2331 = vst [vmem:[#allocation2 + $0x790] sm:$0xff] %v2067
        %2332 = vst [vmem:[#allocation2 + $0x798] sm:$0xff] %v2068
        %2333 = vst [vmem:[#allocation2 + $0x7a0] sm:$0xff] %v2069
        %2334 = vst [vmem:[#allocation2 + $0x7a8] sm:$0xff] %v2070
        %2335 = vst [vmem:[#allocation2 + $0x7b0] sm:$0xff] %v2071
        %2336 = vst [vmem:[#allocation2 + $0x7b8] sm:$0xff] %v2072
        %2337 = vst [vmem:[#allocation2 + $0x7c0] sm:$0xff] %v2073
        %2338 = vst [vmem:[#allocation2 + $0x7c8] sm:$0xff] %v2074
        %2339 = vst [vmem:[#allocation2 + $0x7d0] sm:$0xff] %v2075
        %2340 = vst [vmem:[#allocation2 + $0x7d8] sm:$0xff] %v2076
        %2341 = vst [vmem:[#allocation2 + $0x7e0] sm:$0xff] %v2077
        %2342 = vst [vmem:[#allocation2 + $0x7e8] sm:$0xff] %v2078
        %2343 = vst [vmem:[#allocation2 + $0x7f0] sm:$0xff] %v2079
        %2344 = vst [vmem:[#allocation2 + $0x7f8] sm:$0xff] %v2080
        %2345 = vst [vmem:[#allocation2 + $0x800] sm:$0xff] %v2081
        %2346 = vst [vmem:[#allocation2 + $0x808] sm:$0xff] %v2082
        %2347 = vst [vmem:[#allocation2 + $0x810] sm:$0xff] %v2083
        %2348 = vst [vmem:[#allocation2 + $0x818] sm:$0xff] %v2084
        %2349 = vst [vmem:[#allocation2 + $0x820] sm:$0xff] %v2085
        %2350 = vst [vmem:[#allocation2 + $0x828] sm:$0xff] %v2086
        %2351 = vst [vmem:[#allocation2 + $0x830] sm:$0xff] %v2087
        %2352 = vst [vmem:[#allocation2 + $0x838] sm:$0xff] %v2088
        // Predicated region
        $region64: #{pallas_matmul.1} parent=50 // pred_check
          %p2353 = pneg %p354
        $region65: #{pallas_matmul.1} parent=50 // pred_check_branch
          %2355 = sbr.rel (%p2353) target = $region67
        $region66: #{pallas_matmul.1} parent=50 // pred_region
          %v2356 = vld [vmem:[#allocation2] sm:$0xff]
          %v2357 = vld [vmem:[#allocation2 + $0x8] sm:$0xff]
          %v2358 = vld [vmem:[#allocation2 + $0x10] sm:$0xff]
          %v2359 = vld [vmem:[#allocation2 + $0x18] sm:$0xff]
          %v2360 = vld [vmem:[#allocation2 + $0x20] sm:$0xff]
          %v2361 = vld [vmem:[#allocation2 + $0x28] sm:$0xff]
          %v2362 = vld [vmem:[#allocation2 + $0x30] sm:$0xff]
          %v2363 = vld [vmem:[#allocation2 + $0x38] sm:$0xff]
          %v2364 = vld [vmem:[#allocation2 + $0x40] sm:$0xff]
          %v2365 = vld [vmem:[#allocation2 + $0x48] sm:$0xff]
          %v2366 = vld [vmem:[#allocation2 + $0x50] sm:$0xff]
          %v2367 = vld [vmem:[#allocation2 + $0x58] sm:$0xff]
          %v2368 = vld [vmem:[#allocation2 + $0x60] sm:$0xff]
          %v2369 = vld [vmem:[#allocation2 + $0x68] sm:$0xff]
          %v2370 = vld [vmem:[#allocation2 + $0x70] sm:$0xff]
          %v2371 = vld [vmem:[#allocation2 + $0x78] sm:$0xff]
          %v2372 = vld [vmem:[#allocation2 + $0x80] sm:$0xff]
          %v2373 = vld [vmem:[#allocation2 + $0x88] sm:$0xff]
          %v2374 = vld [vmem:[#allocation2 + $0x90] sm:$0xff]
          %v2375 = vld [vmem:[#allocation2 + $0x98] sm:$0xff]
          %v2376 = vld [vmem:[#allocation2 + $0xa0] sm:$0xff]
          %v2377 = vld [vmem:[#allocation2 + $0xa8] sm:$0xff]
          %v2378 = vld [vmem:[#allocation2 + $0xb0] sm:$0xff]
          %v2379 = vld [vmem:[#allocation2 + $0xb8] sm:$0xff]
          %v2380 = vld [vmem:[#allocation2 + $0xc0] sm:$0xff]
          %v2381 = vld [vmem:[#allocation2 + $0xc8] sm:$0xff]
          %v2382 = vld [vmem:[#allocation2 + $0xd0] sm:$0xff]
          %v2383 = vld [vmem:[#allocation2 + $0xd8] sm:$0xff]
          %v2384 = vld [vmem:[#allocation2 + $0xe0] sm:$0xff]
          %v2385 = vld [vmem:[#allocation2 + $0xe8] sm:$0xff]
          %v2386 = vld [vmem:[#allocation2 + $0xf0] sm:$0xff]
          %v2387 = vld [vmem:[#allocation2 + $0xf8] sm:$0xff]
          %v2388 = vld [vmem:[#allocation2 + $0x100] sm:$0xff]
          %v2389 = vld [vmem:[#allocation2 + $0x108] sm:$0xff]
          %v2390 = vld [vmem:[#allocation2 + $0x110] sm:$0xff]
          %v2391 = vld [vmem:[#allocation2 + $0x118] sm:$0xff]
          %v2392 = vld [vmem:[#allocation2 + $0x120] sm:$0xff]
          %v2393 = vld [vmem:[#allocation2 + $0x128] sm:$0xff]
          %v2394 = vld [vmem:[#allocation2 + $0x130] sm:$0xff]
          %v2395 = vld [vmem:[#allocation2 + $0x138] sm:$0xff]
          %v2396 = vld [vmem:[#allocation2 + $0x140] sm:$0xff]
          %v2397 = vld [vmem:[#allocation2 + $0x148] sm:$0xff]
          %v2398 = vld [vmem:[#allocation2 + $0x150] sm:$0xff]
          %v2399 = vld [vmem:[#allocation2 + $0x158] sm:$0xff]
          %v2400 = vld [vmem:[#allocation2 + $0x160] sm:$0xff]
          %v2401 = vld [vmem:[#allocation2 + $0x168] sm:$0xff]
          %v2402 = vld [vmem:[#allocation2 + $0x170] sm:$0xff]
          %v2403 = vld [vmem:[#allocation2 + $0x178] sm:$0xff]
          %v2404 = vld [vmem:[#allocation2 + $0x180] sm:$0xff]
          %v2405 = vld [vmem:[#allocation2 + $0x188] sm:$0xff]
          %v2406 = vld [vmem:[#allocation2 + $0x190] sm:$0xff]
          %v2407 = vld [vmem:[#allocation2 + $0x198] sm:$0xff]
          %v2408 = vld [vmem:[#allocation2 + $0x1a0] sm:$0xff]
          %v2409 = vld [vmem:[#allocation2 + $0x1a8] sm:$0xff]
          %v2410 = vld [vmem:[#allocation2 + $0x1b0] sm:$0xff]
          %v2411 = vld [vmem:[#allocation2 + $0x1b8] sm:$0xff]
          %v2412 = vld [vmem:[#allocation2 + $0x1c0] sm:$0xff]
          %v2413 = vld [vmem:[#allocation2 + $0x1c8] sm:$0xff]
          %v2414 = vld [vmem:[#allocation2 + $0x1d0] sm:$0xff]
          %v2415 = vld [vmem:[#allocation2 + $0x1d8] sm:$0xff]
          %v2416 = vld [vmem:[#allocation2 + $0x1e0] sm:$0xff]
          %v2417 = vld [vmem:[#allocation2 + $0x1e8] sm:$0xff]
          %v2418 = vld [vmem:[#allocation2 + $0x1f0] sm:$0xff]
          %v2419 = vld [vmem:[#allocation2 + $0x1f8] sm:$0xff]
          %v2420 = vld [vmem:[#allocation2 + $0x200] sm:$0xff]
          %v2421 = vld [vmem:[#allocation2 + $0x208] sm:$0xff]
          %v2422 = vld [vmem:[#allocation2 + $0x210] sm:$0xff]
          %v2423 = vld [vmem:[#allocation2 + $0x218] sm:$0xff]
          %v2424 = vld [vmem:[#allocation2 + $0x220] sm:$0xff]
          %v2425 = vld [vmem:[#allocation2 + $0x228] sm:$0xff]
          %v2426 = vld [vmem:[#allocation2 + $0x230] sm:$0xff]
          %v2427 = vld [vmem:[#allocation2 + $0x238] sm:$0xff]
          %v2428 = vld [vmem:[#allocation2 + $0x240] sm:$0xff]
          %v2429 = vld [vmem:[#allocation2 + $0x248] sm:$0xff]
          %v2430 = vld [vmem:[#allocation2 + $0x250] sm:$0xff]
          %v2431 = vld [vmem:[#allocation2 + $0x258] sm:$0xff]
          %v2432 = vld [vmem:[#allocation2 + $0x260] sm:$0xff]
          %v2433 = vld [vmem:[#allocation2 + $0x268] sm:$0xff]
          %v2434 = vld [vmem:[#allocation2 + $0x270] sm:$0xff]
          %v2435 = vld [vmem:[#allocation2 + $0x278] sm:$0xff]
          %v2436 = vld [vmem:[#allocation2 + $0x280] sm:$0xff]
          %v2437 = vld [vmem:[#allocation2 + $0x288] sm:$0xff]
          %v2438 = vld [vmem:[#allocation2 + $0x290] sm:$0xff]
          %v2439 = vld [vmem:[#allocation2 + $0x298] sm:$0xff]
          %v2440 = vld [vmem:[#allocation2 + $0x2a0] sm:$0xff]
          %v2441 = vld [vmem:[#allocation2 + $0x2a8] sm:$0xff]
          %v2442 = vld [vmem:[#allocation2 + $0x2b0] sm:$0xff]
          %v2443 = vld [vmem:[#allocation2 + $0x2b8] sm:$0xff]
          %v2444 = vld [vmem:[#allocation2 + $0x2c0] sm:$0xff]
          %v2445 = vld [vmem:[#allocation2 + $0x2c8] sm:$0xff]
          %v2446 = vld [vmem:[#allocation2 + $0x2d0] sm:$0xff]
          %v2447 = vld [vmem:[#allocation2 + $0x2d8] sm:$0xff]
          %v2448 = vld [vmem:[#allocation2 + $0x2e0] sm:$0xff]
          %v2449 = vld [vmem:[#allocation2 + $0x2e8] sm:$0xff]
          %v2450 = vld [vmem:[#allocation2 + $0x2f0] sm:$0xff]
          %v2451 = vld [vmem:[#allocation2 + $0x2f8] sm:$0xff]
          %v2452 = vld [vmem:[#allocation2 + $0x300] sm:$0xff]
          %v2453 = vld [vmem:[#allocation2 + $0x308] sm:$0xff]
          %v2454 = vld [vmem:[#allocation2 + $0x310] sm:$0xff]
          %v2455 = vld [vmem:[#allocation2 + $0x318] sm:$0xff]
          %v2456 = vld [vmem:[#allocation2 + $0x320] sm:$0xff]
          %v2457 = vld [vmem:[#allocation2 + $0x328] sm:$0xff]
          %v2458 = vld [vmem:[#allocation2 + $0x330] sm:$0xff]
          %v2459 = vld [vmem:[#allocation2 + $0x338] sm:$0xff]
          %v2460 = vld [vmem:[#allocation2 + $0x340] sm:$0xff]
          %v2461 = vld [vmem:[#allocation2 + $0x348] sm:$0xff]
          %v2462 = vld [vmem:[#allocation2 + $0x350] sm:$0xff]
          %v2463 = vld [vmem:[#allocation2 + $0x358] sm:$0xff]
          %v2464 = vld [vmem:[#allocation2 + $0x360] sm:$0xff]
          %v2465 = vld [vmem:[#allocation2 + $0x368] sm:$0xff]
          %v2466 = vld [vmem:[#allocation2 + $0x370] sm:$0xff]
          %v2467 = vld [vmem:[#allocation2 + $0x378] sm:$0xff]
          %v2468 = vld [vmem:[#allocation2 + $0x380] sm:$0xff]
          %v2469 = vld [vmem:[#allocation2 + $0x388] sm:$0xff]
          %v2470 = vld [vmem:[#allocation2 + $0x390] sm:$0xff]
          %v2471 = vld [vmem:[#allocation2 + $0x398] sm:$0xff]
          %v2472 = vld [vmem:[#allocation2 + $0x3a0] sm:$0xff]
          %v2473 = vld [vmem:[#allocation2 + $0x3a8] sm:$0xff]
          %v2474 = vld [vmem:[#allocation2 + $0x3b0] sm:$0xff]
          %v2475 = vld [vmem:[#allocation2 + $0x3b8] sm:$0xff]
          %v2476 = vld [vmem:[#allocation2 + $0x3c0] sm:$0xff]
          %v2477 = vld [vmem:[#allocation2 + $0x3c8] sm:$0xff]
          %v2478 = vld [vmem:[#allocation2 + $0x3d0] sm:$0xff]
          %v2479 = vld [vmem:[#allocation2 + $0x3d8] sm:$0xff]
          %v2480 = vld [vmem:[#allocation2 + $0x3e0] sm:$0xff]
          %v2481 = vld [vmem:[#allocation2 + $0x3e8] sm:$0xff]
          %v2482 = vld [vmem:[#allocation2 + $0x3f0] sm:$0xff]
          %v2483 = vld [vmem:[#allocation2 + $0x3f8] sm:$0xff]
          %v2484 = vld [vmem:[#allocation2 + $0x400] sm:$0xff]
          %v2485 = vld [vmem:[#allocation2 + $0x408] sm:$0xff]
          %v2486 = vld [vmem:[#allocation2 + $0x410] sm:$0xff]
          %v2487 = vld [vmem:[#allocation2 + $0x418] sm:$0xff]
          %v2488 = vld [vmem:[#allocation2 + $0x420] sm:$0xff]
          %v2489 = vld [vmem:[#allocation2 + $0x428] sm:$0xff]
          %v2490 = vld [vmem:[#allocation2 + $0x430] sm:$0xff]
          %v2491 = vld [vmem:[#allocation2 + $0x438] sm:$0xff]
          %v2492 = vld [vmem:[#allocation2 + $0x440] sm:$0xff]
          %v2493 = vld [vmem:[#allocation2 + $0x448] sm:$0xff]
          %v2494 = vld [vmem:[#allocation2 + $0x450] sm:$0xff]
          %v2495 = vld [vmem:[#allocation2 + $0x458] sm:$0xff]
          %v2496 = vld [vmem:[#allocation2 + $0x460] sm:$0xff]
          %v2497 = vld [vmem:[#allocation2 + $0x468] sm:$0xff]
          %v2498 = vld [vmem:[#allocation2 + $0x470] sm:$0xff]
          %v2499 = vld [vmem:[#allocation2 + $0x478] sm:$0xff]
          %v2500 = vld [vmem:[#allocation2 + $0x480] sm:$0xff]
          %v2501 = vld [vmem:[#allocation2 + $0x488] sm:$0xff]
          %v2502 = vld [vmem:[#allocation2 + $0x490] sm:$0xff]
          %v2503 = vld [vmem:[#allocation2 + $0x498] sm:$0xff]
          %v2504 = vld [vmem:[#allocation2 + $0x4a0] sm:$0xff]
          %v2505 = vld [vmem:[#allocation2 + $0x4a8] sm:$0xff]
          %v2506 = vld [vmem:[#allocation2 + $0x4b0] sm:$0xff]
          %v2507 = vld [vmem:[#allocation2 + $0x4b8] sm:$0xff]
          %v2508 = vld [vmem:[#allocation2 + $0x4c0] sm:$0xff]
          %v2509 = vld [vmem:[#allocation2 + $0x4c8] sm:$0xff]
          %v2510 = vld [vmem:[#allocation2 + $0x4d0] sm:$0xff]
          %v2511 = vld [vmem:[#allocation2 + $0x4d8] sm:$0xff]
          %v2512 = vld [vmem:[#allocation2 + $0x4e0] sm:$0xff]
          %v2513 = vld [vmem:[#allocation2 + $0x4e8] sm:$0xff]
          %v2514 = vld [vmem:[#allocation2 + $0x4f0] sm:$0xff]
          %v2515 = vld [vmem:[#allocation2 + $0x4f8] sm:$0xff]
          %v2516 = vld [vmem:[#allocation2 + $0x500] sm:$0xff]
          %v2517 = vld [vmem:[#allocation2 + $0x508] sm:$0xff]
          %v2518 = vld [vmem:[#allocation2 + $0x510] sm:$0xff]
          %v2519 = vld [vmem:[#allocation2 + $0x518] sm:$0xff]
          %v2520 = vld [vmem:[#allocation2 + $0x520] sm:$0xff]
          %v2521 = vld [vmem:[#allocation2 + $0x528] sm:$0xff]
          %v2522 = vld [vmem:[#allocation2 + $0x530] sm:$0xff]
          %v2523 = vld [vmem:[#allocation2 + $0x538] sm:$0xff]
          %v2524 = vld [vmem:[#allocation2 + $0x540] sm:$0xff]
          %v2525 = vld [vmem:[#allocation2 + $0x548] sm:$0xff]
          %v2526 = vld [vmem:[#allocation2 + $0x550] sm:$0xff]
          %v2527 = vld [vmem:[#allocation2 + $0x558] sm:$0xff]
          %v2528 = vld [vmem:[#allocation2 + $0x560] sm:$0xff]
          %v2529 = vld [vmem:[#allocation2 + $0x568] sm:$0xff]
          %v2530 = vld [vmem:[#allocation2 + $0x570] sm:$0xff]
          %v2531 = vld [vmem:[#allocation2 + $0x578] sm:$0xff]
          %v2532 = vld [vmem:[#allocation2 + $0x580] sm:$0xff]
          %v2533 = vld [vmem:[#allocation2 + $0x588] sm:$0xff]
          %v2534 = vld [vmem:[#allocation2 + $0x590] sm:$0xff]
          %v2535 = vld [vmem:[#allocation2 + $0x598] sm:$0xff]
          %v2536 = vld [vmem:[#allocation2 + $0x5a0] sm:$0xff]
          %v2537 = vld [vmem:[#allocation2 + $0x5a8] sm:$0xff]
          %v2538 = vld [vmem:[#allocation2 + $0x5b0] sm:$0xff]
          %v2539 = vld [vmem:[#allocation2 + $0x5b8] sm:$0xff]
          %v2540 = vld [vmem:[#allocation2 + $0x5c0] sm:$0xff]
          %v2541 = vld [vmem:[#allocation2 + $0x5c8] sm:$0xff]
          %v2542 = vld [vmem:[#allocation2 + $0x5d0] sm:$0xff]
          %v2543 = vld [vmem:[#allocation2 + $0x5d8] sm:$0xff]
          %v2544 = vld [vmem:[#allocation2 + $0x5e0] sm:$0xff]
          %v2545 = vld [vmem:[#allocation2 + $0x5e8] sm:$0xff]
          %v2546 = vld [vmem:[#allocation2 + $0x5f0] sm:$0xff]
          %v2547 = vld [vmem:[#allocation2 + $0x5f8] sm:$0xff]
          %v2548 = vld [vmem:[#allocation2 + $0x600] sm:$0xff]
          %v2549 = vld [vmem:[#allocation2 + $0x608] sm:$0xff]
          %v2550 = vld [vmem:[#allocation2 + $0x610] sm:$0xff]
          %v2551 = vld [vmem:[#allocation2 + $0x618] sm:$0xff]
          %v2552 = vld [vmem:[#allocation2 + $0x620] sm:$0xff]
          %v2553 = vld [vmem:[#allocation2 + $0x628] sm:$0xff]
          %v2554 = vld [vmem:[#allocation2 + $0x630] sm:$0xff]
          %v2555 = vld [vmem:[#allocation2 + $0x638] sm:$0xff]
          %v2556 = vld [vmem:[#allocation2 + $0x640] sm:$0xff]
          %v2557 = vld [vmem:[#allocation2 + $0x648] sm:$0xff]
          %v2558 = vld [vmem:[#allocation2 + $0x650] sm:$0xff]
          %v2559 = vld [vmem:[#allocation2 + $0x658] sm:$0xff]
          %v2560 = vld [vmem:[#allocation2 + $0x660] sm:$0xff]
          %v2561 = vld [vmem:[#allocation2 + $0x668] sm:$0xff]
          %v2562 = vld [vmem:[#allocation2 + $0x670] sm:$0xff]
          %v2563 = vld [vmem:[#allocation2 + $0x678] sm:$0xff]
          %v2564 = vld [vmem:[#allocation2 + $0x680] sm:$0xff]
          %v2565 = vld [vmem:[#allocation2 + $0x688] sm:$0xff]
          %v2566 = vld [vmem:[#allocation2 + $0x690] sm:$0xff]
          %v2567 = vld [vmem:[#allocation2 + $0x698] sm:$0xff]
          %v2568 = vld [vmem:[#allocation2 + $0x6a0] sm:$0xff]
          %v2569 = vld [vmem:[#allocation2 + $0x6a8] sm:$0xff]
          %v2570 = vld [vmem:[#allocation2 + $0x6b0] sm:$0xff]
          %v2571 = vld [vmem:[#allocation2 + $0x6b8] sm:$0xff]
          %v2572 = vld [vmem:[#allocation2 + $0x6c0] sm:$0xff]
          %v2573 = vld [vmem:[#allocation2 + $0x6c8] sm:$0xff]
          %v2574 = vld [vmem:[#allocation2 + $0x6d0] sm:$0xff]
          %v2575 = vld [vmem:[#allocation2 + $0x6d8] sm:$0xff]
          %v2576 = vld [vmem:[#allocation2 + $0x6e0] sm:$0xff]
          %v2577 = vld [vmem:[#allocation2 + $0x6e8] sm:$0xff]
          %v2578 = vld [vmem:[#allocation2 + $0x6f0] sm:$0xff]
          %v2579 = vld [vmem:[#allocation2 + $0x6f8] sm:$0xff]
          %v2580 = vld [vmem:[#allocation2 + $0x700] sm:$0xff]
          %v2581 = vld [vmem:[#allocation2 + $0x708] sm:$0xff]
          %v2582 = vld [vmem:[#allocation2 + $0x710] sm:$0xff]
          %v2583 = vld [vmem:[#allocation2 + $0x718] sm:$0xff]
          %v2584 = vld [vmem:[#allocation2 + $0x720] sm:$0xff]
          %v2585 = vld [vmem:[#allocation2 + $0x728] sm:$0xff]
          %v2586 = vld [vmem:[#allocation2 + $0x730] sm:$0xff]
          %v2587 = vld [vmem:[#allocation2 + $0x738] sm:$0xff]
          %v2588 = vld [vmem:[#allocation2 + $0x740] sm:$0xff]
          %v2589 = vld [vmem:[#allocation2 + $0x748] sm:$0xff]
          %v2590 = vld [vmem:[#allocation2 + $0x750] sm:$0xff]
          %v2591 = vld [vmem:[#allocation2 + $0x758] sm:$0xff]
          %v2592 = vld [vmem:[#allocation2 + $0x760] sm:$0xff]
          %v2593 = vld [vmem:[#allocation2 + $0x768] sm:$0xff]
          %v2594 = vld [vmem:[#allocation2 + $0x770] sm:$0xff]
          %v2595 = vld [vmem:[#allocation2 + $0x778] sm:$0xff]
          %v2596 = vld [vmem:[#allocation2 + $0x780] sm:$0xff]
          %v2597 = vld [vmem:[#allocation2 + $0x788] sm:$0xff]
          %v2598 = vld [vmem:[#allocation2 + $0x790] sm:$0xff]
          %v2599 = vld [vmem:[#allocation2 + $0x798] sm:$0xff]
          %v2600 = vld [vmem:[#allocation2 + $0x7a0] sm:$0xff]
          %v2601 = vld [vmem:[#allocation2 + $0x7a8] sm:$0xff]
          %v2602 = vld [vmem:[#allocation2 + $0x7b0] sm:$0xff]
          %v2603 = vld [vmem:[#allocation2 + $0x7b8] sm:$0xff]
          %v2604 = vld [vmem:[#allocation2 + $0x7c0] sm:$0xff]
          %v2605 = vld [vmem:[#allocation2 + $0x7c8] sm:$0xff]
          %v2606 = vld [vmem:[#allocation2 + $0x7d0] sm:$0xff]
          %v2607 = vld [vmem:[#allocation2 + $0x7d8] sm:$0xff]
          %v2608 = vld [vmem:[#allocation2 + $0x7e0] sm:$0xff]
          %v2609 = vld [vmem:[#allocation2 + $0x7e8] sm:$0xff]
          %v2610 = vld [vmem:[#allocation2 + $0x7f0] sm:$0xff]
          %v2611 = vld [vmem:[#allocation2 + $0x7f8] sm:$0xff]
          %v2612 = vld [vmem:[#allocation2 + $0x800] sm:$0xff]
          %v2613 = vld [vmem:[#allocation2 + $0x808] sm:$0xff]
          %v2614 = vld [vmem:[#allocation2 + $0x810] sm:$0xff]
          %v2615 = vld [vmem:[#allocation2 + $0x818] sm:$0xff]
          %v2616 = vld [vmem:[#allocation2 + $0x820] sm:$0xff]
          %v2617 = vld [vmem:[#allocation2 + $0x828] sm:$0xff]
          %v2618 = vld [vmem:[#allocation2 + $0x830] sm:$0xff]
          %v2619 = vld [vmem:[#allocation2 + $0x838] sm:$0xff]
          %v2620 = vld [vmem:[%s304] sm:$0x3]
          %v2622 = vlaneseq
          %v2623 = vshrl.u32 %v2622, 7
          %v2624 = vsub.s32 0, %v2623
          %v2625 = vrot.slane %v2620, %v2624
          %v2626 = vlaneseq
          %v2627 = vshrl.u32 %v2626, 7
          %v2628 = vsub.s32 1, %v2627
          %v2629 = vrot.slane %v2620, %v2628
          %v2632 = vadd.f32 %v2356, %v2625
          %v2633 = vadd.f32 %v2357, %v2629
          %v2634 = vadd.f32 %v2358, %v2625
          %v2635 = vadd.f32 %v2359, %v2629
          %v2636 = vadd.f32 %v2360, %v2625
          %v2637 = vadd.f32 %v2361, %v2629
          %v2638 = vadd.f32 %v2362, %v2625
          %v2639 = vadd.f32 %v2363, %v2629
          %v2640 = vadd.f32 %v2364, %v2625
          %v2641 = vadd.f32 %v2365, %v2629
          %v2642 = vadd.f32 %v2366, %v2625
          %v2643 = vadd.f32 %v2367, %v2629
          %v2644 = vadd.f32 %v2368, %v2625
          %v2645 = vadd.f32 %v2369, %v2629
          %v2646 = vadd.f32 %v2370, %v2625
          %v2647 = vadd.f32 %v2371, %v2629
          %v2648 = vadd.f32 %v2372, %v2625
          %v2649 = vadd.f32 %v2373, %v2629
          %v2650 = vadd.f32 %v2374, %v2625
          %v2651 = vadd.f32 %v2375, %v2629
          %v2652 = vadd.f32 %v2376, %v2625
          %v2653 = vadd.f32 %v2377, %v2629
          %v2654 = vadd.f32 %v2378, %v2625
          %v2655 = vadd.f32 %v2379, %v2629
          %v2656 = vadd.f32 %v2380, %v2625
          %v2657 = vadd.f32 %v2381, %v2629
          %v2658 = vadd.f32 %v2382, %v2625
          %v2659 = vadd.f32 %v2383, %v2629
          %v2660 = vadd.f32 %v2384, %v2625
          %v2661 = vadd.f32 %v2385, %v2629
          %v2662 = vadd.f32 %v2386, %v2625
          %v2663 = vadd.f32 %v2387, %v2629
          %v2664 = vadd.f32 %v2388, %v2625
          %v2665 = vadd.f32 %v2389, %v2629
          %v2666 = vadd.f32 %v2390, %v2625
          %v2667 = vadd.f32 %v2391, %v2629
          %v2668 = vadd.f32 %v2392, %v2625
          %v2669 = vadd.f32 %v2393, %v2629
          %v2670 = vadd.f32 %v2394, %v2625
          %v2671 = vadd.f32 %v2395, %v2629
          %v2672 = vadd.f32 %v2396, %v2625
          %v2673 = vadd.f32 %v2397, %v2629
          %v2674 = vadd.f32 %v2398, %v2625
          %v2675 = vadd.f32 %v2399, %v2629
          %v2676 = vadd.f32 %v2400, %v2625
          %v2677 = vadd.f32 %v2401, %v2629
          %v2678 = vadd.f32 %v2402, %v2625
          %v2679 = vadd.f32 %v2403, %v2629
          %v2680 = vadd.f32 %v2404, %v2625
          %v2681 = vadd.f32 %v2405, %v2629
          %v2682 = vadd.f32 %v2406, %v2625
          %v2683 = vadd.f32 %v2407, %v2629
          %v2684 = vadd.f32 %v2408, %v2625
          %v2685 = vadd.f32 %v2409, %v2629
          %v2686 = vadd.f32 %v2410, %v2625
          %v2687 = vadd.f32 %v2411, %v2629
          %v2688 = vadd.f32 %v2412, %v2625
          %v2689 = vadd.f32 %v2413, %v2629
          %v2690 = vadd.f32 %v2414, %v2625
          %v2691 = vadd.f32 %v2415, %v2629
          %v2692 = vadd.f32 %v2416, %v2625
          %v2693 = vadd.f32 %v2417, %v2629
          %v2694 = vadd.f32 %v2418, %v2625
          %v2695 = vadd.f32 %v2419, %v2629
          %v2696 = vadd.f32 %v2420, %v2625
          %v2697 = vadd.f32 %v2421, %v2629
          %v2698 = vadd.f32 %v2422, %v2625
          %v2699 = vadd.f32 %v2423, %v2629
          %v2700 = vadd.f32 %v2424, %v2625
          %v2701 = vadd.f32 %v2425, %v2629
          %v2702 = vadd.f32 %v2426, %v2625
          %v2703 = vadd.f32 %v2427, %v2629
          %v2704 = vadd.f32 %v2428, %v2625
          %v2705 = vadd.f32 %v2429, %v2629
          %v2706 = vadd.f32 %v2430, %v2625
          %v2707 = vadd.f32 %v2431, %v2629
          %v2708 = vadd.f32 %v2432, %v2625
          %v2709 = vadd.f32 %v2433, %v2629
          %v2710 = vadd.f32 %v2434, %v2625
          %v2711 = vadd.f32 %v2435, %v2629
          %v2712 = vadd.f32 %v2436, %v2625
          %v2713 = vadd.f32 %v2437, %v2629
          %v2714 = vadd.f32 %v2438, %v2625
          %v2715 = vadd.f32 %v2439, %v2629
          %v2716 = vadd.f32 %v2440, %v2625
          %v2717 = vadd.f32 %v2441, %v2629
          %v2718 = vadd.f32 %v2442, %v2625
          %v2719 = vadd.f32 %v2443, %v2629
          %v2720 = vadd.f32 %v2444, %v2625
          %v2721 = vadd.f32 %v2445, %v2629
          %v2722 = vadd.f32 %v2446, %v2625
          %v2723 = vadd.f32 %v2447, %v2629
          %v2724 = vadd.f32 %v2448, %v2625
          %v2725 = vadd.f32 %v2449, %v2629
          %v2726 = vadd.f32 %v2450, %v2625
          %v2727 = vadd.f32 %v2451, %v2629
          %v2728 = vadd.f32 %v2452, %v2625
          %v2729 = vadd.f32 %v2453, %v2629
          %v2730 = vadd.f32 %v2454, %v2625
          %v2731 = vadd.f32 %v2455, %v2629
          %v2732 = vadd.f32 %v2456, %v2625
          %v2733 = vadd.f32 %v2457, %v2629
          %v2734 = vadd.f32 %v2458, %v2625
          %v2735 = vadd.f32 %v2459, %v2629
          %v2736 = vadd.f32 %v2460, %v2625
          %v2737 = vadd.f32 %v2461, %v2629
          %v2738 = vadd.f32 %v2462, %v2625
          %v2739 = vadd.f32 %v2463, %v2629
          %v2740 = vadd.f32 %v2464, %v2625
          %v2741 = vadd.f32 %v2465, %v2629
          %v2742 = vadd.f32 %v2466, %v2625
          %v2743 = vadd.f32 %v2467, %v2629
          %v2744 = vadd.f32 %v2468, %v2625
          %v2745 = vadd.f32 %v2469, %v2629
          %v2746 = vadd.f32 %v2470, %v2625
          %v2747 = vadd.f32 %v2471, %v2629
          %v2748 = vadd.f32 %v2472, %v2625
          %v2749 = vadd.f32 %v2473, %v2629
          %v2750 = vadd.f32 %v2474, %v2625
          %v2751 = vadd.f32 %v2475, %v2629
          %v2752 = vadd.f32 %v2476, %v2625
          %v2753 = vadd.f32 %v2477, %v2629
          %v2754 = vadd.f32 %v2478, %v2625
          %v2755 = vadd.f32 %v2479, %v2629
          %v2756 = vadd.f32 %v2480, %v2625
          %v2757 = vadd.f32 %v2481, %v2629
          %v2758 = vadd.f32 %v2482, %v2625
          %v2759 = vadd.f32 %v2483, %v2629
          %v2760 = vadd.f32 %v2484, %v2625
          %v2761 = vadd.f32 %v2485, %v2629
          %v2762 = vadd.f32 %v2486, %v2625
          %v2763 = vadd.f32 %v2487, %v2629
          %v2764 = vadd.f32 %v2488, %v2625
          %v2765 = vadd.f32 %v2489, %v2629
          %v2766 = vadd.f32 %v2490, %v2625
          %v2767 = vadd.f32 %v2491, %v2629
          %v2768 = vadd.f32 %v2492, %v2625
          %v2769 = vadd.f32 %v2493, %v2629
          %v2770 = vadd.f32 %v2494, %v2625
          %v2771 = vadd.f32 %v2495, %v2629
          %v2772 = vadd.f32 %v2496, %v2625
          %v2773 = vadd.f32 %v2497, %v2629
          %v2774 = vadd.f32 %v2498, %v2625
          %v2775 = vadd.f32 %v2499, %v2629
          %v2776 = vadd.f32 %v2500, %v2625
          %v2777 = vadd.f32 %v2501, %v2629
          %v2778 = vadd.f32 %v2502, %v2625
          %v2779 = vadd.f32 %v2503, %v2629
          %v2780 = vadd.f32 %v2504, %v2625
          %v2781 = vadd.f32 %v2505, %v2629
          %v2782 = vadd.f32 %v2506, %v2625
          %v2783 = vadd.f32 %v2507, %v2629
          %v2784 = vadd.f32 %v2508, %v2625
          %v2785 = vadd.f32 %v2509, %v2629
          %v2786 = vadd.f32 %v2510, %v2625
          %v2787 = vadd.f32 %v2511, %v2629
          %v2788 = vadd.f32 %v2512, %v2625
          %v2789 = vadd.f32 %v2513, %v2629
          %v2790 = vadd.f32 %v2514, %v2625
          %v2791 = vadd.f32 %v2515, %v2629
          %v2792 = vadd.f32 %v2516, %v2625
          %v2793 = vadd.f32 %v2517, %v2629
          %v2794 = vadd.f32 %v2518, %v2625
          %v2795 = vadd.f32 %v2519, %v2629
          %v2796 = vadd.f32 %v2520, %v2625
          %v2797 = vadd.f32 %v2521, %v2629
          %v2798 = vadd.f32 %v2522, %v2625
          %v2799 = vadd.f32 %v2523, %v2629
          %v2800 = vadd.f32 %v2524, %v2625
          %v2801 = vadd.f32 %v2525, %v2629
          %v2802 = vadd.f32 %v2526, %v2625
          %v2803 = vadd.f32 %v2527, %v2629
          %v2804 = vadd.f32 %v2528, %v2625
          %v2805 = vadd.f32 %v2529, %v2629
          %v2806 = vadd.f32 %v2530, %v2625
          %v2807 = vadd.f32 %v2531, %v2629
          %v2808 = vadd.f32 %v2532, %v2625
          %v2809 = vadd.f32 %v2533, %v2629
          %v2810 = vadd.f32 %v2534, %v2625
          %v2811 = vadd.f32 %v2535, %v2629
          %v2812 = vadd.f32 %v2536, %v2625
          %v2813 = vadd.f32 %v2537, %v2629
          %v2814 = vadd.f32 %v2538, %v2625
          %v2815 = vadd.f32 %v2539, %v2629
          %v2816 = vadd.f32 %v2540, %v2625
          %v2817 = vadd.f32 %v2541, %v2629
          %v2818 = vadd.f32 %v2542, %v2625
          %v2819 = vadd.f32 %v2543, %v2629
          %v2820 = vadd.f32 %v2544, %v2625
          %v2821 = vadd.f32 %v2545, %v2629
          %v2822 = vadd.f32 %v2546, %v2625
          %v2823 = vadd.f32 %v2547, %v2629
          %v2824 = vadd.f32 %v2548, %v2625
          %v2825 = vadd.f32 %v2549, %v2629
          %v2826 = vadd.f32 %v2550, %v2625
          %v2827 = vadd.f32 %v2551, %v2629
          %v2828 = vadd.f32 %v2552, %v2625
          %v2829 = vadd.f32 %v2553, %v2629
          %v2830 = vadd.f32 %v2554, %v2625
          %v2831 = vadd.f32 %v2555, %v2629
          %v2832 = vadd.f32 %v2556, %v2625
          %v2833 = vadd.f32 %v2557, %v2629
          %v2834 = vadd.f32 %v2558, %v2625
          %v2835 = vadd.f32 %v2559, %v2629
          %v2836 = vadd.f32 %v2560, %v2625
          %v2837 = vadd.f32 %v2561, %v2629
          %v2838 = vadd.f32 %v2562, %v2625
          %v2839 = vadd.f32 %v2563, %v2629
          %v2840 = vadd.f32 %v2564, %v2625
          %v2841 = vadd.f32 %v2565, %v2629
          %v2842 = vadd.f32 %v2566, %v2625
          %v2843 = vadd.f32 %v2567, %v2629
          %v2844 = vadd.f32 %v2568, %v2625
          %v2845 = vadd.f32 %v2569, %v2629
          %v2846 = vadd.f32 %v2570, %v2625
          %v2847 = vadd.f32 %v2571, %v2629
          %v2848 = vadd.f32 %v2572, %v2625
          %v2849 = vadd.f32 %v2573, %v2629
          %v2850 = vadd.f32 %v2574, %v2625
          %v2851 = vadd.f32 %v2575, %v2629
          %v2852 = vadd.f32 %v2576, %v2625
          %v2853 = vadd.f32 %v2577, %v2629
          %v2854 = vadd.f32 %v2578, %v2625
          %v2855 = vadd.f32 %v2579, %v2629
          %v2856 = vadd.f32 %v2580, %v2625
          %v2857 = vadd.f32 %v2581, %v2629
          %v2858 = vadd.f32 %v2582, %v2625
          %v2859 = vadd.f32 %v2583, %v2629
          %v2860 = vadd.f32 %v2584, %v2625
          %v2861 = vadd.f32 %v2585, %v2629
          %v2862 = vadd.f32 %v2586, %v2625
          %v2863 = vadd.f32 %v2587, %v2629
          %v2864 = vadd.f32 %v2588, %v2625
          %v2865 = vadd.f32 %v2589, %v2629
          %v2866 = vadd.f32 %v2590, %v2625
          %v2867 = vadd.f32 %v2591, %v2629
          %v2868 = vadd.f32 %v2592, %v2625
          %v2869 = vadd.f32 %v2593, %v2629
          %v2870 = vadd.f32 %v2594, %v2625
          %v2871 = vadd.f32 %v2595, %v2629
          %v2872 = vadd.f32 %v2596, %v2625
          %v2873 = vadd.f32 %v2597, %v2629
          %v2874 = vadd.f32 %v2598, %v2625
          %v2875 = vadd.f32 %v2599, %v2629
          %v2876 = vadd.f32 %v2600, %v2625
          %v2877 = vadd.f32 %v2601, %v2629
          %v2878 = vadd.f32 %v2602, %v2625
          %v2879 = vadd.f32 %v2603, %v2629
          %v2880 = vadd.f32 %v2604, %v2625
          %v2881 = vadd.f32 %v2605, %v2629
          %v2882 = vadd.f32 %v2606, %v2625
          %v2883 = vadd.f32 %v2607, %v2629
          %v2884 = vadd.f32 %v2608, %v2625
          %v2885 = vadd.f32 %v2609, %v2629
          %v2886 = vadd.f32 %v2610, %v2625
          %v2887 = vadd.f32 %v2611, %v2629
          %v2888 = vadd.f32 %v2612, %v2625
          %v2889 = vadd.f32 %v2613, %v2629
          %v2890 = vadd.f32 %v2614, %v2625
          %v2891 = vadd.f32 %v2615, %v2629
          %v2892 = vadd.f32 %v2616, %v2625
          %v2893 = vadd.f32 %v2617, %v2629
          %v2894 = vadd.f32 %v2618, %v2625
          %v2895 = vadd.f32 %v2619, %v2629
          %2896 = vst [vmem:[%s338] sm:$0xff] %v2632
          %2897 = vst [vmem:[%s338 + $0x8] sm:$0xff] %v2633
          %2898 = vst [vmem:[%s338 + $0x10] sm:$0xff] %v2634
          %2899 = vst [vmem:[%s338 + $0x18] sm:$0xff] %v2635
          %2900 = vst [vmem:[%s338 + $0x20] sm:$0xff] %v2636
          %2901 = vst [vmem:[%s338 + $0x28] sm:$0xff] %v2637
          %2902 = vst [vmem:[%s338 + $0x30] sm:$0xff] %v2638
          %2903 = vst [vmem:[%s338 + $0x38] sm:$0xff] %v2639
          %2904 = vst [vmem:[%s338 + $0x40] sm:$0xff] %v2640
          %2905 = vst [vmem:[%s338 + $0x48] sm:$0xff] %v2641
          %2906 = vst [vmem:[%s338 + $0x50] sm:$0xff] %v2642
          %2907 = vst [vmem:[%s338 + $0x58] sm:$0xff] %v2643
          %2908 = vst [vmem:[%s338 + $0x60] sm:$0xff] %v2644
          %2909 = vst [vmem:[%s338 + $0x68] sm:$0xff] %v2645
          %2910 = vst [vmem:[%s338 + $0x70] sm:$0xff] %v2646
          %2911 = vst [vmem:[%s338 + $0x78] sm:$0xff] %v2647
          %2912 = vst [vmem:[%s338 + $0x80] sm:$0xff] %v2648
          %2913 = vst [vmem:[%s338 + $0x88] sm:$0xff] %v2649
          %2914 = vst [vmem:[%s338 + $0x90] sm:$0xff] %v2650
          %2915 = vst [vmem:[%s338 + $0x98] sm:$0xff] %v2651
          %2916 = vst [vmem:[%s338 + $0xa0] sm:$0xff] %v2652
          %2917 = vst [vmem:[%s338 + $0xa8] sm:$0xff] %v2653
          %2918 = vst [vmem:[%s338 + $0xb0] sm:$0xff] %v2654
          %2919 = vst [vmem:[%s338 + $0xb8] sm:$0xff] %v2655
          %2920 = vst [vmem:[%s338 + $0xc0] sm:$0xff] %v2656
          %2921 = vst [vmem:[%s338 + $0xc8] sm:$0xff] %v2657
          %2922 = vst [vmem:[%s338 + $0xd0] sm:$0xff] %v2658
          %2923 = vst [vmem:[%s338 + $0xd8] sm:$0xff] %v2659
          %2924 = vst [vmem:[%s338 + $0xe0] sm:$0xff] %v2660
          %2925 = vst [vmem:[%s338 + $0xe8] sm:$0xff] %v2661
          %2926 = vst [vmem:[%s338 + $0xf0] sm:$0xff] %v2662
          %2927 = vst [vmem:[%s338 + $0xf8] sm:$0xff] %v2663
          %2928 = vst [vmem:[%s338 + $0x100] sm:$0xff] %v2664
          %2929 = vst [vmem:[%s338 + $0x108] sm:$0xff] %v2665
          %2930 = vst [vmem:[%s338 + $0x110] sm:$0xff] %v2666
          %2931 = vst [vmem:[%s338 + $0x118] sm:$0xff] %v2667
          %2932 = vst [vmem:[%s338 + $0x120] sm:$0xff] %v2668
          %2933 = vst [vmem:[%s338 + $0x128] sm:$0xff] %v2669
          %2934 = vst [vmem:[%s338 + $0x130] sm:$0xff] %v2670
          %2935 = vst [vmem:[%s338 + $0x138] sm:$0xff] %v2671
          %2936 = vst [vmem:[%s338 + $0x140] sm:$0xff] %v2672
          %2937 = vst [vmem:[%s338 + $0x148] sm:$0xff] %v2673
          %2938 = vst [vmem:[%s338 + $0x150] sm:$0xff] %v2674
          %2939 = vst [vmem:[%s338 + $0x158] sm:$0xff] %v2675
          %2940 = vst [vmem:[%s338 + $0x160] sm:$0xff] %v2676
          %2941 = vst [vmem:[%s338 + $0x168] sm:$0xff] %v2677
          %2942 = vst [vmem:[%s338 + $0x170] sm:$0xff] %v2678
          %2943 = vst [vmem:[%s338 + $0x178] sm:$0xff] %v2679
          %2944 = vst [vmem:[%s338 + $0x180] sm:$0xff] %v2680
          %2945 = vst [vmem:[%s338 + $0x188] sm:$0xff] %v2681
          %2946 = vst [vmem:[%s338 + $0x190] sm:$0xff] %v2682
          %2947 = vst [vmem:[%s338 + $0x198] sm:$0xff] %v2683
          %2948 = vst [vmem:[%s338 + $0x1a0] sm:$0xff] %v2684
          %2949 = vst [vmem:[%s338 + $0x1a8] sm:$0xff] %v2685
          %2950 = vst [vmem:[%s338 + $0x1b0] sm:$0xff] %v2686
          %2951 = vst [vmem:[%s338 + $0x1b8] sm:$0xff] %v2687
          %2952 = vst [vmem:[%s338 + $0x1c0] sm:$0xff] %v2688
          %2953 = vst [vmem:[%s338 + $0x1c8] sm:$0xff] %v2689
          %2954 = vst [vmem:[%s338 + $0x1d0] sm:$0xff] %v2690
          %2955 = vst [vmem:[%s338 + $0x1d8] sm:$0xff] %v2691
          %2956 = vst [vmem:[%s338 + $0x1e0] sm:$0xff] %v2692
          %2957 = vst [vmem:[%s338 + $0x1e8] sm:$0xff] %v2693
          %2958 = vst [vmem:[%s338 + $0x1f0] sm:$0xff] %v2694
          %2959 = vst [vmem:[%s338 + $0x1f8] sm:$0xff] %v2695
          %2960 = vst [vmem:[%s338 + $0x200] sm:$0xff] %v2696
          %2961 = vst [vmem:[%s338 + $0x208] sm:$0xff] %v2697
          %2962 = vst [vmem:[%s338 + $0x210] sm:$0xff] %v2698
          %2963 = vst [vmem:[%s338 + $0x218] sm:$0xff] %v2699
          %2964 = vst [vmem:[%s338 + $0x220] sm:$0xff] %v2700
          %2965 = vst [vmem:[%s338 + $0x228] sm:$0xff] %v2701
          %2966 = vst [vmem:[%s338 + $0x230] sm:$0xff] %v2702
          %2967 = vst [vmem:[%s338 + $0x238] sm:$0xff] %v2703
          %2968 = vst [vmem:[%s338 + $0x240] sm:$0xff] %v2704
          %2969 = vst [vmem:[%s338 + $0x248] sm:$0xff] %v2705
          %2970 = vst [vmem:[%s338 + $0x250] sm:$0xff] %v2706
          %2971 = vst [vmem:[%s338 + $0x258] sm:$0xff] %v2707
          %2972 = vst [vmem:[%s338 + $0x260] sm:$0xff] %v2708
          %2973 = vst [vmem:[%s338 + $0x268] sm:$0xff] %v2709
          %2974 = vst [vmem:[%s338 + $0x270] sm:$0xff] %v2710
          %2975 = vst [vmem:[%s338 + $0x278] sm:$0xff] %v2711
          %2976 = vst [vmem:[%s338 + $0x280] sm:$0xff] %v2712
          %2977 = vst [vmem:[%s338 + $0x288] sm:$0xff] %v2713
          %2978 = vst [vmem:[%s338 + $0x290] sm:$0xff] %v2714
          %2979 = vst [vmem:[%s338 + $0x298] sm:$0xff] %v2715
          %2980 = vst [vmem:[%s338 + $0x2a0] sm:$0xff] %v2716
          %2981 = vst [vmem:[%s338 + $0x2a8] sm:$0xff] %v2717
          %2982 = vst [vmem:[%s338 + $0x2b0] sm:$0xff] %v2718
          %2983 = vst [vmem:[%s338 + $0x2b8] sm:$0xff] %v2719
          %2984 = vst [vmem:[%s338 + $0x2c0] sm:$0xff] %v2720
          %2985 = vst [vmem:[%s338 + $0x2c8] sm:$0xff] %v2721
          %2986 = vst [vmem:[%s338 + $0x2d0] sm:$0xff] %v2722
          %2987 = vst [vmem:[%s338 + $0x2d8] sm:$0xff] %v2723
          %2988 = vst [vmem:[%s338 + $0x2e0] sm:$0xff] %v2724
          %2989 = vst [vmem:[%s338 + $0x2e8] sm:$0xff] %v2725
          %2990 = vst [vmem:[%s338 + $0x2f0] sm:$0xff] %v2726
          %2991 = vst [vmem:[%s338 + $0x2f8] sm:$0xff] %v2727
          %2992 = vst [vmem:[%s338 + $0x300] sm:$0xff] %v2728
          %2993 = vst [vmem:[%s338 + $0x308] sm:$0xff] %v2729
          %2994 = vst [vmem:[%s338 + $0x310] sm:$0xff] %v2730
          %2995 = vst [vmem:[%s338 + $0x318] sm:$0xff] %v2731
          %2996 = vst [vmem:[%s338 + $0x320] sm:$0xff] %v2732
          %2997 = vst [vmem:[%s338 + $0x328] sm:$0xff] %v2733
          %2998 = vst [vmem:[%s338 + $0x330] sm:$0xff] %v2734
          %2999 = vst [vmem:[%s338 + $0x338] sm:$0xff] %v2735
          %3000 = vst [vmem:[%s338 + $0x340] sm:$0xff] %v2736
          %3001 = vst [vmem:[%s338 + $0x348] sm:$0xff] %v2737
          %3002 = vst [vmem:[%s338 + $0x350] sm:$0xff] %v2738
          %3003 = vst [vmem:[%s338 + $0x358] sm:$0xff] %v2739
          %3004 = vst [vmem:[%s338 + $0x360] sm:$0xff] %v2740
          %3005 = vst [vmem:[%s338 + $0x368] sm:$0xff] %v2741
          %3006 = vst [vmem:[%s338 + $0x370] sm:$0xff] %v2742
          %3007 = vst [vmem:[%s338 + $0x378] sm:$0xff] %v2743
          %3008 = vst [vmem:[%s338 + $0x380] sm:$0xff] %v2744
          %3009 = vst [vmem:[%s338 + $0x388] sm:$0xff] %v2745
          %3010 = vst [vmem:[%s338 + $0x390] sm:$0xff] %v2746
          %3011 = vst [vmem:[%s338 + $0x398] sm:$0xff] %v2747
          %3012 = vst [vmem:[%s338 + $0x3a0] sm:$0xff] %v2748
          %3013 = vst [vmem:[%s338 + $0x3a8] sm:$0xff] %v2749
          %3014 = vst [vmem:[%s338 + $0x3b0] sm:$0xff] %v2750
          %3015 = vst [vmem:[%s338 + $0x3b8] sm:$0xff] %v2751
          %3016 = vst [vmem:[%s338 + $0x3c0] sm:$0xff] %v2752
          %3017 = vst [vmem:[%s338 + $0x3c8] sm:$0xff] %v2753
          %3018 = vst [vmem:[%s338 + $0x3d0] sm:$0xff] %v2754
          %3019 = vst [vmem:[%s338 + $0x3d8] sm:$0xff] %v2755
          %3020 = vst [vmem:[%s338 + $0x3e0] sm:$0xff] %v2756
          %3021 = vst [vmem:[%s338 + $0x3e8] sm:$0xff] %v2757
          %3022 = vst [vmem:[%s338 + $0x3f0] sm:$0xff] %v2758
          %3023 = vst [vmem:[%s338 + $0x3f8] sm:$0xff] %v2759
          %3024 = vst [vmem:[%s338 + $0x400] sm:$0xff] %v2760
          %3025 = vst [vmem:[%s338 + $0x408] sm:$0xff] %v2761
          %3026 = vst [vmem:[%s338 + $0x410] sm:$0xff] %v2762
          %3027 = vst [vmem:[%s338 + $0x418] sm:$0xff] %v2763
          %3028 = vst [vmem:[%s338 + $0x420] sm:$0xff] %v2764
          %3029 = vst [vmem:[%s338 + $0x428] sm:$0xff] %v2765
          %3030 = vst [vmem:[%s338 + $0x430] sm:$0xff] %v2766
          %3031 = vst [vmem:[%s338 + $0x438] sm:$0xff] %v2767
          %3032 = vst [vmem:[%s338 + $0x440] sm:$0xff] %v2768
          %3033 = vst [vmem:[%s338 + $0x448] sm:$0xff] %v2769
          %3034 = vst [vmem:[%s338 + $0x450] sm:$0xff] %v2770
          %3035 = vst [vmem:[%s338 + $0x458] sm:$0xff] %v2771
          %3036 = vst [vmem:[%s338 + $0x460] sm:$0xff] %v2772
          %3037 = vst [vmem:[%s338 + $0x468] sm:$0xff] %v2773
          %3038 = vst [vmem:[%s338 + $0x470] sm:$0xff] %v2774
          %3039 = vst [vmem:[%s338 + $0x478] sm:$0xff] %v2775
          %3040 = vst [vmem:[%s338 + $0x480] sm:$0xff] %v2776
          %3041 = vst [vmem:[%s338 + $0x488] sm:$0xff] %v2777
          %3042 = vst [vmem:[%s338 + $0x490] sm:$0xff] %v2778
          %3043 = vst [vmem:[%s338 + $0x498] sm:$0xff] %v2779
          %3044 = vst [vmem:[%s338 + $0x4a0] sm:$0xff] %v2780
          %3045 = vst [vmem:[%s338 + $0x4a8] sm:$0xff] %v2781
          %3046 = vst [vmem:[%s338 + $0x4b0] sm:$0xff] %v2782
          %3047 = vst [vmem:[%s338 + $0x4b8] sm:$0xff] %v2783
          %3048 = vst [vmem:[%s338 + $0x4c0] sm:$0xff] %v2784
          %3049 = vst [vmem:[%s338 + $0x4c8] sm:$0xff] %v2785
          %3050 = vst [vmem:[%s338 + $0x4d0] sm:$0xff] %v2786
          %3051 = vst [vmem:[%s338 + $0x4d8] sm:$0xff] %v2787
          %3052 = vst [vmem:[%s338 + $0x4e0] sm:$0xff] %v2788
          %3053 = vst [vmem:[%s338 + $0x4e8] sm:$0xff] %v2789
          %3054 = vst [vmem:[%s338 + $0x4f0] sm:$0xff] %v2790
          %3055 = vst [vmem:[%s338 + $0x4f8] sm:$0xff] %v2791
          %3056 = vst [vmem:[%s338 + $0x500] sm:$0xff] %v2792
          %3057 = vst [vmem:[%s338 + $0x508] sm:$0xff] %v2793
          %3058 = vst [vmem:[%s338 + $0x510] sm:$0xff] %v2794
          %3059 = vst [vmem:[%s338 + $0x518] sm:$0xff] %v2795
          %3060 = vst [vmem:[%s338 + $0x520] sm:$0xff] %v2796
          %3061 = vst [vmem:[%s338 + $0x528] sm:$0xff] %v2797
          %3062 = vst [vmem:[%s338 + $0x530] sm:$0xff] %v2798
          %3063 = vst [vmem:[%s338 + $0x538] sm:$0xff] %v2799
          %3064 = vst [vmem:[%s338 + $0x540] sm:$0xff] %v2800
          %3065 = vst [vmem:[%s338 + $0x548] sm:$0xff] %v2801
          %3066 = vst [vmem:[%s338 + $0x550] sm:$0xff] %v2802
          %3067 = vst [vmem:[%s338 + $0x558] sm:$0xff] %v2803
          %3068 = vst [vmem:[%s338 + $0x560] sm:$0xff] %v2804
          %3069 = vst [vmem:[%s338 + $0x568] sm:$0xff] %v2805
          %3070 = vst [vmem:[%s338 + $0x570] sm:$0xff] %v2806
          %3071 = vst [vmem:[%s338 + $0x578] sm:$0xff] %v2807
          %3072 = vst [vmem:[%s338 + $0x580] sm:$0xff] %v2808
          %3073 = vst [vmem:[%s338 + $0x588] sm:$0xff] %v2809
          %3074 = vst [vmem:[%s338 + $0x590] sm:$0xff] %v2810
          %3075 = vst [vmem:[%s338 + $0x598] sm:$0xff] %v2811
          %3076 = vst [vmem:[%s338 + $0x5a0] sm:$0xff] %v2812
          %3077 = vst [vmem:[%s338 + $0x5a8] sm:$0xff] %v2813
          %3078 = vst [vmem:[%s338 + $0x5b0] sm:$0xff] %v2814
          %3079 = vst [vmem:[%s338 + $0x5b8] sm:$0xff] %v2815
          %3080 = vst [vmem:[%s338 + $0x5c0] sm:$0xff] %v2816
          %3081 = vst [vmem:[%s338 + $0x5c8] sm:$0xff] %v2817
          %3082 = vst [vmem:[%s338 + $0x5d0] sm:$0xff] %v2818
          %3083 = vst [vmem:[%s338 + $0x5d8] sm:$0xff] %v2819
          %3084 = vst [vmem:[%s338 + $0x5e0] sm:$0xff] %v2820
          %3085 = vst [vmem:[%s338 + $0x5e8] sm:$0xff] %v2821
          %3086 = vst [vmem:[%s338 + $0x5f0] sm:$0xff] %v2822
          %3087 = vst [vmem:[%s338 + $0x5f8] sm:$0xff] %v2823
          %3088 = vst [vmem:[%s338 + $0x600] sm:$0xff] %v2824
          %3089 = vst [vmem:[%s338 + $0x608] sm:$0xff] %v2825
          %3090 = vst [vmem:[%s338 + $0x610] sm:$0xff] %v2826
          %3091 = vst [vmem:[%s338 + $0x618] sm:$0xff] %v2827
          %3092 = vst [vmem:[%s338 + $0x620] sm:$0xff] %v2828
          %3093 = vst [vmem:[%s338 + $0x628] sm:$0xff] %v2829
          %3094 = vst [vmem:[%s338 + $0x630] sm:$0xff] %v2830
          %3095 = vst [vmem:[%s338 + $0x638] sm:$0xff] %v2831
          %3096 = vst [vmem:[%s338 + $0x640] sm:$0xff] %v2832
          %3097 = vst [vmem:[%s338 + $0x648] sm:$0xff] %v2833
          %3098 = vst [vmem:[%s338 + $0x650] sm:$0xff] %v2834
          %3099 = vst [vmem:[%s338 + $0x658] sm:$0xff] %v2835
          %3100 = vst [vmem:[%s338 + $0x660] sm:$0xff] %v2836
          %3101 = vst [vmem:[%s338 + $0x668] sm:$0xff] %v2837
          %3102 = vst [vmem:[%s338 + $0x670] sm:$0xff] %v2838
          %3103 = vst [vmem:[%s338 + $0x678] sm:$0xff] %v2839
          %3104 = vst [vmem:[%s338 + $0x680] sm:$0xff] %v2840
          %3105 = vst [vmem:[%s338 + $0x688] sm:$0xff] %v2841
          %3106 = vst [vmem:[%s338 + $0x690] sm:$0xff] %v2842
          %3107 = vst [vmem:[%s338 + $0x698] sm:$0xff] %v2843
          %3108 = vst [vmem:[%s338 + $0x6a0] sm:$0xff] %v2844
          %3109 = vst [vmem:[%s338 + $0x6a8] sm:$0xff] %v2845
          %3110 = vst [vmem:[%s338 + $0x6b0] sm:$0xff] %v2846
          %3111 = vst [vmem:[%s338 + $0x6b8] sm:$0xff] %v2847
          %3112 = vst [vmem:[%s338 + $0x6c0] sm:$0xff] %v2848
          %3113 = vst [vmem:[%s338 + $0x6c8] sm:$0xff] %v2849
          %3114 = vst [vmem:[%s338 + $0x6d0] sm:$0xff] %v2850
          %3115 = vst [vmem:[%s338 + $0x6d8] sm:$0xff] %v2851
          %3116 = vst [vmem:[%s338 + $0x6e0] sm:$0xff] %v2852
          %3117 = vst [vmem:[%s338 + $0x6e8] sm:$0xff] %v2853
          %3118 = vst [vmem:[%s338 + $0x6f0] sm:$0xff] %v2854
          %3119 = vst [vmem:[%s338 + $0x6f8] sm:$0xff] %v2855
          %3120 = vst [vmem:[%s338 + $0x700] sm:$0xff] %v2856
          %3121 = vst [vmem:[%s338 + $0x708] sm:$0xff] %v2857
          %3122 = vst [vmem:[%s338 + $0x710] sm:$0xff] %v2858
          %3123 = vst [vmem:[%s338 + $0x718] sm:$0xff] %v2859
          %3124 = vst [vmem:[%s338 + $0x720] sm:$0xff] %v2860
          %3125 = vst [vmem:[%s338 + $0x728] sm:$0xff] %v2861
          %3126 = vst [vmem:[%s338 + $0x730] sm:$0xff] %v2862
          %3127 = vst [vmem:[%s338 + $0x738] sm:$0xff] %v2863
          %3128 = vst [vmem:[%s338 + $0x740] sm:$0xff] %v2864
          %3129 = vst [vmem:[%s338 + $0x748] sm:$0xff] %v2865
          %3130 = vst [vmem:[%s338 + $0x750] sm:$0xff] %v2866
          %3131 = vst [vmem:[%s338 + $0x758] sm:$0xff] %v2867
          %3132 = vst [vmem:[%s338 + $0x760] sm:$0xff] %v2868
          %3133 = vst [vmem:[%s338 + $0x768] sm:$0xff] %v2869
          %3134 = vst [vmem:[%s338 + $0x770] sm:$0xff] %v2870
          %3135 = vst [vmem:[%s338 + $0x778] sm:$0xff] %v2871
          %3136 = vst [vmem:[%s338 + $0x780] sm:$0xff] %v2872
          %3137 = vst [vmem:[%s338 + $0x788] sm:$0xff] %v2873
          %3138 = vst [vmem:[%s338 + $0x790] sm:$0xff] %v2874
          %3139 = vst [vmem:[%s338 + $0x798] sm:$0xff] %v2875
          %3140 = vst [vmem:[%s338 + $0x7a0] sm:$0xff] %v2876
          %3141 = vst [vmem:[%s338 + $0x7a8] sm:$0xff] %v2877
          %3142 = vst [vmem:[%s338 + $0x7b0] sm:$0xff] %v2878
          %3143 = vst [vmem:[%s338 + $0x7b8] sm:$0xff] %v2879
          %3144 = vst [vmem:[%s338 + $0x7c0] sm:$0xff] %v2880
          %3145 = vst [vmem:[%s338 + $0x7c8] sm:$0xff] %v2881
          %3146 = vst [vmem:[%s338 + $0x7d0] sm:$0xff] %v2882
          %3147 = vst [vmem:[%s338 + $0x7d8] sm:$0xff] %v2883
          %3148 = vst [vmem:[%s338 + $0x7e0] sm:$0xff] %v2884
          %3149 = vst [vmem:[%s338 + $0x7e8] sm:$0xff] %v2885
          %3150 = vst [vmem:[%s338 + $0x7f0] sm:$0xff] %v2886
          %3151 = vst [vmem:[%s338 + $0x7f8] sm:$0xff] %v2887
          %3152 = vst [vmem:[%s338 + $0x800] sm:$0xff] %v2888
          %3153 = vst [vmem:[%s338 + $0x808] sm:$0xff] %v2889
          %3154 = vst [vmem:[%s338 + $0x810] sm:$0xff] %v2890
          %3155 = vst [vmem:[%s338 + $0x818] sm:$0xff] %v2891
          %3156 = vst [vmem:[%s338 + $0x820] sm:$0xff] %v2892
          %3157 = vst [vmem:[%s338 + $0x828] sm:$0xff] %v2893
          %3158 = vst [vmem:[%s338 + $0x830] sm:$0xff] %v2894
          %3159 = vst [vmem:[%s338 + $0x838] sm:$0xff] %v2895
        $region67: #{pallas_matmul.1} parent=50 // pred_fallthru
          _
        %s3160 = sand.u32 %s131, 1
        %s3161 = scalar_lea.sflag [#allocation6], %s3160
        %s3162 = sand.u32 %s131, 1
        %s3163 = smul.addr %s3162, 2112
        %s3164 = scalar_lea.vmem [#allocation7], %s3163
        // Predicated region
        $region68: #{pallas_matmul.1} parent=50 // pred_check
          %p3165 = pneg %p141
        $region69: #{pallas_matmul.1} parent=50 // pred_check_branch
          %3167 = sbr.rel (%p3165) target = $region71
        $region70: #{pallas_matmul.1} parent=50 // pred_region
          %s3168 = smul.u32 132, %s25
          %s3169 = smul.u32 2, %s26
          %s3171 = ssub.s32 33792, 33792
          %3172 = vsyncadd %s3161, %s3171
          %s3173 = smul.addr %s3168, 4
          %s3174 = sadd.s32 %s3169, %s3173
          %s3175 = smul.addr %s3174, 128
          %s3176 = scalar_lea.hbm %s3, %s3175
          %s3177 = sshll.u32 %s3164, 4
          %s3178 = int_to_ptr.vmem [resolvable:$true] %s3177
          %3183 = dma.vmem_to_hbm [thread:$0]  %s3178, 33792, %s3176, %s3161, 256, 512, 16
        $region71: #{pallas_matmul.1} parent=50 // pred_fallthru
          _
      $region51: #{pallas_matmul.1} parent=5 // pred_fallthru
        _
      %p3184 = scmp.le.s32.totalorder 2, %s15
      // Predicated region
      $region72: #{pallas_matmul.1} parent=5 // pred_check
        %p3185 = pneg %p3184
      $region73: #{pallas_matmul.1} parent=5 // pred_check_branch
        %3187 = sbr.rel (%p3185) target = $region75
      $region74: #{pallas_matmul.1} parent=5 // pred_region
        %s3188 = ssub.s32 %s15, 2
        // Predicated region
        $region76: #{pallas_matmul.1} parent=74 // pred_check
          %p3189 = pneg %p147
        $region77: #{pallas_matmul.1} parent=74 // pred_check_branch
          %3191 = sbr.rel (%p3189) target = $region79
        $region78: #{pallas_matmul.1} parent=74 // pred_region
          %s3192 = sand.u32 %s132, 1
          %s3193 = scalar_lea.sflag [#allocation6], %s3192
          %s3194 = sand.u32 %s132, 1
          %s3195 = smul.addr %s3194, 2112
          %s3196 = scalar_lea.vmem [#allocation7], %s3195
          %3197 = dma.done %s3193, 33792
        $region79: #{pallas_matmul.1} parent=74 // pred_fallthru
          _
      $region75: #{pallas_matmul.1} parent=5 // pred_fallthru
        _
    $region6: #{pallas_matmul.1} parent=1 // loop_footer
      %s19 = sadd.s32 1, %s15
    $region7: #{pallas_matmul.1} parent=1 // loop_footer_branch
      %14 = sbr.rel target = $region3
    $region8: #{pallas_matmul.1} parent=1 // loop_exit
      _
    %3198 = vsyncpa [#allocation5], 1
    %s3199 = scalar_lea.sflag [#allocation5], 1
    %3200 = vsyncpa %s3199, 1
    %3201 = vsyncpa [#allocation6], 1
    %s3202 = scalar_lea.sflag [#allocation6], 1
    %3203 = vsyncpa %s3202, 1

</llo_original>
